<compile_context>
chip_gen: v6e
topology: v6e:2x2x1
jax: 0.10.0
libtpu: 0.0.40
codegen_flags: <defaults>
</compile_context>

<pallas_src>
import jax
import jax.numpy as jnp
import numpy as np
from jax.experimental import pallas as pl
from jax.experimental.pallas import tpu as pltpu

_MXU_DTYPE = jnp.bfloat16          # MXU-native operand dtype (accumulate f32)

_COMPILER_PARAMS = pltpu.CompilerParams(
    dimension_semantics=("parallel",),       # v7x: shard blocks over 2 TCs
    vmem_limit_bytes=32 * 1024 * 1024,
)


# ----------------------------------------------------------------------------
# Pallas kernels
# ----------------------------------------------------------------------------
def _conv_block_kernel(x_ref, w_ref, b_ref, s_ref, t_ref, o_ref):
    """One [conv(3x3) + bias + tanh + BN affine + maxpool(2x2)] layer, one block.

    x_ref : (1, 4*M, K) bf16  im2col patches, rows ordered (pool-member g,
            image n, pooled position p); K = 3*3*Cin.
    w_ref : (K, Cout) bf16    conv weights flattened (ky, kx, cin) x cout
    b_ref, s_ref, t_ref : (1, Cout) f32  conv bias / folded BN scale / shift
    o_ref : (1, M, Cout) f32  pooled activations, rows ordered (n, p)
    """
    M = o_ref.shape[1]
    # Single long MXU push over all pool members / images / positions.
    z = jnp.dot(x_ref[0], w_ref[...], preferred_element_type=jnp.float32)
    z0, z1 = z[0 * M:1 * M], z[1 * M:2 * M]
    z2, z3 = z[2 * M:3 * M], z[3 * M:4 * M]
    zmax = jnp.maximum(jnp.maximum(z0, z1), jnp.maximum(z2, z3))
    zmin = jnp.minimum(jnp.minimum(z0, z1), jnp.minimum(z2, z3))
    s = s_ref[...]
    # Pool before tanh/affine: tanh is monotone and bias is per-channel, so
    # max_g[tanh(z_g+b)*s+t] == tanh((s>=0 ? max : min)(z_g)+b)*s+t  (exact).
    zsel = jnp.where(s >= 0.0, zmax, zmin)
    y = jnp.tanh(zsel + b_ref[...]) * s + t_ref[...]
    o_ref[0] = y.astype(o_ref.dtype)


def _last_block_kernel(x_ref, w_ref, b_ref, s_ref, t_ref,
                       w1_ref, b1_ref, w2_ref, b2_ref, o_ref, y_scr):
    """Last conv block fused with the MLP prediction head.

    x_ref  : (1, 4*P*Nb, K) bf16  patches, rows ordered (g, position p, image n)
    w_ref  : (K, C) bf16 ; b/s/t : (1, C) f32
    w1_ref : (P, C, Bn) bf16   Linear-1 weights regrouped per spatial position
    b1_ref : (1, Bn) f32 ; w2_ref : (Bn, 1) bf16 ; b2_ref : (1, 1) f32
    o_ref  : (1, Nb, 1) f32    probabilities
    y_scr  : (P*Nb, C) f32     VMEM scratch for the pooled activations
    """
    P = w1_ref.shape[0]
    Nb = o_ref.shape[1]
    M = P * Nb
    z = jnp.dot(x_ref[0], w_ref[...], preferred_element_type=jnp.float32)
    z0, z1 = z[0 * M:1 * M], z[1 * M:2 * M]
    z2, z3 = z[2 * M:3 * M], z[3 * M:4 * M]
    zmax = jnp.maximum(jnp.maximum(z0, z1), jnp.maximum(z2, z3))
    zmin = jnp.minimum(jnp.minimum(z0, z1), jnp.minimum(z2, z3))
    s = s_ref[...]
    y_scr[...] = jnp.tanh(jnp.where(s >= 0.0, zmax, zmin) + b_ref[...]) * s \
        + t_ref[...]
    # MLP head.  Linear-1 is computed as a sum over spatial positions (weights
    # were regrouped in the wrapper), so no in-kernel transpose is needed.
    h = jnp.zeros((Nb, b1_ref.shape[1]), jnp.float32)
    for p in range(P):                       # static unroll, P is tiny
        chunk = y_scr[pl.ds(p * Nb, Nb), :]
        h = h + jnp.dot(chunk.astype(w1_ref.dtype), w1_ref[p],
                        preferred_element_type=jnp.float32)
    h = jnp.tanh(h + b1_ref[...])
    o = jnp.dot(h.astype(w2_ref.dtype), w2_ref[...],
                preferred_element_type=jnp.float32) + b2_ref[...]
    o_ref[0] = jax.nn.sigmoid(o).astype(o_ref.dtype)


# ----------------------------------------------------------------------------
# pallas_call wrappers
# ----------------------------------------------------------------------------
def _conv_tanh_bn_pool(patches, wmat, b, scale, shift, out_m, cout):
    nb, gm, k = patches.shape
    return pl.pallas_call(
        _conv_block_kernel,
        out_shape=jax.ShapeDtypeStruct((nb, out_m, cout), jnp.float32),
        grid=(nb,),
        in_specs=[
            pl.BlockSpec((1, gm, k), lambda i: (i, 0, 0)),
            pl.BlockSpec((k, cout), lambda i: (0, 0)),
            pl.BlockSpec((1, cout), lambda i: (0, 0)),
            pl.BlockSpec((1, cout), lambda i: (0, 0)),
            pl.BlockSpec((1, cout), lambda i: (0, 0)),
        ],
        out_specs=pl.BlockSpec((1, out_m, cout), lambda i: (i, 0, 0)),
        compiler_params=_COMPILER_PARAMS,
    )(patches, wmat, b, scale, shift)


def _last_block(patches, wmat, b, scale, shift, w1r, b1, w2, b2, nb_img):
    nb, gm, k = patches.shape
    cout = wmat.shape[1]
    p3, _, bn = w1r.shape
    return pl.pallas_call(
        _last_block_kernel,
        out_shape=jax.ShapeDtypeStruct((nb, nb_img, 1), jnp.float32),
        grid=(nb,),
        in_specs=[
            pl.BlockSpec((1, gm, k), lambda i: (i, 0, 0)),
            pl.BlockSpec((k, cout), lambda i: (0, 0)),
            pl.BlockSpec((1, cout), lambda i: (0, 0)),
            pl.BlockSpec((1, cout), lambda i: (0, 0)),
            pl.BlockSpec((1, cout), lambda i: (0, 0)),
            pl.BlockSpec((p3, cout, bn), lambda i: (0, 0, 0)),
            pl.BlockSpec((1, bn), lambda i: (0, 0)),
            pl.BlockSpec((bn, 1), lambda i: (0, 0)),
            pl.BlockSpec((1, 1), lambda i: (0, 0)),
        ],
        out_specs=pl.BlockSpec((1, nb_img, 1), lambda i: (i, 0, 0)),
        scratch_shapes=[pltpu.VMEM((p3 * nb_img, cout), jnp.float32)],
        compiler_params=_COMPILER_PARAMS,
    )(patches, wmat, b, scale, shift, w1r, b1, w2, b2)


# ----------------------------------------------------------------------------
# JAX glue: im2col with pool-group packing (pure data movement, runs in XLA)
# ----------------------------------------------------------------------------
def _im2col_pool_grouped(y, n_blocks, rows_pn=False):
    """y: (N, H, W, Cin) -> (n_blocks, 4*Nb*P, 9*Cin) bf16 patches.

    Within each block the rows are ordered (g, n, p) by default or (g, p, n) if
    rows_pn (used for the last layer so the fused MLP can read contiguous
    per-position chunks).  g indexes the 2x2 max-pool window member, p the
    pooled spatial position (row-major), K the flattened (ky, kx, cin) patch
    with SAME (pad=1) padding.
    """
    N, H, W, Cin = y.shape
    Nb = N // n_blocks
    P = (H // 2) * (W // 2)
    yp = jnp.pad(y, ((0, 0), (1, 1), (1, 1), (0, 0)))
    pat = jnp.stack(
        [yp[:, ky:ky + H, kx:kx + W, :] for ky in range(3) for kx in range(3)],
        axis=3)                                       # (N, H, W, 9, Cin)
    pat = pat.reshape(N, H, W, 9 * Cin)
    pat = pat.reshape(N, H // 2, 2, W // 2, 2, 9 * Cin)
    pat = pat.transpose(0, 2, 4, 1, 3, 5)             # (N, di, dj, i, j, K)
    pat = pat.reshape(n_blocks, Nb, 4, P, 9 * Cin)
    if rows_pn:
        pat = pat.transpose(0, 2, 3, 1, 4)            # (blk, g, p, n, K)
    else:
        pat = pat.transpose(0, 2, 1, 3, 4)            # (blk, g, n, p, K)
    return pat.reshape(n_blocks, 4 * Nb * P, 9 * Cin).astype(_MXU_DTYPE)


# ----------------------------------------------------------------------------
# Full forward pass
# ----------------------------------------------------------------------------
def conv_discriminator_forward(x, params):
    """x: (B, D, C, H, W) as in the PyTorch module. Returns (B, D, 1)."""
    B, D, C, H, W = x.shape
    N = B * D
    n_blocks = 2 if N % 2 == 0 else 1      # >=2 parallel blocks keeps v7x busy
    Nb = N // n_blocks
    y = x.reshape(N, C, H, W).transpose(0, 2, 3, 1).astype(jnp.float32)

    convs = params["conv"]
    for (w, b, scale, shift) in convs[:-1]:
        _, h, wsp, cin = y.shape
        cout = w.shape[-1]
        P = (h // 2) * (wsp // 2)
        patches = _im2col_pool_grouped(y, n_blocks)            # (blk, 4*Nb*P, K)
        wmat = w.reshape(9 * cin, cout).astype(_MXU_DTYPE)
        out = _conv_tanh_bn_pool(patches, wmat, b, scale, shift, Nb * P, cout)
        y = out.reshape(N, h // 2, wsp // 2, cout)

    # Last conv block fused with the MLP prediction head.
    w, b, scale, shift = convs[-1]
    _, h, wsp, cin = y.shape
    cout = w.shape[-1]
    P3 = (h // 2) * (wsp // 2)
    patches = _im2col_pool_grouped(y, n_blocks, rows_pn=True)
    wmat = w.reshape(9 * cin, cout).astype(_MXU_DTYPE)
    bottleneck = params["w1"].shape[1]
    # Regroup Linear-1 rows from PyTorch's (c, i, j) flatten order into
    # per-spatial-position blocks: w1r[p, c, :] == w1[c*P3 + p, :].
    w1r = params["w1"].reshape(cout, P3, bottleneck).transpose(1, 0, 2)
    probs = _last_block(patches, wmat, b, scale, shift,
                        w1r.astype(_MXU_DTYPE), params["b1"],
                        params["w2"].astype(_MXU_DTYPE), params["b2"], Nb)
    return probs.reshape(B, D, 1)


# ----------------------------------------------------------------------------
# Deterministic parameter initialization (synthetic, matches __init__ shapes)
# ----------------------------------------------------------------------------
def init_params(key, input_channels, nlayers, nfilt, inp_size, bottleneck_dim):
    keys = jax.random.split(key, 2 * nlayers + 4)
    ki = 0
    conv_params = []
    prev_filt, next_filt = input_channels, nfilt
    hw = list(inp_size)
    for i in range(nlayers):
        w = jax.random.normal(keys[ki], (3, 3, prev_filt, next_filt),
                              jnp.float32) * 0.1; ki += 1
        b = jax.random.normal(keys[ki], (1, next_filt), jnp.float32) * 0.05; ki += 1
        # BatchNorm3d eval-mode: fold running stats + affine into scale/shift
        gamma = jnp.ones((1, next_filt), jnp.float32)
        beta = jnp.zeros((1, next_filt), jnp.float32)
        rmean = jnp.zeros((1, next_filt), jnp.float32)
        rvar = jnp.ones((1, next_filt), jnp.float32)
        scale = gamma / jnp.sqrt(rvar + 1e-5)
        shift = beta - rmean * scale
        conv_params.append((w, b, scale, shift))
        prev_filt = next_filt
        next_filt = next_filt * min(2 ** i, 8)
        hw = [v // 2 for v in hw]
    feat_dim = prev_filt * hw[0] * hw[1]
    w1 = jax.random.normal(keys[ki], (feat_dim, bottleneck_dim),
                           jnp.float32) / np.sqrt(feat_dim); ki += 1
    b1 = jax.random.normal(keys[ki], (1, bottleneck_dim), jnp.float32) * 0.05; ki += 1
    w2 = jax.random.normal(keys[ki], (bottleneck_dim, 1),
                           jnp.float32) / np.sqrt(bottleneck_dim); ki += 1
    b2 = jax.random.normal(keys[ki], (1, 1), jnp.float32) * 0.05; ki += 1
    return {"conv": conv_params, "w1": w1, "b1": b1, "w2": w2, "b2": b2}


# ----------------------------------------------------------------------------
# Pure-JAX reference (f32, for correctness check)
# ----------------------------------------------------------------------------
def reference_forward(x, params):
    B, D, C, H, W = x.shape
    y = x.reshape(B * D, C, H, W).transpose(0, 2, 3, 1).astype(jnp.float32)
    for (w, b, scale, shift) in params["conv"]:
        y = jax.lax.conv_general_dilated(
            y, w, window_strides=(1, 1), padding=((1, 1), (1, 1)),
            dimension_numbers=("NHWC", "HWIO", "NHWC"),
            precision=jax.lax.Precision.HIGHEST)
        y = jnp.tanh(y + b.reshape(1, 1, 1, -1))
        y = y * scale.reshape(1, 1, 1, -1) + shift.reshape(1, 1, 1, -1)
        y = jax.lax.reduce_window(y, -jnp.inf, jax.lax.max,
                                  (1, 2, 2, 1), (1, 2, 2, 1), "VALID")
    feats = y.transpose(0, 3, 1, 2).reshape(B * D, -1)
    h = jnp.tanh(jnp.dot(feats, params["w1"],
                         precision=jax.lax.Precision.HIGHEST) + params["b1"])
    o = jnp.dot(h, params["w2"],
                precision=jax.lax.Precision.HIGHEST) + params["b2"]
    return jax.nn.sigmoid(o).reshape(B, D, 1)


# ----------------------------------------------------------------------------
if __name__ == "__main__":
    B, Dp, C, H, W = 2, 4, 4, 16, 16          # x: (B, depth, channels, H, W)
    nlayers, nfilt, bottleneck = 3, 16, 32

    key = jax.random.PRNGKey(0)
    kx, kp = jax.random.split(key)
    x = jax.random.normal(kx, (B, Dp, C, H, W), jnp.float32)
    params = init_params(kp, C, nlayers, nfilt, (H, W), bottleneck)

    fwd = jax.jit(conv_discriminator_forward)
    out = jax.block_until_ready(fwd(x, params))
    assert out.shape == (B, Dp, 1), out.shape

    ref = jax.block_until_ready(reference_forward(x, params))
    # Tolerance relaxed vs. the f32 reference because the kernels use bf16 MXU
    # operands (f32 accumulation); observed error is well inside this bound.
    np.testing.assert_allclose(np.asarray(out), np.asarray(ref),
                               rtol=2e-2, atol=2e-2)
    print("KERNEL_OK")
</pallas_src>

<mosaic_0001>
module attributes {stable_mosaic.version = 11 : i64} {
  func.func @_conv_block_kernel(%arg0: i32, %arg1: memref<1x1024x36xbf16, #tpu.memory_space<vmem>>, %arg2: memref<36x16xbf16, #tpu.memory_space<vmem>>, %arg3: memref<1x16xf32, #tpu.memory_space<vmem>>, %arg4: memref<1x16xf32, #tpu.memory_space<vmem>>, %arg5: memref<1x16xf32, #tpu.memory_space<vmem>>, %arg6: memref<1x256x16xf32, #tpu.memory_space<vmem>>) attributes {dimension_semantics = [#tpu.dimension_semantics<parallel>], iteration_bounds = array<i64: 2>, scalar_prefetch = 0 : i64, scratch_operands = 0 : i64, tpu.core_type = #tpu.core_type<tc>, window_params = [{transform_indices = @transform_0, window_bounds = array<i64: 1, 1024, 36>}, {pipeline_mode = #tpu.pipeline_mode<synchronous>, transform_indices = @transform_1, window_bounds = array<i64: 36, 16>}, {pipeline_mode = #tpu.pipeline_mode<synchronous>, transform_indices = @transform_2, window_bounds = array<i64: 1, 16>}, {pipeline_mode = #tpu.pipeline_mode<synchronous>, transform_indices = @transform_3, window_bounds = array<i64: 1, 16>}, {pipeline_mode = #tpu.pipeline_mode<synchronous>, transform_indices = @transform_4, window_bounds = array<i64: 1, 16>}, {transform_indices = @transform_5, window_bounds = array<i64: 1, 256, 16>}]} {
    %c0 = arith.constant 0 : index
    %c0_0 = arith.constant 0 : index
    %c0_1 = arith.constant 0 : index
    %0 = vector.load %arg1[%c0, %c0_0, %c0_1] : memref<1x1024x36xbf16, #tpu.memory_space<vmem>>, vector<1x1024x36xbf16>
    %1 = vector.shape_cast %0 : vector<1x1024x36xbf16> to vector<1024x36xbf16>
    %c0_2 = arith.constant 0 : index
    %c0_3 = arith.constant 0 : index
    %2 = vector.load %arg2[%c0_2, %c0_3] : memref<36x16xbf16, #tpu.memory_space<vmem>>, vector<36x16xbf16>
    %cst = arith.constant dense<0.000000e+00> : vector<1024x16xf32>
    %3 = tpu.matmul %1, %2, %cst {dimension_numbers = #tpu.dot_dimension_numbers<[1], [0], [0], [1], [0, 0, 1, 1], [], []>} : vector<1024x36xbf16>, vector<36x16xbf16>, vector<1024x16xf32> -> vector<1024x16xf32>
    %4 = vector.extract_strided_slice %3 {offsets = [0, 0], sizes = [256, 16], strides = [1, 1]} : vector<1024x16xf32> to vector<256x16xf32>
    %5 = vector.extract_strided_slice %3 {offsets = [256, 0], sizes = [256, 16], strides = [1, 1]} : vector<1024x16xf32> to vector<256x16xf32>
    %6 = vector.extract_strided_slice %3 {offsets = [512, 0], sizes = [256, 16], strides = [1, 1]} : vector<1024x16xf32> to vector<256x16xf32>
    %7 = vector.extract_strided_slice %3 {offsets = [768, 0], sizes = [256, 16], strides = [1, 1]} : vector<1024x16xf32> to vector<256x16xf32>
    %8 = arith.maximumf %4, %5 : vector<256x16xf32>
    %9 = arith.maximumf %6, %7 : vector<256x16xf32>
    %10 = arith.maximumf %8, %9 : vector<256x16xf32>
    %11 = arith.minimumf %4, %5 : vector<256x16xf32>
    %12 = arith.minimumf %6, %7 : vector<256x16xf32>
    %13 = arith.minimumf %11, %12 : vector<256x16xf32>
    %c0_4 = arith.constant 0 : index
    %c0_5 = arith.constant 0 : index
    %14 = vector.load %arg4[%c0_4, %c0_5] : memref<1x16xf32, #tpu.memory_space<vmem>>, vector<1x16xf32>
    %cst_6 = arith.constant 0.000000e+00 : f32
    %15 = vector.broadcast %cst_6 : f32 to vector<1x16xf32>
    %16 = arith.cmpf oge, %14, %15 : vector<1x16xf32>
    %17 = vector.shape_cast %16 : vector<1x16xi1> to vector<1x16xi1>
    %18 = vector.broadcast %17 : vector<1x16xi1> to vector<256x16xi1>
    %19 = arith.select %18, %10, %13 : vector<256x16xi1>, vector<256x16xf32>
    %c0_7 = arith.constant 0 : index
    %c0_8 = arith.constant 0 : index
    %20 = vector.load %arg3[%c0_7, %c0_8] : memref<1x16xf32, #tpu.memory_space<vmem>>, vector<1x16xf32>
    %21 = vector.broadcast %20 : vector<1x16xf32> to vector<256x16xf32>
    %22 = arith.addf %19, %21 : vector<256x16xf32>
    %23 = math.tanh %22 : vector<256x16xf32>
    %24 = vector.broadcast %14 : vector<1x16xf32> to vector<256x16xf32>
    %25 = arith.mulf %23, %24 : vector<256x16xf32>
    %c0_9 = arith.constant 0 : index
    %c0_10 = arith.constant 0 : index
    %26 = vector.load %arg5[%c0_9, %c0_10] : memref<1x16xf32, #tpu.memory_space<vmem>>, vector<1x16xf32>
    %27 = vector.broadcast %26 : vector<1x16xf32> to vector<256x16xf32>
    %28 = arith.addf %25, %27 : vector<256x16xf32>
    %c0_11 = arith.constant 0 : index
    %c0_12 = arith.constant 0 : index
    %c0_13 = arith.constant 0 : index
    %29 = vector.load %arg6[%c0_11, %c0_12, %c0_13] : memref<1x256x16xf32, #tpu.memory_space<vmem>>, vector<1x256x16xf32>
    %30 = vector.shape_cast %29 : vector<1x256x16xf32> to vector<256x16xf32>
    %31 = vector.shape_cast %28 : vector<256x16xf32> to vector<1x256x16xf32>
    tpu.vector_store %arg6[%c0_11, %c0_12, %c0_13], %31 {strides = array<i32>} : memref<1x256x16xf32, #tpu.memory_space<vmem>>, vector<1x256x16xf32>,
    return
  }
  func.func @transform_0(%arg0: i32) -> (i32, i32, i32) {
    %c0_i32 = arith.constant 0 : i32
    %c0_i32_0 = arith.constant 0 : i32
    %c0_i32_1 = arith.constant 0 : i32
    return %arg0, %c0_i32, %c0_i32_0 : i32, i32, i32
  }
  func.func @transform_1(%arg0: i32) -> (i32, i32) {
    %c0_i32 = arith.constant 0 : i32
    %c0_i32_0 = arith.constant 0 : i32
    %c0_i32_1 = arith.constant 0 : i32
    return %c0_i32, %c0_i32_0 : i32, i32
  }
  func.func @transform_2(%arg0: i32) -> (i32, i32) {
    %c0_i32 = arith.constant 0 : i32
    %c0_i32_0 = arith.constant 0 : i32
    %c0_i32_1 = arith.constant 0 : i32
    return %c0_i32, %c0_i32_0 : i32, i32
  }
  func.func @transform_3(%arg0: i32) -> (i32, i32) {
    %c0_i32 = arith.constant 0 : i32
    %c0_i32_0 = arith.constant 0 : i32
    %c0_i32_1 = arith.constant 0 : i32
    return %c0_i32, %c0_i32_0 : i32, i32
  }
  func.func @transform_4(%arg0: i32) -> (i32, i32) {
    %c0_i32 = arith.constant 0 : i32
    %c0_i32_0 = arith.constant 0 : i32
    %c0_i32_1 = arith.constant 0 : i32
    return %c0_i32, %c0_i32_0 : i32, i32
  }
  func.func @transform_5(%arg0: i32) -> (i32, i32, i32) {
    %c0_i32 = arith.constant 0 : i32
    %c0_i32_0 = arith.constant 0 : i32
    %c0_i32_1 = arith.constant 0 : i32
    return %arg0, %c0_i32, %c0_i32_0 : i32, i32, i32
  }
}

module attributes {stable_mosaic.version = 11 : i64} {
  func.func @_conv_block_kernel(%arg0: i32, %arg1: memref<1x256x144xbf16, #tpu.memory_space<vmem>>, %arg2: memref<144x16xbf16, #tpu.memory_space<vmem>>, %arg3: memref<1x16xf32, #tpu.memory_space<vmem>>, %arg4: memref<1x16xf32, #tpu.memory_space<vmem>>, %arg5: memref<1x16xf32, #tpu.memory_space<vmem>>, %arg6: memref<1x64x16xf32, #tpu.memory_space<vmem>>) attributes {dimension_semantics = [#tpu.dimension_semantics<parallel>], iteration_bounds = array<i64: 2>, scalar_prefetch = 0 : i64, scratch_operands = 0 : i64, tpu.core_type = #tpu.core_type<tc>, window_params = [{transform_indices = @transform_0, window_bounds = array<i64: 1, 256, 144>}, {pipeline_mode = #tpu.pipeline_mode<synchronous>, transform_indices = @transform_1, window_bounds = array<i64: 144, 16>}, {pipeline_mode = #tpu.pipeline_mode<synchronous>, transform_indices = @transform_2, window_bounds = array<i64: 1, 16>}, {pipeline_mode = #tpu.pipeline_mode<synchronous>, transform_indices = @transform_3, window_bounds = array<i64: 1, 16>}, {pipeline_mode = #tpu.pipeline_mode<synchronous>, transform_indices = @transform_4, window_bounds = array<i64: 1, 16>}, {transform_indices = @transform_5, window_bounds = array<i64: 1, 64, 16>}]} {
    %c0 = arith.constant 0 : index
    %c0_0 = arith.constant 0 : index
    %c0_1 = arith.constant 0 : index
    %0 = vector.load %arg1[%c0, %c0_0, %c0_1] : memref<1x256x144xbf16, #tpu.memory_space<vmem>>, vector<1x256x144xbf16>
    %1 = vector.shape_cast %0 : vector<1x256x144xbf16> to vector<256x144xbf16>
    %c0_2 = arith.constant 0 : index
    %c0_3 = arith.constant 0 : index
    %2 = vector.load %arg2[%c0_2, %c0_3] : memref<144x16xbf16, #tpu.memory_space<vmem>>, vector<144x16xbf16>
    %cst = arith.constant dense<0.000000e+00> : vector<256x16xf32>
    %3 = tpu.matmul %1, %2, %cst {dimension_numbers = #tpu.dot_dimension_numbers<[1], [0], [0], [1], [0, 0, 1, 1], [], []>} : vector<256x144xbf16>, vector<144x16xbf16>, vector<256x16xf32> -> vector<256x16xf32>
    %4 = vector.extract_strided_slice %3 {offsets = [0, 0], sizes = [64, 16], strides = [1, 1]} : vector<256x16xf32> to vector<64x16xf32>
    %5 = vector.extract_strided_slice %3 {offsets = [64, 0], sizes = [64, 16], strides = [1, 1]} : vector<256x16xf32> to vector<64x16xf32>
    %6 = vector.extract_strided_slice %3 {offsets = [128, 0], sizes = [64, 16], strides = [1, 1]} : vector<256x16xf32> to vector<64x16xf32>
    %7 = vector.extract_strided_slice %3 {offsets = [192, 0], sizes = [64, 16], strides = [1, 1]} : vector<256x16xf32> to vector<64x16xf32>
    %8 = arith.maximumf %4, %5 : vector<64x16xf32>
    %9 = arith.maximumf %6, %7 : vector<64x16xf32>
    %10 = arith.maximumf %8, %9 : vector<64x16xf32>
    %11 = arith.minimumf %4, %5 : vector<64x16xf32>
    %12 = arith.minimumf %6, %7 : vector<64x16xf32>
    %13 = arith.minimumf %11, %12 : vector<64x16xf32>
    %c0_4 = arith.constant 0 : index
    %c0_5 = arith.constant 0 : index
    %14 = vector.load %arg4[%c0_4, %c0_5] : memref<1x16xf32, #tpu.memory_space<vmem>>, vector<1x16xf32>
    %cst_6 = arith.constant 0.000000e+00 : f32
    %15 = vector.broadcast %cst_6 : f32 to vector<1x16xf32>
    %16 = arith.cmpf oge, %14, %15 : vector<1x16xf32>
    %17 = vector.shape_cast %16 : vector<1x16xi1> to vector<1x16xi1>
    %18 = vector.broadcast %17 : vector<1x16xi1> to vector<64x16xi1>
    %19 = arith.select %18, %10, %13 : vector<64x16xi1>, vector<64x16xf32>
    %c0_7 = arith.constant 0 : index
    %c0_8 = arith.constant 0 : index
    %20 = vector.load %arg3[%c0_7, %c0_8] : memref<1x16xf32, #tpu.memory_space<vmem>>, vector<1x16xf32>
    %21 = vector.broadcast %20 : vector<1x16xf32> to vector<64x16xf32>
    %22 = arith.addf %19, %21 : vector<64x16xf32>
    %23 = math.tanh %22 : vector<64x16xf32>
    %24 = vector.broadcast %14 : vector<1x16xf32> to vector<64x16xf32>
    %25 = arith.mulf %23, %24 : vector<64x16xf32>
    %c0_9 = arith.constant 0 : index
    %c0_10 = arith.constant 0 : index
    %26 = vector.load %arg5[%c0_9, %c0_10] : memref<1x16xf32, #tpu.memory_space<vmem>>, vector<1x16xf32>
    %27 = vector.broadcast %26 : vector<1x16xf32> to vector<64x16xf32>
    %28 = arith.addf %25, %27 : vector<64x16xf32>
    %c0_11 = arith.constant 0 : index
    %c0_12 = arith.constant 0 : index
    %c0_13 = arith.constant 0 : index
    %29 = vector.load %arg6[%c0_11, %c0_12, %c0_13] : memref<1x64x16xf32, #tpu.memory_space<vmem>>, vector<1x64x16xf32>
    %30 = vector.shape_cast %29 : vector<1x64x16xf32> to vector<64x16xf32>
    %31 = vector.shape_cast %28 : vector<64x16xf32> to vector<1x64x16xf32>
    tpu.vector_store %arg6[%c0_11, %c0_12, %c0_13], %31 {strides = array<i32>} : memref<1x64x16xf32, #tpu.memory_space<vmem>>, vector<1x64x16xf32>,
    return
  }
  func.func @transform_0(%arg0: i32) -> (i32, i32, i32) {
    %c0_i32 = arith.constant 0 : i32
    %c0_i32_0 = arith.constant 0 : i32
    %c0_i32_1 = arith.constant 0 : i32
    return %arg0, %c0_i32, %c0_i32_0 : i32, i32, i32
  }
  func.func @transform_1(%arg0: i32) -> (i32, i32) {
    %c0_i32 = arith.constant 0 : i32
    %c0_i32_0 = arith.constant 0 : i32
    %c0_i32_1 = arith.constant 0 : i32
    return %c0_i32, %c0_i32_0 : i32, i32
  }
  func.func @transform_2(%arg0: i32) -> (i32, i32) {
    %c0_i32 = arith.constant 0 : i32
    %c0_i32_0 = arith.constant 0 : i32
    %c0_i32_1 = arith.constant 0 : i32
    return %c0_i32, %c0_i32_0 : i32, i32
  }
  func.func @transform_3(%arg0: i32) -> (i32, i32) {
    %c0_i32 = arith.constant 0 : i32
    %c0_i32_0 = arith.constant 0 : i32
    %c0_i32_1 = arith.constant 0 : i32
    return %c0_i32, %c0_i32_0 : i32, i32
  }
  func.func @transform_4(%arg0: i32) -> (i32, i32) {
    %c0_i32 = arith.constant 0 : i32
    %c0_i32_0 = arith.constant 0 : i32
    %c0_i32_1 = arith.constant 0 : i32
    return %c0_i32, %c0_i32_0 : i32, i32
  }
  func.func @transform_5(%arg0: i32) -> (i32, i32, i32) {
    %c0_i32 = arith.constant 0 : i32
    %c0_i32_0 = arith.constant 0 : i32
    %c0_i32_1 = arith.constant 0 : i32
    return %arg0, %c0_i32, %c0_i32_0 : i32, i32, i32
  }
}

module attributes {stable_mosaic.version = 11 : i64} {
  func.func @_last_block_kernel(%arg0: i32, %arg1: memref<1x64x144xbf16, #tpu.memory_space<vmem>>, %arg2: memref<144x32xbf16, #tpu.memory_space<vmem>>, %arg3: memref<1x32xf32, #tpu.memory_space<vmem>>, %arg4: memref<1x32xf32, #tpu.memory_space<vmem>>, %arg5: memref<1x32xf32, #tpu.memory_space<vmem>>, %arg6: memref<4x32x32xbf16, #tpu.memory_space<vmem>>, %arg7: memref<1x32xf32, #tpu.memory_space<vmem>>, %arg8: memref<32x1xbf16, #tpu.memory_space<vmem>>, %arg9: memref<1x1xf32, #tpu.memory_space<vmem>>, %arg10: memref<1x4x1xf32, #tpu.memory_space<vmem>>, %arg11: memref<16x32xf32, #tpu.memory_space<vmem>>) attributes {dimension_semantics = [#tpu.dimension_semantics<parallel>], iteration_bounds = array<i64: 2>, scalar_prefetch = 0 : i64, scratch_operands = 1 : i64, tpu.core_type = #tpu.core_type<tc>, window_params = [{transform_indices = @transform_0, window_bounds = array<i64: 1, 64, 144>}, {pipeline_mode = #tpu.pipeline_mode<synchronous>, transform_indices = @transform_1, window_bounds = array<i64: 144, 32>}, {pipeline_mode = #tpu.pipeline_mode<synchronous>, transform_indices = @transform_2, window_bounds = array<i64: 1, 32>}, {pipeline_mode = #tpu.pipeline_mode<synchronous>, transform_indices = @transform_3, window_bounds = array<i64: 1, 32>}, {pipeline_mode = #tpu.pipeline_mode<synchronous>, transform_indices = @transform_4, window_bounds = array<i64: 1, 32>}, {pipeline_mode = #tpu.pipeline_mode<synchronous>, transform_indices = @transform_5, window_bounds = array<i64: 4, 32, 32>}, {pipeline_mode = #tpu.pipeline_mode<synchronous>, transform_indices = @transform_6, window_bounds = array<i64: 1, 32>}, {pipeline_mode = #tpu.pipeline_mode<synchronous>, transform_indices = @transform_7, window_bounds = array<i64: 32, 1>}, {pipeline_mode = #tpu.pipeline_mode<synchronous>, transform_indices = @transform_8, window_bounds = array<i64: 1, 1>}, {transform_indices = @transform_9, window_bounds = array<i64: 1, 4, 1>}]} {
    %c0 = arith.constant 0 : index
    %c0_0 = arith.constant 0 : index
    %c0_1 = arith.constant 0 : index
    %0 = vector.load %arg1[%c0, %c0_0, %c0_1] : memref<1x64x144xbf16, #tpu.memory_space<vmem>>, vector<1x64x144xbf16>
    %1 = vector.shape_cast %0 : vector<1x64x144xbf16> to vector<64x144xbf16>
    %c0_2 = arith.constant 0 : index
    %c0_3 = arith.constant 0 : index
    %2 = vector.load %arg2[%c0_2, %c0_3] : memref<144x32xbf16, #tpu.memory_space<vmem>>, vector<144x32xbf16>
    %cst = arith.constant dense<0.000000e+00> : vector<64x32xf32>
    %3 = tpu.matmul %1, %2, %cst {dimension_numbers = #tpu.dot_dimension_numbers<[1], [0], [0], [1], [0, 0, 1, 1], [], []>} : vector<64x144xbf16>, vector<144x32xbf16>, vector<64x32xf32> -> vector<64x32xf32>
    %4 = vector.extract_strided_slice %3 {offsets = [0, 0], sizes = [16, 32], strides = [1, 1]} : vector<64x32xf32> to vector<16x32xf32>
    %5 = vector.extract_strided_slice %3 {offsets = [16, 0], sizes = [16, 32], strides = [1, 1]} : vector<64x32xf32> to vector<16x32xf32>
    %6 = vector.extract_strided_slice %3 {offsets = [32, 0], sizes = [16, 32], strides = [1, 1]} : vector<64x32xf32> to vector<16x32xf32>
    %7 = vector.extract_strided_slice %3 {offsets = [48, 0], sizes = [16, 32], strides = [1, 1]} : vector<64x32xf32> to vector<16x32xf32>
    %8 = arith.maximumf %4, %5 : vector<16x32xf32>
    %9 = arith.maximumf %6, %7 : vector<16x32xf32>
    %10 = arith.maximumf %8, %9 : vector<16x32xf32>
    %11 = arith.minimumf %4, %5 : vector<16x32xf32>
    %12 = arith.minimumf %6, %7 : vector<16x32xf32>
    %13 = arith.minimumf %11, %12 : vector<16x32xf32>
    %c0_4 = arith.constant 0 : index
    %c0_5 = arith.constant 0 : index
    %14 = vector.load %arg4[%c0_4, %c0_5] : memref<1x32xf32, #tpu.memory_space<vmem>>, vector<1x32xf32>
    %cst_6 = arith.constant 0.000000e+00 : f32
    %15 = vector.broadcast %cst_6 : f32 to vector<1x32xf32>
    %16 = arith.cmpf oge, %14, %15 : vector<1x32xf32>
    %17 = vector.shape_cast %16 : vector<1x32xi1> to vector<1x32xi1>
    %18 = vector.broadcast %17 : vector<1x32xi1> to vector<16x32xi1>
    %19 = arith.select %18, %10, %13 : vector<16x32xi1>, vector<16x32xf32>
    %c0_7 = arith.constant 0 : index
    %c0_8 = arith.constant 0 : index
    %20 = vector.load %arg3[%c0_7, %c0_8] : memref<1x32xf32, #tpu.memory_space<vmem>>, vector<1x32xf32>
    %21 = vector.broadcast %20 : vector<1x32xf32> to vector<16x32xf32>
    %22 = arith.addf %19, %21 : vector<16x32xf32>
    %23 = math.tanh %22 : vector<16x32xf32>
    %24 = vector.broadcast %14 : vector<1x32xf32> to vector<16x32xf32>
    %25 = arith.mulf %23, %24 : vector<16x32xf32>
    %c0_9 = arith.constant 0 : index
    %c0_10 = arith.constant 0 : index
    %26 = vector.load %arg5[%c0_9, %c0_10] : memref<1x32xf32, #tpu.memory_space<vmem>>, vector<1x32xf32>
    %27 = vector.broadcast %26 : vector<1x32xf32> to vector<16x32xf32>
    %28 = arith.addf %25, %27 : vector<16x32xf32>
    %c0_11 = arith.constant 0 : index
    %c0_12 = arith.constant 0 : index
    %29 = vector.load %arg11[%c0_11, %c0_12] : memref<16x32xf32, #tpu.memory_space<vmem>>, vector<16x32xf32>
    tpu.vector_store %arg11[%c0_11, %c0_12], %28 {strides = array<i32>} : memref<16x32xf32, #tpu.memory_space<vmem>>, vector<16x32xf32>,
    %cst_13 = arith.constant 0.000000e+00 : f32
    %30 = vector.broadcast %cst_13 : f32 to vector<4x32xf32>
    %c0_14 = arith.constant 0 : index
    %c0_15 = arith.constant 0 : index
    %31 = vector.load %arg11[%c0_14, %c0_15] : memref<16x32xf32, #tpu.memory_space<vmem>>, vector<4x32xf32>
    %32 = arith.truncf %31 : vector<4x32xf32> to vector<4x32xbf16>
    %c0_16 = arith.constant 0 : index
    %c0_17 = arith.constant 0 : index
    %c0_18 = arith.constant 0 : index
    %33 = vector.load %arg6[%c0_16, %c0_17, %c0_18] : memref<4x32x32xbf16, #tpu.memory_space<vmem>>, vector<1x32x32xbf16>
    %34 = vector.shape_cast %33 : vector<1x32x32xbf16> to vector<32x32xbf16>
    %cst_19 = arith.constant dense<0.000000e+00> : vector<4x32xf32>
    %35 = tpu.matmul %32, %34, %cst_19 {dimension_numbers = #tpu.dot_dimension_numbers<[1], [0], [0], [1], [0, 0, 1, 1], [], []>} : vector<4x32xbf16>, vector<32x32xbf16>, vector<4x32xf32> -> vector<4x32xf32>
    %36 = arith.addf %30, %35 : vector<4x32xf32>
    %c4 = arith.constant 4 : index
    %c0_20 = arith.constant 0 : index
    %37 = vector.load %arg11[%c4, %c0_20] : memref<16x32xf32, #tpu.memory_space<vmem>>, vector<4x32xf32>
    %38 = arith.truncf %37 : vector<4x32xf32> to vector<4x32xbf16>
    %c1 = arith.constant 1 : index
    %c0_21 = arith.constant 0 : index
    %c0_22 = arith.constant 0 : index
    %39 = vector.load %arg6[%c1, %c0_21, %c0_22] : memref<4x32x32xbf16, #tpu.memory_space<vmem>>, vector<1x32x32xbf16>
    %40 = vector.shape_cast %39 : vector<1x32x32xbf16> to vector<32x32xbf16>
    %cst_23 = arith.constant dense<0.000000e+00> : vector<4x32xf32>
    %41 = tpu.matmul %38, %40, %cst_23 {dimension_numbers = #tpu.dot_dimension_numbers<[1], [0], [0], [1], [0, 0, 1, 1], [], []>} : vector<4x32xbf16>, vector<32x32xbf16>, vector<4x32xf32> -> vector<4x32xf32>
    %42 = arith.addf %36, %41 : vector<4x32xf32>
    %c8 = arith.constant 8 : index
    %c0_24 = arith.constant 0 : index
    %43 = vector.load %arg11[%c8, %c0_24] : memref<16x32xf32, #tpu.memory_space<vmem>>, vector<4x32xf32>
    %44 = arith.truncf %43 : vector<4x32xf32> to vector<4x32xbf16>
    %c2 = arith.constant 2 : index
    %c0_25 = arith.constant 0 : index
    %c0_26 = arith.constant 0 : index
    %45 = vector.load %arg6[%c2, %c0_25, %c0_26] : memref<4x32x32xbf16, #tpu.memory_space<vmem>>, vector<1x32x32xbf16>
    %46 = vector.shape_cast %45 : vector<1x32x32xbf16> to vector<32x32xbf16>
    %cst_27 = arith.constant dense<0.000000e+00> : vector<4x32xf32>
    %47 = tpu.matmul %44, %46, %cst_27 {dimension_numbers = #tpu.dot_dimension_numbers<[1], [0], [0], [1], [0, 0, 1, 1], [], []>} : vector<4x32xbf16>, vector<32x32xbf16>, vector<4x32xf32> -> vector<4x32xf32>
    %48 = arith.addf %42, %47 : vector<4x32xf32>
    %c12 = arith.constant 12 : index
    %c0_28 = arith.constant 0 : index
    %49 = vector.load %arg11[%c12, %c0_28] : memref<16x32xf32, #tpu.memory_space<vmem>>, vector<4x32xf32>
    %50 = arith.truncf %49 : vector<4x32xf32> to vector<4x32xbf16>
    %c3 = arith.constant 3 : index
    %c0_29 = arith.constant 0 : index
    %c0_30 = arith.constant 0 : index
    %51 = vector.load %arg6[%c3, %c0_29, %c0_30] : memref<4x32x32xbf16, #tpu.memory_space<vmem>>, vector<1x32x32xbf16>
    %52 = vector.shape_cast %51 : vector<1x32x32xbf16> to vector<32x32xbf16>
    %cst_31 = arith.constant dense<0.000000e+00> : vector<4x32xf32>
    %53 = tpu.matmul %50, %52, %cst_31 {dimension_numbers = #tpu.dot_dimension_numbers<[1], [0], [0], [1], [0, 0, 1, 1], [], []>} : vector<4x32xbf16>, vector<32x32xbf16>, vector<4x32xf32> -> vector<4x32xf32>
    %54 = arith.addf %48, %53 : vector<4x32xf32>
    %c0_32 = arith.constant 0 : index
    %c0_33 = arith.constant 0 : index
    %55 = vector.load %arg7[%c0_32, %c0_33] : memref<1x32xf32, #tpu.memory_space<vmem>>, vector<1x32xf32>
    %56 = vector.broadcast %55 : vector<1x32xf32> to vector<4x32xf32>
    %57 = arith.addf %54, %56 : vector<4x32xf32>
    %58 = math.tanh %57 : vector<4x32xf32>
    %59 = arith.truncf %58 : vector<4x32xf32> to vector<4x32xbf16>
    %c0_34 = arith.constant 0 : index
    %c0_35 = arith.constant 0 : index
    %60 = vector.load %arg8[%c0_34, %c0_35] : memref<32x1xbf16, #tpu.memory_space<vmem>>, vector<32x1xbf16>
    %cst_36 = arith.constant dense<0.000000e+00> : vector<4x1xf32>
    %61 = tpu.matmul %59, %60, %cst_36 {dimension_numbers = #tpu.dot_dimension_numbers<[1], [0], [0], [1], [0, 0, 1, 1], [], []>} : vector<4x32xbf16>, vector<32x1xbf16>, vector<4x1xf32> -> vector<4x1xf32>
    %c0_37 = arith.constant 0 : index
    %c0_38 = arith.constant 0 : index
    %62 = vector.load %arg9[%c0_37, %c0_38] : memref<1x1xf32, #tpu.memory_space<vmem>>, vector<1x1xf32>
    %63 = vector.broadcast %62 : vector<1x1xf32> to vector<4x1xf32>
    %64 = arith.addf %61, %63 : vector<4x1xf32>
    %65 = arith.negf %64 : vector<4x1xf32>
    %66 = math.exp %65 : vector<4x1xf32>
    %cst_39 = arith.constant 1.000000e+00 : f32
    %67 = vector.broadcast %cst_39 : f32 to vector<4x1xf32>
    %68 = arith.addf %67, %66 : vector<4x1xf32>
    %69 = arith.divf %67, %68 : vector<4x1xf32>
    %c0_40 = arith.constant 0 : index
    %c0_41 = arith.constant 0 : index
    %c0_42 = arith.constant 0 : index
    %70 = vector.load %arg10[%c0_40, %c0_41, %c0_42] : memref<1x4x1xf32, #tpu.memory_space<vmem>>, vector<1x4x1xf32>
    %71 = vector.shape_cast %70 : vector<1x4x1xf32> to vector<4x1xf32>
    %72 = vector.shape_cast %69 : vector<4x1xf32> to vector<1x4x1xf32>
    tpu.vector_store %arg10[%c0_40, %c0_41, %c0_42], %72 {strides = array<i32>} : memref<1x4x1xf32, #tpu.memory_space<vmem>>, vector<1x4x1xf32>,
    return
  }
  func.func @transform_0(%arg0: i32) -> (i32, i32, i32) {
    %c0_i32 = arith.constant 0 : i32
    %c0_i32_0 = arith.constant 0 : i32
    %c0_i32_1 = arith.constant 0 : i32
    return %arg0, %c0_i32, %c0_i32_0 : i32, i32, i32
  }
  func.func @transform_1(%arg0: i32) -> (i32, i32) {
    %c0_i32 = arith.constant 0 : i32
    %c0_i32_0 = arith.constant 0 : i32
    %c0_i32_1 = arith.constant 0 : i32
    return %c0_i32, %c0_i32_0 : i32, i32
  }
  func.func @transform_2(%arg0: i32) -> (i32, i32) {
    %c0_i32 = arith.constant 0 : i32
    %c0_i32_0 = arith.constant 0 : i32
    %c0_i32_1 = arith.constant 0 : i32
    return %c0_i32, %c0_i32_0 : i32, i32
  }
  func.func @transform_3(%arg0: i32) -> (i32, i32) {
    %c0_i32 = arith.constant 0 : i32
    %c0_i32_0 = arith.constant 0 : i32
    %c0_i32_1 = arith.constant 0 : i32
    return %c0_i32, %c0_i32_0 : i32, i32
  }
  func.func @transform_4(%arg0: i32) -> (i32, i32) {
    %c0_i32 = arith.constant 0 : i32
    %c0_i32_0 = arith.constant 0 : i32
    %c0_i32_1 = arith.constant 0 : i32
    return %c0_i32, %c0_i32_0 : i32, i32
  }
  func.func @transform_5(%arg0: i32) -> (i32, i32, i32) {
    %c0_i32 = arith.constant 0 : i32
    %c0_i32_0 = arith.constant 0 : i32
    %c0_i32_1 = arith.constant 0 : i32
    %c0_i32_2 = arith.constant 0 : i32
    return %c0_i32, %c0_i32_0, %c0_i32_1 : i32, i32, i32
  }
  func.func @transform_6(%arg0: i32) -> (i32, i32) {
    %c0_i32 = arith.constant 0 : i32
    %c0_i32_0 = arith.constant 0 : i32
    %c0_i32_1 = arith.constant 0 : i32
    return %c0_i32, %c0_i32_0 : i32, i32
  }
  func.func @transform_7(%arg0: i32) -> (i32, i32) {
    %c0_i32 = arith.constant 0 : i32
    %c0_i32_0 = arith.constant 0 : i32
    %c0_i32_1 = arith.constant 0 : i32
    return %c0_i32, %c0_i32_0 : i32, i32
  }
  func.func @transform_8(%arg0: i32) -> (i32, i32) {
    %c0_i32 = arith.constant 0 : i32
    %c0_i32_0 = arith.constant 0 : i32
    %c0_i32_1 = arith.constant 0 : i32
    return %c0_i32, %c0_i32_0 : i32, i32
  }
  func.func @transform_9(%arg0: i32) -> (i32, i32, i32) {
    %c0_i32 = arith.constant 0 : i32
    %c0_i32_0 = arith.constant 0 : i32
    %c0_i32_1 = arith.constant 0 : i32
    return %arg0, %c0_i32, %c0_i32_0 : i32, i32, i32
  }
}

</mosaic_0001>

<llo_original>
// kernel: conv_discriminator_forward.3
$region0: #{conv_discriminator_forward.3}
  #allocation0 [shape = 'u32[]', space=smem, size = 0x4, offset = 0x4, fixed_abs, tag = 'smem constant byte address 0x4 - core index']
  #allocation1 [shape = 'u32[144,128]{1,0:T(1,128)}', space=vmem, size = 0x12000, scoped, tag = 'internal scratch']
  %s0 = inlined_call_operand.vmem [shape: bf16[2,1024,36], index: 0, kind: input, shape index: {}]
  %s1 = inlined_call_operand.vmem [shape: bf16[36,16], index: 1, kind: input, shape index: {}]
  %s2 = inlined_call_operand.vmem [shape: f32[1,16], index: 2, kind: input, shape index: {}]
  %s3 = inlined_call_operand.vmem [shape: f32[1,16], index: 3, kind: input, shape index: {}]
  %s4 = inlined_call_operand.vmem [shape: f32[1,16], index: 4, kind: input, shape index: {}]
  %s5 = inlined_call_operand.vmem [shape: f32[2,256,16], index: 5, kind: output, shape index: {}]
  %s6 = sld [smem:[#allocation0]]
  $region53: #{conv_discriminator_forward.3} parent=0
    _
  %s8 = ssub.s32 1, %s6
  %s9 = scalar_select 0, %s8, %s6
  loop: start=0, step=1, limit=4
  $region2: #{conv_discriminator_forward.3} parent=0 // loop_pre_header
    _
  $region3: #{conv_discriminator_forward.3} parent=0 // loop_header
    %s11 = sphi 0, %s15
    %p12 = scmp.ge.s32.totalorder %s11, 4
    %s21 = sphi 0, %s23
    %s24 = sphi 0, %s21
    %s25 = sphi 0, %s24
    %s41 = sphi 0, %s25
    %s45 = sphi 0, %s45
    %s47 = sphi 0, %s45
    %s48 = sphi 0, %s47
    %s62 = sphi 0, %s48
    %s66 = sphi 0, %s66
    %s68 = sphi 0, %s66
    %s69 = sphi 0, %s68
    %s83 = sphi 0, %s69
    %s87 = sphi 0, %s87
    %s89 = sphi 0, %s87
    %s90 = sphi 0, %s89
    %s104 = sphi 0, %s90
    %s108 = sphi 0, %s108
    %s110 = sphi 0, %s108
    %s111 = sphi 0, %s110
    %s125 = sphi 0, %s111
    %s131 = sphi 0, %s133
    %s134 = sphi 0, %s131
    %s135 = sphi 0, %s134
    %s151 = sphi 0, %s135
  $region4: #{conv_discriminator_forward.3} parent=0 // loop_header_branch
    %14 = sbr.rel (%p12) target = $region8
  $region5: #{conv_discriminator_forward.3} parent=0 // loop_body
    %s16 = ssub.s32 %s11, 1
    %s17 = ssub.s32 %s11, 2
    %s18 = sadd.s32 %s11, 1
    %s19 = ssub.s32 %s11, %s18
    %p20 = scmp.eq.s32.totalorder %s19, 0
    %s22 = sadd.s32 %s21, 1
    %s23 = scalar_select %p20, %s21, %s22
    %p26 = pneg %p20
    %p27 = scmp.eq.s32.totalorder %s11, 1
    %p28 = por %p26, %p27
    %p29 = scmp.ne.s32.totalorder %s21, %s24
    %p30 = scmp.eq.s32.totalorder %s11, 0
    %p31 = por %p29, %p30
    %p32 = scmp.ne.s32.totalorder %s21, %s24
    %p33 = scmp.eq.s32.totalorder %s16, 1
    %p34 = por %p32, %p33
    %p35 = scmp.ne.s32.totalorder %s24, %s25
    %p36 = scmp.eq.s32.totalorder %s16, 0
    %p37 = por %p35, %p36
    %p38 = scmp.ne.s32.totalorder %s24, %s25
    %p39 = scmp.eq.s32.totalorder %s17, 1
    %p40 = por %p38, %p39
    %p42 = scmp.ne.s32.totalorder %s25, %s41
    %p43 = scmp.eq.s32.totalorder %s17, 0
    %p44 = por %p42, %p43
    %s46 = sadd.s32 %s45, 1
    %p49 = scmp.eq.s32.totalorder %s11, 1
    %p50 = scmp.ne.s32.totalorder %s45, %s47
    %p51 = scmp.eq.s32.totalorder %s11, 0
    %p52 = por %p50, %p51
    %p53 = scmp.ne.s32.totalorder %s45, %s47
    %p54 = scmp.eq.s32.totalorder %s16, 1
    %p55 = por %p53, %p54
    %p56 = scmp.ne.s32.totalorder %s47, %s48
    %p57 = scmp.eq.s32.totalorder %s16, 0
    %p58 = por %p56, %p57
    %p59 = scmp.ne.s32.totalorder %s47, %s48
    %p60 = scmp.eq.s32.totalorder %s17, 1
    %p61 = por %p59, %p60
    %p63 = scmp.ne.s32.totalorder %s48, %s62
    %p64 = scmp.eq.s32.totalorder %s17, 0
    %p65 = por %p63, %p64
    %s67 = sadd.s32 %s66, 1
    %p70 = scmp.eq.s32.totalorder %s11, 1
    %p71 = scmp.ne.s32.totalorder %s66, %s68
    %p72 = scmp.eq.s32.totalorder %s11, 0
    %p73 = por %p71, %p72
    %p74 = scmp.ne.s32.totalorder %s66, %s68
    %p75 = scmp.eq.s32.totalorder %s16, 1
    %p76 = por %p74, %p75
    %p77 = scmp.ne.s32.totalorder %s68, %s69
    %p78 = scmp.eq.s32.totalorder %s16, 0
    %p79 = por %p77, %p78
    %p80 = scmp.ne.s32.totalorder %s68, %s69
    %p81 = scmp.eq.s32.totalorder %s17, 1
    %p82 = por %p80, %p81
    %p84 = scmp.ne.s32.totalorder %s69, %s83
    %p85 = scmp.eq.s32.totalorder %s17, 0
    %p86 = por %p84, %p85
    %s88 = sadd.s32 %s87, 1
    %p91 = scmp.eq.s32.totalorder %s11, 1
    %p92 = scmp.ne.s32.totalorder %s87, %s89
    %p93 = scmp.eq.s32.totalorder %s11, 0
    %p94 = por %p92, %p93
    %p95 = scmp.ne.s32.totalorder %s87, %s89
    %p96 = scmp.eq.s32.totalorder %s16, 1
    %p97 = por %p95, %p96
    %p98 = scmp.ne.s32.totalorder %s89, %s90
    %p99 = scmp.eq.s32.totalorder %s16, 0
    %p100 = por %p98, %p99
    %p101 = scmp.ne.s32.totalorder %s89, %s90
    %p102 = scmp.eq.s32.totalorder %s17, 1
    %p103 = por %p101, %p102
    %p105 = scmp.ne.s32.totalorder %s90, %s104
    %p106 = scmp.eq.s32.totalorder %s17, 0
    %p107 = por %p105, %p106
    %s109 = sadd.s32 %s108, 1
    %p112 = scmp.eq.s32.totalorder %s11, 1
    %p113 = scmp.ne.s32.totalorder %s108, %s110
    %p114 = scmp.eq.s32.totalorder %s11, 0
    %p115 = por %p113, %p114
    %p116 = scmp.ne.s32.totalorder %s108, %s110
    %p117 = scmp.eq.s32.totalorder %s16, 1
    %p118 = por %p116, %p117
    %p119 = scmp.ne.s32.totalorder %s110, %s111
    %p120 = scmp.eq.s32.totalorder %s16, 0
    %p121 = por %p119, %p120
    %p122 = scmp.ne.s32.totalorder %s110, %s111
    %p123 = scmp.eq.s32.totalorder %s17, 1
    %p124 = por %p122, %p123
    %p126 = scmp.ne.s32.totalorder %s111, %s125
    %p127 = scmp.eq.s32.totalorder %s17, 0
    %p128 = por %p126, %p127
    %s129 = ssub.s32 %s11, %s18
    %p130 = scmp.eq.s32.totalorder %s129, 0
    %s132 = sadd.s32 %s131, 1
    %s133 = scalar_select %p130, %s131, %s132
    %p136 = pneg %p130
    %p137 = scmp.eq.s32.totalorder %s11, 1
    %p138 = por %p136, %p137
    %p139 = scmp.ne.s32.totalorder %s131, %s134
    %p140 = scmp.eq.s32.totalorder %s11, 0
    %p141 = por %p139, %p140
    %p142 = scmp.ne.s32.totalorder %s131, %s134
    %p143 = scmp.eq.s32.totalorder %s16, 1
    %p144 = por %p142, %p143
    %p145 = scmp.ne.s32.totalorder %s134, %s135
    %p146 = scmp.eq.s32.totalorder %s16, 0
    %p147 = por %p145, %p146
    %p148 = scmp.ne.s32.totalorder %s134, %s135
    %p149 = scmp.eq.s32.totalorder %s17, 1
    %p150 = por %p148, %p149
    %p152 = scmp.ne.s32.totalorder %s135, %s151
    %p153 = scmp.eq.s32.totalorder %s17, 0
    %p154 = por %p152, %p153
    %p155 = scmp.le.s32.totalorder 1, %s11
    %p156 = scmp.lt.s32.totalorder %s11, 3
    %p157 = pnand %p155, %p156
    %p158 = pneg %p157
    // Predicated region
    $region9: #{conv_discriminator_forward.3} parent=5 // pred_check
      _
    $region10: #{conv_discriminator_forward.3} parent=5 // pred_check_branch
      %160 = sbr.rel (%p157) target = $region12
    $region11: #{conv_discriminator_forward.3} parent=5 // pred_region
      %s161 = ssub.s32 %s11, 1
      // Predicated region
      $region13: #{conv_discriminator_forward.3} parent=11 // pred_check
        %p162 = pneg %p58
      $region14: #{conv_discriminator_forward.3} parent=11 // pred_check_branch
        %164 = sbr.rel (%p162) target = $region16
      $region15: #{conv_discriminator_forward.3} parent=11 // pred_region
        _
      $region16: #{conv_discriminator_forward.3} parent=11 // pred_fallthru
        _
      // Predicated region
      $region17: #{conv_discriminator_forward.3} parent=11 // pred_check
        %p165 = pneg %p79
      $region18: #{conv_discriminator_forward.3} parent=11 // pred_check_branch
        %167 = sbr.rel (%p165) target = $region20
      $region19: #{conv_discriminator_forward.3} parent=11 // pred_region
        _
      $region20: #{conv_discriminator_forward.3} parent=11 // pred_fallthru
        _
      // Predicated region
      $region21: #{conv_discriminator_forward.3} parent=11 // pred_check
        %p168 = pneg %p100
      $region22: #{conv_discriminator_forward.3} parent=11 // pred_check_branch
        %170 = sbr.rel (%p168) target = $region24
      $region23: #{conv_discriminator_forward.3} parent=11 // pred_region
        _
      $region24: #{conv_discriminator_forward.3} parent=11 // pred_fallthru
        _
      // Predicated region
      $region25: #{conv_discriminator_forward.3} parent=11 // pred_check
        %p171 = pneg %p121
      $region26: #{conv_discriminator_forward.3} parent=11 // pred_check_branch
        %173 = sbr.rel (%p171) target = $region28
      $region27: #{conv_discriminator_forward.3} parent=11 // pred_region
        _
      $region28: #{conv_discriminator_forward.3} parent=11 // pred_fallthru
        _
    $region12: #{conv_discriminator_forward.3} parent=5 // pred_fallthru
      _
    %p174 = scmp.lt.s32.totalorder %s11, 2
    // Predicated region
    $region29: #{conv_discriminator_forward.3} parent=5 // pred_check
      %p175 = pneg %p174
    $region30: #{conv_discriminator_forward.3} parent=5 // pred_check_branch
      %177 = sbr.rel (%p175) target = $region32
    $region31: #{conv_discriminator_forward.3} parent=5 // pred_region
      // Predicated region
      $region33: #{conv_discriminator_forward.3} parent=31 // pred_check
        %p178 = pneg %p31
      $region34: #{conv_discriminator_forward.3} parent=31 // pred_check_branch
        %180 = sbr.rel (%p178) target = $region36
      $region35: #{conv_discriminator_forward.3} parent=31 // pred_region
        %p181 = scmp.lt.s32.totalorder %s11, 1
        %s182 = scalar_select %p181, %s11, 1
        %s183 = smul.addr %s182, 128
        %s184 = smul.addr %s183, 4
        %s185 = scalar_lea.vmem %s0, %s184
      $region36: #{conv_discriminator_forward.3} parent=31 // pred_fallthru
        _
    $region32: #{conv_discriminator_forward.3} parent=5 // pred_fallthru
      _
    %p186 = scmp.le.s32.totalorder 1, %s11
    %p187 = scmp.lt.s32.totalorder %s11, 3
    %p188 = pnand %p186, %p187
    %p189 = pneg %p188
    // Predicated region
    $region37: #{conv_discriminator_forward.3} parent=5 // pred_check
      _
    $region38: #{conv_discriminator_forward.3} parent=5 // pred_check_branch
      %191 = sbr.rel (%p188) target = $region40
    $region39: #{conv_discriminator_forward.3} parent=5 // pred_region
      %s192 = ssub.s32 %s11, 1
      %p193 = scmp.lt.s32.totalorder %s16, 1
      %s194 = scalar_select %p193, %s16, 1
      %s195 = smul.addr %s194, 128
      %s196 = smul.addr %s195, 4
      %s197 = scalar_lea.vmem %s0, %s196
      %p198 = pneg %p37
      %p199 = pneg %p34
      %p200 = pneg %p58
      %p201 = pneg %p55
      %p202 = pneg %p79
      %p203 = pneg %p76
      %p204 = pneg %p100
      %p205 = pneg %p97
      %p206 = pneg %p121
      %p207 = pneg %p118
      %p208 = pneg %p147
      %p209 = pneg %p144
      %p210 = scmp.lt.s32.totalorder %s16, 1
      %s211 = scalar_select %p210, %s16, 1
      %s212 = smul.addr %s211, 32
      %s213 = smul.addr %s212, 8
      %s214 = scalar_lea.vmem %s5, %s213
      %p215 = scmp.lt.s32.totalorder %s16, 1
      %s216 = scalar_select %p215, %s16, 1
      %s217 = smul.addr %s216, 128
      %s218 = smul.addr %s217, 4
      %s219 = scalar_lea.vmem %s0, %s218
      %p220 = scmp.lt.s32.totalorder %s16, 1
      %s221 = scalar_select %p220, %s16, 1
      %s222 = smul.addr %s221, 32
      %s223 = smul.addr %s222, 8
      %s224 = scalar_lea.vmem %s5, %s223
      %v226 = vld [vmem:[%s219] sm:$0xf]
      %v227 = vld [vmem:[%s219 + $0x4] sm:$0xf]
      %v228 = vld [vmem:[%s219 + $0x8] sm:$0xf]
      %v229 = vld [vmem:[%s219 + $0xc] sm:$0xf]
      %v230 = vld [vmem:[%s219 + $0x10] sm:$0xf]
      %v231 = vld [vmem:[%s219 + $0x14] sm:$0xf]
      %v232 = vld [vmem:[%s219 + $0x18] sm:$0xf]
      %v233 = vld [vmem:[%s219 + $0x1c] sm:$0xf]
      %v234 = vld [vmem:[%s219 + $0x20] sm:$0xf]
      %v235 = vld [vmem:[%s219 + $0x24] sm:$0xf]
      %v236 = vld [vmem:[%s219 + $0x28] sm:$0xf]
      %v237 = vld [vmem:[%s219 + $0x2c] sm:$0xf]
      %v238 = vld [vmem:[%s219 + $0x30] sm:$0xf]
      %v239 = vld [vmem:[%s219 + $0x34] sm:$0xf]
      %v240 = vld [vmem:[%s219 + $0x38] sm:$0xf]
      %v241 = vld [vmem:[%s219 + $0x3c] sm:$0xf]
      %v242 = vld [vmem:[%s219 + $0x40] sm:$0xf]
      %v243 = vld [vmem:[%s219 + $0x44] sm:$0xf]
      %v244 = vld [vmem:[%s219 + $0x48] sm:$0xf]
      %v245 = vld [vmem:[%s219 + $0x4c] sm:$0xf]
      %v246 = vld [vmem:[%s219 + $0x50] sm:$0xf]
      %v247 = vld [vmem:[%s219 + $0x54] sm:$0xf]
      %v248 = vld [vmem:[%s219 + $0x58] sm:$0xf]
      %v249 = vld [vmem:[%s219 + $0x5c] sm:$0xf]
      %v250 = vld [vmem:[%s219 + $0x60] sm:$0xf]
      %v251 = vld [vmem:[%s219 + $0x64] sm:$0xf]
      %v252 = vld [vmem:[%s219 + $0x68] sm:$0xf]
      %v253 = vld [vmem:[%s219 + $0x6c] sm:$0xf]
      %v254 = vld [vmem:[%s219 + $0x70] sm:$0xf]
      %v255 = vld [vmem:[%s219 + $0x74] sm:$0xf]
      %v256 = vld [vmem:[%s219 + $0x78] sm:$0xf]
      %v257 = vld [vmem:[%s219 + $0x7c] sm:$0xf]
      %v258 = vld [vmem:[%s219 + $0x80] sm:$0xf]
      %v259 = vld [vmem:[%s219 + $0x84] sm:$0xf]
      %v260 = vld [vmem:[%s219 + $0x88] sm:$0xf]
      %v261 = vld [vmem:[%s219 + $0x8c] sm:$0xf]
      %v262 = vld [vmem:[%s219 + $0x90] sm:$0xf]
      %v263 = vld [vmem:[%s219 + $0x94] sm:$0xf]
      %v264 = vld [vmem:[%s219 + $0x98] sm:$0xf]
      %v265 = vld [vmem:[%s219 + $0x9c] sm:$0xf]
      %v266 = vld [vmem:[%s219 + $0xa0] sm:$0xf]
      %v267 = vld [vmem:[%s219 + $0xa4] sm:$0xf]
      %v268 = vld [vmem:[%s219 + $0xa8] sm:$0xf]
      %v269 = vld [vmem:[%s219 + $0xac] sm:$0xf]
      %v270 = vld [vmem:[%s219 + $0xb0] sm:$0xf]
      %v271 = vld [vmem:[%s219 + $0xb4] sm:$0xf]
      %v272 = vld [vmem:[%s219 + $0xb8] sm:$0xf]
      %v273 = vld [vmem:[%s219 + $0xbc] sm:$0xf]
      %v274 = vld [vmem:[%s219 + $0xc0] sm:$0xf]
      %v275 = vld [vmem:[%s219 + $0xc4] sm:$0xf]
      %v276 = vld [vmem:[%s219 + $0xc8] sm:$0xf]
      %v277 = vld [vmem:[%s219 + $0xcc] sm:$0xf]
      %v278 = vld [vmem:[%s219 + $0xd0] sm:$0xf]
      %v279 = vld [vmem:[%s219 + $0xd4] sm:$0xf]
      %v280 = vld [vmem:[%s219 + $0xd8] sm:$0xf]
      %v281 = vld [vmem:[%s219 + $0xdc] sm:$0xf]
      %v282 = vld [vmem:[%s219 + $0xe0] sm:$0xf]
      %v283 = vld [vmem:[%s219 + $0xe4] sm:$0xf]
      %v284 = vld [vmem:[%s219 + $0xe8] sm:$0xf]
      %v285 = vld [vmem:[%s219 + $0xec] sm:$0xf]
      %v286 = vld [vmem:[%s219 + $0xf0] sm:$0xf]
      %v287 = vld [vmem:[%s219 + $0xf4] sm:$0xf]
      %v288 = vld [vmem:[%s219 + $0xf8] sm:$0xf]
      %v289 = vld [vmem:[%s219 + $0xfc] sm:$0xf]
      %v290 = vld [vmem:[%s219 + $0x100] sm:$0xf]
      %v291 = vld [vmem:[%s219 + $0x104] sm:$0xf]
      %v292 = vld [vmem:[%s219 + $0x108] sm:$0xf]
      %v293 = vld [vmem:[%s219 + $0x10c] sm:$0xf]
      %v294 = vld [vmem:[%s219 + $0x110] sm:$0xf]
      %v295 = vld [vmem:[%s219 + $0x114] sm:$0xf]
      %v296 = vld [vmem:[%s219 + $0x118] sm:$0xf]
      %v297 = vld [vmem:[%s219 + $0x11c] sm:$0xf]
      %v298 = vld [vmem:[%s219 + $0x120] sm:$0xf]
      %v299 = vld [vmem:[%s219 + $0x124] sm:$0xf]
      %v300 = vld [vmem:[%s219 + $0x128] sm:$0xf]
      %v301 = vld [vmem:[%s219 + $0x12c] sm:$0xf]
      %v302 = vld [vmem:[%s219 + $0x130] sm:$0xf]
      %v303 = vld [vmem:[%s219 + $0x134] sm:$0xf]
      %v304 = vld [vmem:[%s219 + $0x138] sm:$0xf]
      %v305 = vld [vmem:[%s219 + $0x13c] sm:$0xf]
      %v306 = vld [vmem:[%s219 + $0x140] sm:$0xf]
      %v307 = vld [vmem:[%s219 + $0x144] sm:$0xf]
      %v308 = vld [vmem:[%s219 + $0x148] sm:$0xf]
      %v309 = vld [vmem:[%s219 + $0x14c] sm:$0xf]
      %v310 = vld [vmem:[%s219 + $0x150] sm:$0xf]
      %v311 = vld [vmem:[%s219 + $0x154] sm:$0xf]
      %v312 = vld [vmem:[%s219 + $0x158] sm:$0xf]
      %v313 = vld [vmem:[%s219 + $0x15c] sm:$0xf]
      %v314 = vld [vmem:[%s219 + $0x160] sm:$0xf]
      %v315 = vld [vmem:[%s219 + $0x164] sm:$0xf]
      %v316 = vld [vmem:[%s219 + $0x168] sm:$0xf]
      %v317 = vld [vmem:[%s219 + $0x16c] sm:$0xf]
      %v318 = vld [vmem:[%s219 + $0x170] sm:$0xf]
      %v319 = vld [vmem:[%s219 + $0x174] sm:$0xf]
      %v320 = vld [vmem:[%s219 + $0x178] sm:$0xf]
      %v321 = vld [vmem:[%s219 + $0x17c] sm:$0xf]
      %v322 = vld [vmem:[%s219 + $0x180] sm:$0xf]
      %v323 = vld [vmem:[%s219 + $0x184] sm:$0xf]
      %v324 = vld [vmem:[%s219 + $0x188] sm:$0xf]
      %v325 = vld [vmem:[%s219 + $0x18c] sm:$0xf]
      %v326 = vld [vmem:[%s219 + $0x190] sm:$0xf]
      %v327 = vld [vmem:[%s219 + $0x194] sm:$0xf]
      %v328 = vld [vmem:[%s219 + $0x198] sm:$0xf]
      %v329 = vld [vmem:[%s219 + $0x19c] sm:$0xf]
      %v330 = vld [vmem:[%s219 + $0x1a0] sm:$0xf]
      %v331 = vld [vmem:[%s219 + $0x1a4] sm:$0xf]
      %v332 = vld [vmem:[%s219 + $0x1a8] sm:$0xf]
      %v333 = vld [vmem:[%s219 + $0x1ac] sm:$0xf]
      %v334 = vld [vmem:[%s219 + $0x1b0] sm:$0xf]
      %v335 = vld [vmem:[%s219 + $0x1b4] sm:$0xf]
      %v336 = vld [vmem:[%s219 + $0x1b8] sm:$0xf]
      %v337 = vld [vmem:[%s219 + $0x1bc] sm:$0xf]
      %v338 = vld [vmem:[%s219 + $0x1c0] sm:$0xf]
      %v339 = vld [vmem:[%s219 + $0x1c4] sm:$0xf]
      %v340 = vld [vmem:[%s219 + $0x1c8] sm:$0xf]
      %v341 = vld [vmem:[%s219 + $0x1cc] sm:$0xf]
      %v342 = vld [vmem:[%s219 + $0x1d0] sm:$0xf]
      %v343 = vld [vmem:[%s219 + $0x1d4] sm:$0xf]
      %v344 = vld [vmem:[%s219 + $0x1d8] sm:$0xf]
      %v345 = vld [vmem:[%s219 + $0x1dc] sm:$0xf]
      %v346 = vld [vmem:[%s219 + $0x1e0] sm:$0xf]
      %v347 = vld [vmem:[%s219 + $0x1e4] sm:$0xf]
      %v348 = vld [vmem:[%s219 + $0x1e8] sm:$0xf]
      %v349 = vld [vmem:[%s219 + $0x1ec] sm:$0xf]
      %v350 = vld [vmem:[%s219 + $0x1f0] sm:$0xf]
      %v351 = vld [vmem:[%s219 + $0x1f4] sm:$0xf]
      %v352 = vld [vmem:[%s219 + $0x1f8] sm:$0xf]
      %v353 = vld [vmem:[%s219 + $0x1fc] sm:$0xf]
      %v354 = vld [vmem:[%s1] sm:$0xf]
      %v355 = vld [vmem:[%s1 + $0x4] sm:$0xf]
      %v356 = vld [vmem:[%s1 + $0x8] sm:$0xf]
      %v357 = vld [vmem:[%s1 + $0xc] sm:$0xf]
      %v358 = vld [vmem:[%s1 + $0x10] sm:$0x3]
      %v487 = vunpack.c.l.b16 %v226
      %v488 = vunpack.c.l.b16 %v227
      %v489 = vunpack.c.l.b16 %v228
      %v490 = vunpack.c.l.b16 %v229
      %v491 = vunpack.c.l.b16 %v230
      %v492 = vunpack.c.l.b16 %v231
      %v493 = vunpack.c.l.b16 %v232
      %v494 = vunpack.c.l.b16 %v233
      %v495 = vunpack.c.l.b16 %v234
      %v496 = vunpack.c.l.b16 %v235
      %v497 = vunpack.c.l.b16 %v236
      %v498 = vunpack.c.l.b16 %v237
      %v499 = vunpack.c.l.b16 %v238
      %v500 = vunpack.c.l.b16 %v239
      %v501 = vunpack.c.l.b16 %v240
      %v502 = vunpack.c.l.b16 %v241
      %v503 = vunpack.c.l.b16 %v242
      %v504 = vunpack.c.l.b16 %v243
      %v505 = vunpack.c.l.b16 %v244
      %v506 = vunpack.c.l.b16 %v245
      %v507 = vunpack.c.l.b16 %v246
      %v508 = vunpack.c.l.b16 %v247
      %v509 = vunpack.c.l.b16 %v248
      %v510 = vunpack.c.l.b16 %v249
      %v511 = vunpack.c.l.b16 %v250
      %v512 = vunpack.c.l.b16 %v251
      %v513 = vunpack.c.l.b16 %v252
      %v514 = vunpack.c.l.b16 %v253
      %v515 = vunpack.c.l.b16 %v254
      %v516 = vunpack.c.l.b16 %v255
      %v517 = vunpack.c.l.b16 %v256
      %v518 = vunpack.c.l.b16 %v257
      %v519 = vunpack.c.l.b16 %v258
      %v520 = vunpack.c.l.b16 %v259
      %v521 = vunpack.c.l.b16 %v260
      %v522 = vunpack.c.l.b16 %v261
      %v523 = vunpack.c.l.b16 %v262
      %v524 = vunpack.c.l.b16 %v263
      %v525 = vunpack.c.l.b16 %v264
      %v526 = vunpack.c.l.b16 %v265
      %v527 = vunpack.c.l.b16 %v266
      %v528 = vunpack.c.l.b16 %v267
      %v529 = vunpack.c.l.b16 %v268
      %v530 = vunpack.c.l.b16 %v269
      %v531 = vunpack.c.l.b16 %v270
      %v532 = vunpack.c.l.b16 %v271
      %v533 = vunpack.c.l.b16 %v272
      %v534 = vunpack.c.l.b16 %v273
      %v535 = vunpack.c.l.b16 %v274
      %v536 = vunpack.c.l.b16 %v275
      %v537 = vunpack.c.l.b16 %v276
      %v538 = vunpack.c.l.b16 %v277
      %v539 = vunpack.c.l.b16 %v278
      %v540 = vunpack.c.l.b16 %v279
      %v541 = vunpack.c.l.b16 %v280
      %v542 = vunpack.c.l.b16 %v281
      %v543 = vunpack.c.l.b16 %v282
      %v544 = vunpack.c.l.b16 %v283
      %v545 = vunpack.c.l.b16 %v284
      %v546 = vunpack.c.l.b16 %v285
      %v547 = vunpack.c.l.b16 %v286
      %v548 = vunpack.c.l.b16 %v287
      %v549 = vunpack.c.l.b16 %v288
      %v550 = vunpack.c.l.b16 %v289
      %v551 = vunpack.c.l.b16 %v290
      %v552 = vunpack.c.l.b16 %v291
      %v553 = vunpack.c.l.b16 %v292
      %v554 = vunpack.c.l.b16 %v293
      %v555 = vunpack.c.l.b16 %v294
      %v556 = vunpack.c.l.b16 %v295
      %v557 = vunpack.c.l.b16 %v296
      %v558 = vunpack.c.l.b16 %v297
      %v559 = vunpack.c.l.b16 %v298
      %v560 = vunpack.c.l.b16 %v299
      %v561 = vunpack.c.l.b16 %v300
      %v562 = vunpack.c.l.b16 %v301
      %v563 = vunpack.c.l.b16 %v302
      %v564 = vunpack.c.l.b16 %v303
      %v565 = vunpack.c.l.b16 %v304
      %v566 = vunpack.c.l.b16 %v305
      %v567 = vunpack.c.l.b16 %v306
      %v568 = vunpack.c.l.b16 %v307
      %v569 = vunpack.c.l.b16 %v308
      %v570 = vunpack.c.l.b16 %v309
      %v571 = vunpack.c.l.b16 %v310
      %v572 = vunpack.c.l.b16 %v311
      %v573 = vunpack.c.l.b16 %v312
      %v574 = vunpack.c.l.b16 %v313
      %v575 = vunpack.c.l.b16 %v314
      %v576 = vunpack.c.l.b16 %v315
      %v577 = vunpack.c.l.b16 %v316
      %v578 = vunpack.c.l.b16 %v317
      %v579 = vunpack.c.l.b16 %v318
      %v580 = vunpack.c.l.b16 %v319
      %v581 = vunpack.c.l.b16 %v320
      %v582 = vunpack.c.l.b16 %v321
      %v583 = vunpack.c.l.b16 %v322
      %v584 = vunpack.c.l.b16 %v323
      %v585 = vunpack.c.l.b16 %v324
      %v586 = vunpack.c.l.b16 %v325
      %v587 = vunpack.c.l.b16 %v326
      %v588 = vunpack.c.l.b16 %v327
      %v589 = vunpack.c.l.b16 %v328
      %v590 = vunpack.c.l.b16 %v329
      %v591 = vunpack.c.l.b16 %v330
      %v592 = vunpack.c.l.b16 %v331
      %v593 = vunpack.c.l.b16 %v332
      %v594 = vunpack.c.l.b16 %v333
      %v595 = vunpack.c.l.b16 %v334
      %v596 = vunpack.c.l.b16 %v335
      %v597 = vunpack.c.l.b16 %v336
      %v598 = vunpack.c.l.b16 %v337
      %v599 = vunpack.c.l.b16 %v338
      %v600 = vunpack.c.l.b16 %v339
      %v601 = vunpack.c.l.b16 %v340
      %v602 = vunpack.c.l.b16 %v341
      %v603 = vunpack.c.l.b16 %v342
      %v604 = vunpack.c.l.b16 %v343
      %v605 = vunpack.c.l.b16 %v344
      %v606 = vunpack.c.l.b16 %v345
      %v607 = vunpack.c.l.b16 %v346
      %v608 = vunpack.c.l.b16 %v347
      %v609 = vunpack.c.l.b16 %v348
      %v610 = vunpack.c.l.b16 %v349
      %v611 = vunpack.c.l.b16 %v350
      %v612 = vunpack.c.l.b16 %v351
      %v613 = vunpack.c.l.b16 %v352
      %v614 = vunpack.c.l.b16 %v353
      %v615 = vpack.c.b16 %v488, %v487
      %v616 = vpack.c.b16 %v490, %v489
      %v617 = vpack.c.b16 %v492, %v491
      %v618 = vpack.c.b16 %v494, %v493
      %v619 = vpack.c.b16 %v496, %v495
      %v620 = vpack.c.b16 %v498, %v497
      %v621 = vpack.c.b16 %v500, %v499
      %v622 = vpack.c.b16 %v502, %v501
      %v623 = vpack.c.b16 %v504, %v503
      %v624 = vpack.c.b16 %v506, %v505
      %v625 = vpack.c.b16 %v508, %v507
      %v626 = vpack.c.b16 %v510, %v509
      %v627 = vpack.c.b16 %v512, %v511
      %v628 = vpack.c.b16 %v514, %v513
      %v629 = vpack.c.b16 %v516, %v515
      %v630 = vpack.c.b16 %v518, %v517
      %v631 = vpack.c.b16 %v520, %v519
      %v632 = vpack.c.b16 %v522, %v521
      %v633 = vpack.c.b16 %v524, %v523
      %v634 = vpack.c.b16 %v526, %v525
      %v635 = vpack.c.b16 %v528, %v527
      %v636 = vpack.c.b16 %v530, %v529
      %v637 = vpack.c.b16 %v532, %v531
      %v638 = vpack.c.b16 %v534, %v533
      %v639 = vpack.c.b16 %v536, %v535
      %v640 = vpack.c.b16 %v538, %v537
      %v641 = vpack.c.b16 %v540, %v539
      %v642 = vpack.c.b16 %v542, %v541
      %v643 = vpack.c.b16 %v544, %v543
      %v644 = vpack.c.b16 %v546, %v545
      %v645 = vpack.c.b16 %v548, %v547
      %v646 = vpack.c.b16 %v550, %v549
      %v647 = vpack.c.b16 %v552, %v551
      %v648 = vpack.c.b16 %v554, %v553
      %v649 = vpack.c.b16 %v556, %v555
      %v650 = vpack.c.b16 %v558, %v557
      %v651 = vpack.c.b16 %v560, %v559
      %v652 = vpack.c.b16 %v562, %v561
      %v653 = vpack.c.b16 %v564, %v563
      %v654 = vpack.c.b16 %v566, %v565
      %v655 = vpack.c.b16 %v568, %v567
      %v656 = vpack.c.b16 %v570, %v569
      %v657 = vpack.c.b16 %v572, %v571
      %v658 = vpack.c.b16 %v574, %v573
      %v659 = vpack.c.b16 %v576, %v575
      %v660 = vpack.c.b16 %v578, %v577
      %v661 = vpack.c.b16 %v580, %v579
      %v662 = vpack.c.b16 %v582, %v581
      %v663 = vpack.c.b16 %v584, %v583
      %v664 = vpack.c.b16 %v586, %v585
      %v665 = vpack.c.b16 %v588, %v587
      %v666 = vpack.c.b16 %v590, %v589
      %v667 = vpack.c.b16 %v592, %v591
      %v668 = vpack.c.b16 %v594, %v593
      %v669 = vpack.c.b16 %v596, %v595
      %v670 = vpack.c.b16 %v598, %v597
      %v671 = vpack.c.b16 %v600, %v599
      %v672 = vpack.c.b16 %v602, %v601
      %v673 = vpack.c.b16 %v604, %v603
      %v674 = vpack.c.b16 %v606, %v605
      %v675 = vpack.c.b16 %v608, %v607
      %v676 = vpack.c.b16 %v610, %v609
      %v677 = vpack.c.b16 %v612, %v611
      %v678 = vpack.c.b16 %v614, %v613
      %v684 = vunpack.c.l.b16 %v354
      %v685 = vunpack.c.l.b16 %v355
      %v686 = vunpack.c.l.b16 %v356
      %v687 = vunpack.c.l.b16 %v357
      %v688 = vunpack.c.l.b16 %v358
      %v689 = vpack.c.b16 %v685, %v684
      %v690 = vpack.c.b16 %v687, %v686
      %v691 = vpack.c.b16 %v688, %v688
      %vm694 = vcmask 293888
      %v696 = vsel %vm694, %v615, 0
      %v699 = vsel %vm694, %v616, 0
      %v702 = vsel %vm694, %v617, 0
      %v705 = vsel %vm694, %v618, 0
      %v708 = vsel %vm694, %v619, 0
      %v711 = vsel %vm694, %v620, 0
      %v714 = vsel %vm694, %v621, 0
      %v717 = vsel %vm694, %v622, 0
      %v720 = vsel %vm694, %v623, 0
      %v723 = vsel %vm694, %v624, 0
      %v726 = vsel %vm694, %v625, 0
      %v729 = vsel %vm694, %v626, 0
      %v732 = vsel %vm694, %v627, 0
      %v735 = vsel %vm694, %v628, 0
      %v738 = vsel %vm694, %v629, 0
      %v741 = vsel %vm694, %v630, 0
      %v744 = vsel %vm694, %v631, 0
      %v747 = vsel %vm694, %v632, 0
      %v750 = vsel %vm694, %v633, 0
      %v753 = vsel %vm694, %v634, 0
      %v756 = vsel %vm694, %v635, 0
      %v759 = vsel %vm694, %v636, 0
      %v762 = vsel %vm694, %v637, 0
      %v765 = vsel %vm694, %v638, 0
      %v768 = vsel %vm694, %v639, 0
      %v771 = vsel %vm694, %v640, 0
      %v774 = vsel %vm694, %v641, 0
      %v777 = vsel %vm694, %v642, 0
      %v780 = vsel %vm694, %v643, 0
      %v783 = vsel %vm694, %v644, 0
      %v786 = vsel %vm694, %v645, 0
      %v789 = vsel %vm694, %v646, 0
      %v792 = vsel %vm694, %v647, 0
      %v795 = vsel %vm694, %v648, 0
      %v798 = vsel %vm694, %v649, 0
      %v801 = vsel %vm694, %v650, 0
      %v804 = vsel %vm694, %v651, 0
      %v807 = vsel %vm694, %v652, 0
      %v810 = vsel %vm694, %v653, 0
      %v813 = vsel %vm694, %v654, 0
      %v816 = vsel %vm694, %v655, 0
      %v819 = vsel %vm694, %v656, 0
      %v822 = vsel %vm694, %v657, 0
      %v825 = vsel %vm694, %v658, 0
      %v828 = vsel %vm694, %v659, 0
      %v831 = vsel %vm694, %v660, 0
      %v834 = vsel %vm694, %v661, 0
      %v837 = vsel %vm694, %v662, 0
      %v840 = vsel %vm694, %v663, 0
      %v843 = vsel %vm694, %v664, 0
      %v846 = vsel %vm694, %v665, 0
      %v849 = vsel %vm694, %v666, 0
      %v852 = vsel %vm694, %v667, 0
      %v855 = vsel %vm694, %v668, 0
      %v858 = vsel %vm694, %v669, 0
      %v861 = vsel %vm694, %v670, 0
      %v864 = vsel %vm694, %v671, 0
      %v867 = vsel %vm694, %v672, 0
      %v870 = vsel %vm694, %v673, 0
      %v873 = vsel %vm694, %v674, 0
      %v876 = vsel %vm694, %v675, 0
      %v879 = vsel %vm694, %v676, 0
      %v882 = vsel %vm694, %v677, 0
      %v885 = vsel %vm694, %v678, 0
      %vm887 = vcmask 1041408
      %v889 = vsel %vm887, %v691, 0
      %891 = vmatprep.subr.bf16.mxu0 0
      %892 = vmatpush1.bf16.msra.mxu0 0
      %893 = vmatprep.subr.bf16.mxu0 0
      %894 = vmatpush1.bf16.msra.mxu0 0
      %895 = vmatprep.subr.bf16.mxu0 0
      %896 = vmatpush1.bf16.msra.mxu0 0
      %897 = vmatprep.subr.bf16.mxu0 0
      %898 = vmatpush1.bf16.msra.mxu0 0
      %899 = vmatprep.subr.bf16.mxu0 0
      %900 = vmatpush1.bf16.msra.mxu0 0
      %901 = vmatprep.subr.bf16.mxu0 0
      %902 = vmatpush1.bf16.msra.mxu0 %v889
      %903 = vmatprep.subr.bf16.mxu0 0
      %904 = vmatpush1.bf16.msra.mxu0 %v690
      %905 = vmatprep.subr.bf16.mxu0 0
      %906 = vmatpush1.bf16.msra.mxu0 %v689
      %907 = vmatprep.subr.bf16.mxu0 0
      %908 = vmatpush2.bf16.msra.mxu0 0
      %909 = vmatprep.subr.bf16.mxu0 0
      %910 = vmatpush2.bf16.msra.mxu0 0
      %911 = vmatprep.subr.bf16.mxu0 0
      %912 = vmatpush2.bf16.msra.mxu0 0
      %913 = vmatprep.subr.bf16.mxu0 0
      %914 = vmatpush2.bf16.msra.mxu0 0
      %915 = vmatprep.subr.bf16.mxu0 0
      %916 = vmatpush2.bf16.msra.mxu0 0
      %917 = vmatprep.subr.bf16.mxu0 0
      %918 = vmatpush2.bf16.msra.mxu0 0
      %919 = vmatprep.subr.bf16.mxu0 0
      %920 = vmatpush2.bf16.msra.mxu0 0
      %921 = vmatprep.subr.bf16.mxu0 0
      %922 = vmatpush2.bf16.msra.mxu0 0
      %923 = vmatprep.mubr.bf16.mxu0 0
      %924 = vmatmul.mubr.bf16.gmra.mxu0 %v696
      %v925 = vpop.f32.mrf.mxu0
      %v926 = vadd.f32 0.0, %v925
      %v927 = vpop.f32.mrf.mxu0
      %v928 = vpop.f32.mrf.mxu0
      %v929 = vadd.f32 0.0, %v928
      %v930 = vpop.f32.mrf.mxu0
      %931 = vmatprep.mubr.bf16.mxu0 0
      %932 = vmatmul.mubr.bf16.gmra.mxu0 %v699
      %v933 = vpop.f32.mrf.mxu0
      %v934 = vadd.f32 0.0, %v933
      %v935 = vpop.f32.mrf.mxu0
      %v936 = vpop.f32.mrf.mxu0
      %v937 = vadd.f32 0.0, %v936
      %v938 = vpop.f32.mrf.mxu0
      %939 = vmatprep.mubr.bf16.mxu0 0
      %940 = vmatmul.mubr.bf16.gmra.mxu0 %v702
      %v941 = vpop.f32.mrf.mxu0
      %v942 = vadd.f32 0.0, %v941
      %v943 = vpop.f32.mrf.mxu0
      %v944 = vpop.f32.mrf.mxu0
      %v945 = vadd.f32 0.0, %v944
      %v946 = vpop.f32.mrf.mxu0
      %947 = vmatprep.mubr.bf16.mxu0 0
      %948 = vmatmul.mubr.bf16.gmra.mxu0 %v705
      %v949 = vpop.f32.mrf.mxu0
      %v950 = vadd.f32 0.0, %v949
      %v951 = vpop.f32.mrf.mxu0
      %v952 = vpop.f32.mrf.mxu0
      %v953 = vadd.f32 0.0, %v952
      %v954 = vpop.f32.mrf.mxu0
      %955 = vmatprep.mubr.bf16.mxu0 0
      %956 = vmatmul.mubr.bf16.gmra.mxu0 %v708
      %v957 = vpop.f32.mrf.mxu0
      %v958 = vadd.f32 0.0, %v957
      %v959 = vpop.f32.mrf.mxu0
      %v960 = vpop.f32.mrf.mxu0
      %v961 = vadd.f32 0.0, %v960
      %v962 = vpop.f32.mrf.mxu0
      %963 = vmatprep.mubr.bf16.mxu0 0
      %964 = vmatmul.mubr.bf16.gmra.mxu0 %v711
      %v965 = vpop.f32.mrf.mxu0
      %v966 = vadd.f32 0.0, %v965
      %v967 = vpop.f32.mrf.mxu0
      %v968 = vpop.f32.mrf.mxu0
      %v969 = vadd.f32 0.0, %v968
      %v970 = vpop.f32.mrf.mxu0
      %971 = vmatprep.mubr.bf16.mxu0 0
      %972 = vmatmul.mubr.bf16.gmra.mxu0 %v714
      %v973 = vpop.f32.mrf.mxu0
      %v974 = vadd.f32 0.0, %v973
      %v975 = vpop.f32.mrf.mxu0
      %v976 = vpop.f32.mrf.mxu0
      %v977 = vadd.f32 0.0, %v976
      %v978 = vpop.f32.mrf.mxu0
      %979 = vmatprep.mubr.bf16.mxu0 0
      %980 = vmatmul.mubr.bf16.gmra.mxu0 %v717
      %v981 = vpop.f32.mrf.mxu0
      %v982 = vadd.f32 0.0, %v981
      %v983 = vpop.f32.mrf.mxu0
      %v984 = vpop.f32.mrf.mxu0
      %v985 = vadd.f32 0.0, %v984
      %v986 = vpop.f32.mrf.mxu0
      %987 = vmatprep.mubr.bf16.mxu0 0
      %988 = vmatmul.mubr.bf16.gmra.mxu0 %v720
      %v989 = vpop.f32.mrf.mxu0
      %v990 = vadd.f32 0.0, %v989
      %v991 = vpop.f32.mrf.mxu0
      %v992 = vpop.f32.mrf.mxu0
      %v993 = vadd.f32 0.0, %v992
      %v994 = vpop.f32.mrf.mxu0
      %995 = vmatprep.mubr.bf16.mxu0 0
      %996 = vmatmul.mubr.bf16.gmra.mxu0 %v723
      %v997 = vpop.f32.mrf.mxu0
      %v998 = vadd.f32 0.0, %v997
      %v999 = vpop.f32.mrf.mxu0
      %v1000 = vpop.f32.mrf.mxu0
      %v1001 = vadd.f32 0.0, %v1000
      %v1002 = vpop.f32.mrf.mxu0
      %1003 = vmatprep.mubr.bf16.mxu0 0
      %1004 = vmatmul.mubr.bf16.gmra.mxu0 %v726
      %v1005 = vpop.f32.mrf.mxu0
      %v1006 = vadd.f32 0.0, %v1005
      %v1007 = vpop.f32.mrf.mxu0
      %v1008 = vpop.f32.mrf.mxu0
      %v1009 = vadd.f32 0.0, %v1008
      %v1010 = vpop.f32.mrf.mxu0
      %1011 = vmatprep.mubr.bf16.mxu0 0
      %1012 = vmatmul.mubr.bf16.gmra.mxu0 %v729
      %v1013 = vpop.f32.mrf.mxu0
      %v1014 = vadd.f32 0.0, %v1013
      %v1015 = vpop.f32.mrf.mxu0
      %v1016 = vpop.f32.mrf.mxu0
      %v1017 = vadd.f32 0.0, %v1016
      %v1018 = vpop.f32.mrf.mxu0
      %1019 = vmatprep.mubr.bf16.mxu0 0
      %1020 = vmatmul.mubr.bf16.gmra.mxu0 %v732
      %v1021 = vpop.f32.mrf.mxu0
      %v1022 = vadd.f32 0.0, %v1021
      %v1023 = vpop.f32.mrf.mxu0
      %v1024 = vpop.f32.mrf.mxu0
      %v1025 = vadd.f32 0.0, %v1024
      %v1026 = vpop.f32.mrf.mxu0
      %1027 = vmatprep.mubr.bf16.mxu0 0
      %1028 = vmatmul.mubr.bf16.gmra.mxu0 %v735
      %v1029 = vpop.f32.mrf.mxu0
      %v1030 = vadd.f32 0.0, %v1029
      %v1031 = vpop.f32.mrf.mxu0
      %v1032 = vpop.f32.mrf.mxu0
      %v1033 = vadd.f32 0.0, %v1032
      %v1034 = vpop.f32.mrf.mxu0
      %1035 = vmatprep.mubr.bf16.mxu0 0
      %1036 = vmatmul.mubr.bf16.gmra.mxu0 %v738
      %v1037 = vpop.f32.mrf.mxu0
      %v1038 = vadd.f32 0.0, %v1037
      %v1039 = vpop.f32.mrf.mxu0
      %v1040 = vpop.f32.mrf.mxu0
      %v1041 = vadd.f32 0.0, %v1040
      %v1042 = vpop.f32.mrf.mxu0
      %1043 = vmatprep.mubr.bf16.mxu0 0
      %1044 = vmatmul.mubr.bf16.gmra.mxu0 %v741
      %v1045 = vpop.f32.mrf.mxu0
      %v1046 = vadd.f32 0.0, %v1045
      %v1047 = vpop.f32.mrf.mxu0
      %v1048 = vpop.f32.mrf.mxu0
      %v1049 = vadd.f32 0.0, %v1048
      %v1050 = vpop.f32.mrf.mxu0
      %1051 = vmatprep.mubr.bf16.mxu0 0
      %1052 = vmatmul.mubr.bf16.gmra.mxu0 %v744
      %v1053 = vpop.f32.mrf.mxu0
      %v1054 = vadd.f32 0.0, %v1053
      %v1055 = vpop.f32.mrf.mxu0
      %v1056 = vpop.f32.mrf.mxu0
      %v1057 = vadd.f32 0.0, %v1056
      %v1058 = vpop.f32.mrf.mxu0
      %1059 = vmatprep.mubr.bf16.mxu0 0
      %1060 = vmatmul.mubr.bf16.gmra.mxu0 %v747
      %v1061 = vpop.f32.mrf.mxu0
      %v1062 = vadd.f32 0.0, %v1061
      %v1063 = vpop.f32.mrf.mxu0
      %v1064 = vpop.f32.mrf.mxu0
      %v1065 = vadd.f32 0.0, %v1064
      %v1066 = vpop.f32.mrf.mxu0
      %1067 = vmatprep.mubr.bf16.mxu0 0
      %1068 = vmatmul.mubr.bf16.gmra.mxu0 %v750
      %v1069 = vpop.f32.mrf.mxu0
      %v1070 = vadd.f32 0.0, %v1069
      %v1071 = vpop.f32.mrf.mxu0
      %v1072 = vpop.f32.mrf.mxu0
      %v1073 = vadd.f32 0.0, %v1072
      %v1074 = vpop.f32.mrf.mxu0
      %1075 = vmatprep.mubr.bf16.mxu0 0
      %1076 = vmatmul.mubr.bf16.gmra.mxu0 %v753
      %v1077 = vpop.f32.mrf.mxu0
      %v1078 = vadd.f32 0.0, %v1077
      %v1079 = vpop.f32.mrf.mxu0
      %v1080 = vpop.f32.mrf.mxu0
      %v1081 = vadd.f32 0.0, %v1080
      %v1082 = vpop.f32.mrf.mxu0
      %1083 = vmatprep.mubr.bf16.mxu0 0
      %1084 = vmatmul.mubr.bf16.gmra.mxu0 %v756
      %v1085 = vpop.f32.mrf.mxu0
      %v1086 = vadd.f32 0.0, %v1085
      %v1087 = vpop.f32.mrf.mxu0
      %v1088 = vpop.f32.mrf.mxu0
      %v1089 = vadd.f32 0.0, %v1088
      %v1090 = vpop.f32.mrf.mxu0
      %1091 = vmatprep.mubr.bf16.mxu0 0
      %1092 = vmatmul.mubr.bf16.gmra.mxu0 %v759
      %v1093 = vpop.f32.mrf.mxu0
      %v1094 = vadd.f32 0.0, %v1093
      %v1095 = vpop.f32.mrf.mxu0
      %v1096 = vpop.f32.mrf.mxu0
      %v1097 = vadd.f32 0.0, %v1096
      %v1098 = vpop.f32.mrf.mxu0
      %1099 = vmatprep.mubr.bf16.mxu0 0
      %1100 = vmatmul.mubr.bf16.gmra.mxu0 %v762
      %v1101 = vpop.f32.mrf.mxu0
      %v1102 = vadd.f32 0.0, %v1101
      %v1103 = vpop.f32.mrf.mxu0
      %v1104 = vpop.f32.mrf.mxu0
      %v1105 = vadd.f32 0.0, %v1104
      %v1106 = vpop.f32.mrf.mxu0
      %1107 = vmatprep.mubr.bf16.mxu0 0
      %1108 = vmatmul.mubr.bf16.gmra.mxu0 %v765
      %v1109 = vpop.f32.mrf.mxu0
      %v1110 = vadd.f32 0.0, %v1109
      %v1111 = vpop.f32.mrf.mxu0
      %v1112 = vpop.f32.mrf.mxu0
      %v1113 = vadd.f32 0.0, %v1112
      %v1114 = vpop.f32.mrf.mxu0
      %1115 = vmatprep.mubr.bf16.mxu0 0
      %1116 = vmatmul.mubr.bf16.gmra.mxu0 %v768
      %v1117 = vpop.f32.mrf.mxu0
      %v1118 = vadd.f32 0.0, %v1117
      %v1119 = vpop.f32.mrf.mxu0
      %v1120 = vpop.f32.mrf.mxu0
      %v1121 = vadd.f32 0.0, %v1120
      %v1122 = vpop.f32.mrf.mxu0
      %1123 = vmatprep.mubr.bf16.mxu0 0
      %1124 = vmatmul.mubr.bf16.gmra.mxu0 %v771
      %v1125 = vpop.f32.mrf.mxu0
      %v1126 = vadd.f32 0.0, %v1125
      %v1127 = vpop.f32.mrf.mxu0
      %v1128 = vpop.f32.mrf.mxu0
      %v1129 = vadd.f32 0.0, %v1128
      %v1130 = vpop.f32.mrf.mxu0
      %1131 = vmatprep.mubr.bf16.mxu0 0
      %1132 = vmatmul.mubr.bf16.gmra.mxu0 %v774
      %v1133 = vpop.f32.mrf.mxu0
      %v1134 = vadd.f32 0.0, %v1133
      %v1135 = vpop.f32.mrf.mxu0
      %v1136 = vpop.f32.mrf.mxu0
      %v1137 = vadd.f32 0.0, %v1136
      %v1138 = vpop.f32.mrf.mxu0
      %1139 = vmatprep.mubr.bf16.mxu0 0
      %1140 = vmatmul.mubr.bf16.gmra.mxu0 %v777
      %v1141 = vpop.f32.mrf.mxu0
      %v1142 = vadd.f32 0.0, %v1141
      %v1143 = vpop.f32.mrf.mxu0
      %v1144 = vpop.f32.mrf.mxu0
      %v1145 = vadd.f32 0.0, %v1144
      %v1146 = vpop.f32.mrf.mxu0
      %1147 = vmatprep.mubr.bf16.mxu0 0
      %1148 = vmatmul.mubr.bf16.gmra.mxu0 %v780
      %v1149 = vpop.f32.mrf.mxu0
      %v1150 = vadd.f32 0.0, %v1149
      %v1151 = vpop.f32.mrf.mxu0
      %v1152 = vpop.f32.mrf.mxu0
      %v1153 = vadd.f32 0.0, %v1152
      %v1154 = vpop.f32.mrf.mxu0
      %1155 = vmatprep.mubr.bf16.mxu0 0
      %1156 = vmatmul.mubr.bf16.gmra.mxu0 %v783
      %v1157 = vpop.f32.mrf.mxu0
      %v1158 = vadd.f32 0.0, %v1157
      %v1159 = vpop.f32.mrf.mxu0
      %v1160 = vpop.f32.mrf.mxu0
      %v1161 = vadd.f32 0.0, %v1160
      %v1162 = vpop.f32.mrf.mxu0
      %1163 = vmatprep.mubr.bf16.mxu0 0
      %1164 = vmatmul.mubr.bf16.gmra.mxu0 %v786
      %v1165 = vpop.f32.mrf.mxu0
      %v1166 = vadd.f32 0.0, %v1165
      %v1167 = vpop.f32.mrf.mxu0
      %v1168 = vpop.f32.mrf.mxu0
      %v1169 = vadd.f32 0.0, %v1168
      %v1170 = vpop.f32.mrf.mxu0
      %1171 = vmatprep.mubr.bf16.mxu0 0
      %1172 = vmatmul.mubr.bf16.gmra.mxu0 %v789
      %v1173 = vpop.f32.mrf.mxu0
      %v1174 = vadd.f32 0.0, %v1173
      %v1175 = vpop.f32.mrf.mxu0
      %v1176 = vpop.f32.mrf.mxu0
      %v1177 = vadd.f32 0.0, %v1176
      %v1178 = vpop.f32.mrf.mxu0
      %1179 = vmatprep.mubr.bf16.mxu0 0
      %1180 = vmatmul.mubr.bf16.gmra.mxu0 %v792
      %v1181 = vpop.f32.mrf.mxu0
      %v1182 = vadd.f32 0.0, %v1181
      %v1183 = vpop.f32.mrf.mxu0
      %v1184 = vpop.f32.mrf.mxu0
      %v1185 = vadd.f32 0.0, %v1184
      %v1186 = vpop.f32.mrf.mxu0
      %1187 = vmatprep.mubr.bf16.mxu0 0
      %1188 = vmatmul.mubr.bf16.gmra.mxu0 %v795
      %v1189 = vpop.f32.mrf.mxu0
      %v1190 = vadd.f32 0.0, %v1189
      %v1191 = vpop.f32.mrf.mxu0
      %v1192 = vpop.f32.mrf.mxu0
      %v1193 = vadd.f32 0.0, %v1192
      %v1194 = vpop.f32.mrf.mxu0
      %1195 = vmatprep.mubr.bf16.mxu0 0
      %1196 = vmatmul.mubr.bf16.gmra.mxu0 %v798
      %v1197 = vpop.f32.mrf.mxu0
      %v1198 = vadd.f32 0.0, %v1197
      %v1199 = vpop.f32.mrf.mxu0
      %v1200 = vpop.f32.mrf.mxu0
      %v1201 = vadd.f32 0.0, %v1200
      %v1202 = vpop.f32.mrf.mxu0
      %1203 = vmatprep.mubr.bf16.mxu0 0
      %1204 = vmatmul.mubr.bf16.gmra.mxu0 %v801
      %v1205 = vpop.f32.mrf.mxu0
      %v1206 = vadd.f32 0.0, %v1205
      %v1207 = vpop.f32.mrf.mxu0
      %v1208 = vpop.f32.mrf.mxu0
      %v1209 = vadd.f32 0.0, %v1208
      %v1210 = vpop.f32.mrf.mxu0
      %1211 = vmatprep.mubr.bf16.mxu0 0
      %1212 = vmatmul.mubr.bf16.gmra.mxu0 %v804
      %v1213 = vpop.f32.mrf.mxu0
      %v1214 = vadd.f32 0.0, %v1213
      %v1215 = vpop.f32.mrf.mxu0
      %v1216 = vpop.f32.mrf.mxu0
      %v1217 = vadd.f32 0.0, %v1216
      %v1218 = vpop.f32.mrf.mxu0
      %1219 = vmatprep.mubr.bf16.mxu0 0
      %1220 = vmatmul.mubr.bf16.gmra.mxu0 %v807
      %v1221 = vpop.f32.mrf.mxu0
      %v1222 = vadd.f32 0.0, %v1221
      %v1223 = vpop.f32.mrf.mxu0
      %v1224 = vpop.f32.mrf.mxu0
      %v1225 = vadd.f32 0.0, %v1224
      %v1226 = vpop.f32.mrf.mxu0
      %1227 = vmatprep.mubr.bf16.mxu0 0
      %1228 = vmatmul.mubr.bf16.gmra.mxu0 %v810
      %v1229 = vpop.f32.mrf.mxu0
      %v1230 = vadd.f32 0.0, %v1229
      %v1231 = vpop.f32.mrf.mxu0
      %v1232 = vpop.f32.mrf.mxu0
      %v1233 = vadd.f32 0.0, %v1232
      %v1234 = vpop.f32.mrf.mxu0
      %1235 = vmatprep.mubr.bf16.mxu0 0
      %1236 = vmatmul.mubr.bf16.gmra.mxu0 %v813
      %v1237 = vpop.f32.mrf.mxu0
      %v1238 = vadd.f32 0.0, %v1237
      %v1239 = vpop.f32.mrf.mxu0
      %v1240 = vpop.f32.mrf.mxu0
      %v1241 = vadd.f32 0.0, %v1240
      %v1242 = vpop.f32.mrf.mxu0
      %1243 = vmatprep.mubr.bf16.mxu0 0
      %1244 = vmatmul.mubr.bf16.gmra.mxu0 %v816
      %v1245 = vpop.f32.mrf.mxu0
      %v1246 = vadd.f32 0.0, %v1245
      %v1247 = vpop.f32.mrf.mxu0
      %v1248 = vpop.f32.mrf.mxu0
      %v1249 = vadd.f32 0.0, %v1248
      %v1250 = vpop.f32.mrf.mxu0
      %1251 = vmatprep.mubr.bf16.mxu0 0
      %1252 = vmatmul.mubr.bf16.gmra.mxu0 %v819
      %v1253 = vpop.f32.mrf.mxu0
      %v1254 = vadd.f32 0.0, %v1253
      %v1255 = vpop.f32.mrf.mxu0
      %v1256 = vpop.f32.mrf.mxu0
      %v1257 = vadd.f32 0.0, %v1256
      %v1258 = vpop.f32.mrf.mxu0
      %1259 = vmatprep.mubr.bf16.mxu0 0
      %1260 = vmatmul.mubr.bf16.gmra.mxu0 %v822
      %v1261 = vpop.f32.mrf.mxu0
      %v1262 = vadd.f32 0.0, %v1261
      %v1263 = vpop.f32.mrf.mxu0
      %v1264 = vpop.f32.mrf.mxu0
      %v1265 = vadd.f32 0.0, %v1264
      %v1266 = vpop.f32.mrf.mxu0
      %1267 = vmatprep.mubr.bf16.mxu0 0
      %1268 = vmatmul.mubr.bf16.gmra.mxu0 %v825
      %v1269 = vpop.f32.mrf.mxu0
      %v1270 = vadd.f32 0.0, %v1269
      %v1271 = vpop.f32.mrf.mxu0
      %v1272 = vpop.f32.mrf.mxu0
      %v1273 = vadd.f32 0.0, %v1272
      %v1274 = vpop.f32.mrf.mxu0
      %1275 = vmatprep.mubr.bf16.mxu0 0
      %1276 = vmatmul.mubr.bf16.gmra.mxu0 %v828
      %v1277 = vpop.f32.mrf.mxu0
      %v1278 = vadd.f32 0.0, %v1277
      %v1279 = vpop.f32.mrf.mxu0
      %v1280 = vpop.f32.mrf.mxu0
      %v1281 = vadd.f32 0.0, %v1280
      %v1282 = vpop.f32.mrf.mxu0
      %1283 = vmatprep.mubr.bf16.mxu0 0
      %1284 = vmatmul.mubr.bf16.gmra.mxu0 %v831
      %v1285 = vpop.f32.mrf.mxu0
      %v1286 = vadd.f32 0.0, %v1285
      %v1287 = vpop.f32.mrf.mxu0
      %v1288 = vpop.f32.mrf.mxu0
      %v1289 = vadd.f32 0.0, %v1288
      %v1290 = vpop.f32.mrf.mxu0
      %1291 = vmatprep.mubr.bf16.mxu0 0
      %1292 = vmatmul.mubr.bf16.gmra.mxu0 %v834
      %v1293 = vpop.f32.mrf.mxu0
      %v1294 = vadd.f32 0.0, %v1293
      %v1295 = vpop.f32.mrf.mxu0
      %v1296 = vpop.f32.mrf.mxu0
      %v1297 = vadd.f32 0.0, %v1296
      %v1298 = vpop.f32.mrf.mxu0
      %1299 = vmatprep.mubr.bf16.mxu0 0
      %1300 = vmatmul.mubr.bf16.gmra.mxu0 %v837
      %v1301 = vpop.f32.mrf.mxu0
      %v1302 = vadd.f32 0.0, %v1301
      %v1303 = vpop.f32.mrf.mxu0
      %v1304 = vpop.f32.mrf.mxu0
      %v1305 = vadd.f32 0.0, %v1304
      %v1306 = vpop.f32.mrf.mxu0
      %1307 = vmatprep.mubr.bf16.mxu0 0
      %1308 = vmatmul.mubr.bf16.gmra.mxu0 %v840
      %v1309 = vpop.f32.mrf.mxu0
      %v1310 = vadd.f32 0.0, %v1309
      %v1311 = vpop.f32.mrf.mxu0
      %v1312 = vpop.f32.mrf.mxu0
      %v1313 = vadd.f32 0.0, %v1312
      %v1314 = vpop.f32.mrf.mxu0
      %1315 = vmatprep.mubr.bf16.mxu0 0
      %1316 = vmatmul.mubr.bf16.gmra.mxu0 %v843
      %v1317 = vpop.f32.mrf.mxu0
      %v1318 = vadd.f32 0.0, %v1317
      %v1319 = vpop.f32.mrf.mxu0
      %v1320 = vpop.f32.mrf.mxu0
      %v1321 = vadd.f32 0.0, %v1320
      %v1322 = vpop.f32.mrf.mxu0
      %1323 = vmatprep.mubr.bf16.mxu0 0
      %1324 = vmatmul.mubr.bf16.gmra.mxu0 %v846
      %v1325 = vpop.f32.mrf.mxu0
      %v1326 = vadd.f32 0.0, %v1325
      %v1327 = vpop.f32.mrf.mxu0
      %v1328 = vpop.f32.mrf.mxu0
      %v1329 = vadd.f32 0.0, %v1328
      %v1330 = vpop.f32.mrf.mxu0
      %1331 = vmatprep.mubr.bf16.mxu0 0
      %1332 = vmatmul.mubr.bf16.gmra.mxu0 %v849
      %v1333 = vpop.f32.mrf.mxu0
      %v1334 = vadd.f32 0.0, %v1333
      %v1335 = vpop.f32.mrf.mxu0
      %v1336 = vpop.f32.mrf.mxu0
      %v1337 = vadd.f32 0.0, %v1336
      %v1338 = vpop.f32.mrf.mxu0
      %1339 = vmatprep.mubr.bf16.mxu0 0
      %1340 = vmatmul.mubr.bf16.gmra.mxu0 %v852
      %v1341 = vpop.f32.mrf.mxu0
      %v1342 = vadd.f32 0.0, %v1341
      %v1343 = vpop.f32.mrf.mxu0
      %v1344 = vpop.f32.mrf.mxu0
      %v1345 = vadd.f32 0.0, %v1344
      %v1346 = vpop.f32.mrf.mxu0
      %1347 = vmatprep.mubr.bf16.mxu0 0
      %1348 = vmatmul.mubr.bf16.gmra.mxu0 %v855
      %v1349 = vpop.f32.mrf.mxu0
      %v1350 = vadd.f32 0.0, %v1349
      %v1351 = vpop.f32.mrf.mxu0
      %v1352 = vpop.f32.mrf.mxu0
      %v1353 = vadd.f32 0.0, %v1352
      %v1354 = vpop.f32.mrf.mxu0
      %1355 = vmatprep.mubr.bf16.mxu0 0
      %1356 = vmatmul.mubr.bf16.gmra.mxu0 %v858
      %v1357 = vpop.f32.mrf.mxu0
      %v1358 = vadd.f32 0.0, %v1357
      %v1359 = vpop.f32.mrf.mxu0
      %v1360 = vpop.f32.mrf.mxu0
      %v1361 = vadd.f32 0.0, %v1360
      %v1362 = vpop.f32.mrf.mxu0
      %1363 = vmatprep.mubr.bf16.mxu0 0
      %1364 = vmatmul.mubr.bf16.gmra.mxu0 %v861
      %v1365 = vpop.f32.mrf.mxu0
      %v1366 = vadd.f32 0.0, %v1365
      %v1367 = vpop.f32.mrf.mxu0
      %v1368 = vpop.f32.mrf.mxu0
      %v1369 = vadd.f32 0.0, %v1368
      %v1370 = vpop.f32.mrf.mxu0
      %1371 = vmatprep.mubr.bf16.mxu0 0
      %1372 = vmatmul.mubr.bf16.gmra.mxu0 %v864
      %v1373 = vpop.f32.mrf.mxu0
      %v1374 = vadd.f32 0.0, %v1373
      %v1375 = vpop.f32.mrf.mxu0
      %v1376 = vpop.f32.mrf.mxu0
      %v1377 = vadd.f32 0.0, %v1376
      %v1378 = vpop.f32.mrf.mxu0
      %1379 = vmatprep.mubr.bf16.mxu0 0
      %1380 = vmatmul.mubr.bf16.gmra.mxu0 %v867
      %v1381 = vpop.f32.mrf.mxu0
      %v1382 = vadd.f32 0.0, %v1381
      %v1383 = vpop.f32.mrf.mxu0
      %v1384 = vpop.f32.mrf.mxu0
      %v1385 = vadd.f32 0.0, %v1384
      %v1386 = vpop.f32.mrf.mxu0
      %1387 = vmatprep.mubr.bf16.mxu0 0
      %1388 = vmatmul.mubr.bf16.gmra.mxu0 %v870
      %v1389 = vpop.f32.mrf.mxu0
      %v1390 = vadd.f32 0.0, %v1389
      %v1391 = vpop.f32.mrf.mxu0
      %v1392 = vpop.f32.mrf.mxu0
      %v1393 = vadd.f32 0.0, %v1392
      %v1394 = vpop.f32.mrf.mxu0
      %1395 = vmatprep.mubr.bf16.mxu0 0
      %1396 = vmatmul.mubr.bf16.gmra.mxu0 %v873
      %v1397 = vpop.f32.mrf.mxu0
      %v1398 = vadd.f32 0.0, %v1397
      %v1399 = vpop.f32.mrf.mxu0
      %v1400 = vpop.f32.mrf.mxu0
      %v1401 = vadd.f32 0.0, %v1400
      %v1402 = vpop.f32.mrf.mxu0
      %1403 = vmatprep.mubr.bf16.mxu0 0
      %1404 = vmatmul.mubr.bf16.gmra.mxu0 %v876
      %v1405 = vpop.f32.mrf.mxu0
      %v1406 = vadd.f32 0.0, %v1405
      %v1407 = vpop.f32.mrf.mxu0
      %v1408 = vpop.f32.mrf.mxu0
      %v1409 = vadd.f32 0.0, %v1408
      %v1410 = vpop.f32.mrf.mxu0
      %1411 = vmatprep.mubr.bf16.mxu0 0
      %1412 = vmatmul.mubr.bf16.gmra.mxu0 %v879
      %v1413 = vpop.f32.mrf.mxu0
      %v1414 = vadd.f32 0.0, %v1413
      %v1415 = vpop.f32.mrf.mxu0
      %v1416 = vpop.f32.mrf.mxu0
      %v1417 = vadd.f32 0.0, %v1416
      %v1418 = vpop.f32.mrf.mxu0
      %1419 = vmatprep.mubr.bf16.mxu0 0
      %1420 = vmatmul.mubr.bf16.gmra.mxu0 %v882
      %v1421 = vpop.f32.mrf.mxu0
      %v1422 = vadd.f32 0.0, %v1421
      %v1423 = vpop.f32.mrf.mxu0
      %v1424 = vpop.f32.mrf.mxu0
      %v1425 = vadd.f32 0.0, %v1424
      %v1426 = vpop.f32.mrf.mxu0
      %1427 = vmatprep.mubr.bf16.mxu0 0
      %1428 = vmatmul.mubr.bf16.gmra.mxu0 %v885
      %v1429 = vpop.f32.mrf.mxu0
      %v1430 = vadd.f32 0.0, %v1429
      %v1431 = vpop.f32.mrf.mxu0
      %v1432 = vpop.f32.mrf.mxu0
      %v1433 = vadd.f32 0.0, %v1432
      %v1434 = vpop.f32.mrf.mxu0
      %1435 = vdwg.mxu0
      %v1436 = vmax.f32 %v926, %v1054
      %v1437 = vmax.f32 %v929, %v1057
      %v1438 = vmax.f32 %v934, %v1062
      %v1439 = vmax.f32 %v937, %v1065
      %v1440 = vmax.f32 %v942, %v1070
      %v1441 = vmax.f32 %v945, %v1073
      %v1442 = vmax.f32 %v950, %v1078
      %v1443 = vmax.f32 %v953, %v1081
      %v1444 = vmax.f32 %v958, %v1086
      %v1445 = vmax.f32 %v961, %v1089
      %v1446 = vmax.f32 %v966, %v1094
      %v1447 = vmax.f32 %v969, %v1097
      %v1448 = vmax.f32 %v974, %v1102
      %v1449 = vmax.f32 %v977, %v1105
      %v1450 = vmax.f32 %v982, %v1110
      %v1451 = vmax.f32 %v985, %v1113
      %v1452 = vmax.f32 %v990, %v1118
      %v1453 = vmax.f32 %v993, %v1121
      %v1454 = vmax.f32 %v998, %v1126
      %v1455 = vmax.f32 %v1001, %v1129
      %v1456 = vmax.f32 %v1006, %v1134
      %v1457 = vmax.f32 %v1009, %v1137
      %v1458 = vmax.f32 %v1014, %v1142
      %v1459 = vmax.f32 %v1017, %v1145
      %v1460 = vmax.f32 %v1022, %v1150
      %v1461 = vmax.f32 %v1025, %v1153
      %v1462 = vmax.f32 %v1030, %v1158
      %v1463 = vmax.f32 %v1033, %v1161
      %v1464 = vmax.f32 %v1038, %v1166
      %v1465 = vmax.f32 %v1041, %v1169
      %v1466 = vmax.f32 %v1046, %v1174
      %v1467 = vmax.f32 %v1049, %v1177
      %v1468 = vmax.f32 %v1182, %v1310
      %v1469 = vmax.f32 %v1185, %v1313
      %v1470 = vmax.f32 %v1190, %v1318
      %v1471 = vmax.f32 %v1193, %v1321
      %v1472 = vmax.f32 %v1198, %v1326
      %v1473 = vmax.f32 %v1201, %v1329
      %v1474 = vmax.f32 %v1206, %v1334
      %v1475 = vmax.f32 %v1209, %v1337
      %v1476 = vmax.f32 %v1214, %v1342
      %v1477 = vmax.f32 %v1217, %v1345
      %v1478 = vmax.f32 %v1222, %v1350
      %v1479 = vmax.f32 %v1225, %v1353
      %v1480 = vmax.f32 %v1230, %v1358
      %v1481 = vmax.f32 %v1233, %v1361
      %v1482 = vmax.f32 %v1238, %v1366
      %v1483 = vmax.f32 %v1241, %v1369
      %v1484 = vmax.f32 %v1246, %v1374
      %v1485 = vmax.f32 %v1249, %v1377
      %v1486 = vmax.f32 %v1254, %v1382
      %v1487 = vmax.f32 %v1257, %v1385
      %v1488 = vmax.f32 %v1262, %v1390
      %v1489 = vmax.f32 %v1265, %v1393
      %v1490 = vmax.f32 %v1270, %v1398
      %v1491 = vmax.f32 %v1273, %v1401
      %v1492 = vmax.f32 %v1278, %v1406
      %v1493 = vmax.f32 %v1281, %v1409
      %v1494 = vmax.f32 %v1286, %v1414
      %v1495 = vmax.f32 %v1289, %v1417
      %v1496 = vmax.f32 %v1294, %v1422
      %v1497 = vmax.f32 %v1297, %v1425
      %v1498 = vmax.f32 %v1302, %v1430
      %v1499 = vmax.f32 %v1305, %v1433
      %v1500 = vmax.f32 %v1436, %v1468
      %v1501 = vmax.f32 %v1437, %v1469
      %v1502 = vmax.f32 %v1438, %v1470
      %v1503 = vmax.f32 %v1439, %v1471
      %v1504 = vmax.f32 %v1440, %v1472
      %v1505 = vmax.f32 %v1441, %v1473
      %v1506 = vmax.f32 %v1442, %v1474
      %v1507 = vmax.f32 %v1443, %v1475
      %v1508 = vmax.f32 %v1444, %v1476
      %v1509 = vmax.f32 %v1445, %v1477
      %v1510 = vmax.f32 %v1446, %v1478
      %v1511 = vmax.f32 %v1447, %v1479
      %v1512 = vmax.f32 %v1448, %v1480
      %v1513 = vmax.f32 %v1449, %v1481
      %v1514 = vmax.f32 %v1450, %v1482
      %v1515 = vmax.f32 %v1451, %v1483
      %v1516 = vmax.f32 %v1452, %v1484
      %v1517 = vmax.f32 %v1453, %v1485
      %v1518 = vmax.f32 %v1454, %v1486
      %v1519 = vmax.f32 %v1455, %v1487
      %v1520 = vmax.f32 %v1456, %v1488
      %v1521 = vmax.f32 %v1457, %v1489
      %v1522 = vmax.f32 %v1458, %v1490
      %v1523 = vmax.f32 %v1459, %v1491
      %v1524 = vmax.f32 %v1460, %v1492
      %v1525 = vmax.f32 %v1461, %v1493
      %v1526 = vmax.f32 %v1462, %v1494
      %v1527 = vmax.f32 %v1463, %v1495
      %v1528 = vmax.f32 %v1464, %v1496
      %v1529 = vmax.f32 %v1465, %v1497
      %v1530 = vmax.f32 %v1466, %v1498
      %v1531 = vmax.f32 %v1467, %v1499
      %v1532 = vmin.f32 %v926, %v1054
      %v1533 = vmin.f32 %v929, %v1057
      %v1534 = vmin.f32 %v934, %v1062
      %v1535 = vmin.f32 %v937, %v1065
      %v1536 = vmin.f32 %v942, %v1070
      %v1537 = vmin.f32 %v945, %v1073
      %v1538 = vmin.f32 %v950, %v1078
      %v1539 = vmin.f32 %v953, %v1081
      %v1540 = vmin.f32 %v958, %v1086
      %v1541 = vmin.f32 %v961, %v1089
      %v1542 = vmin.f32 %v966, %v1094
      %v1543 = vmin.f32 %v969, %v1097
      %v1544 = vmin.f32 %v974, %v1102
      %v1545 = vmin.f32 %v977, %v1105
      %v1546 = vmin.f32 %v982, %v1110
      %v1547 = vmin.f32 %v985, %v1113
      %v1548 = vmin.f32 %v990, %v1118
      %v1549 = vmin.f32 %v993, %v1121
      %v1550 = vmin.f32 %v998, %v1126
      %v1551 = vmin.f32 %v1001, %v1129
      %v1552 = vmin.f32 %v1006, %v1134
      %v1553 = vmin.f32 %v1009, %v1137
      %v1554 = vmin.f32 %v1014, %v1142
      %v1555 = vmin.f32 %v1017, %v1145
      %v1556 = vmin.f32 %v1022, %v1150
      %v1557 = vmin.f32 %v1025, %v1153
      %v1558 = vmin.f32 %v1030, %v1158
      %v1559 = vmin.f32 %v1033, %v1161
      %v1560 = vmin.f32 %v1038, %v1166
      %v1561 = vmin.f32 %v1041, %v1169
      %v1562 = vmin.f32 %v1046, %v1174
      %v1563 = vmin.f32 %v1049, %v1177
      %v1564 = vmin.f32 %v1182, %v1310
      %v1565 = vmin.f32 %v1185, %v1313
      %v1566 = vmin.f32 %v1190, %v1318
      %v1567 = vmin.f32 %v1193, %v1321
      %v1568 = vmin.f32 %v1198, %v1326
      %v1569 = vmin.f32 %v1201, %v1329
      %v1570 = vmin.f32 %v1206, %v1334
      %v1571 = vmin.f32 %v1209, %v1337
      %v1572 = vmin.f32 %v1214, %v1342
      %v1573 = vmin.f32 %v1217, %v1345
      %v1574 = vmin.f32 %v1222, %v1350
      %v1575 = vmin.f32 %v1225, %v1353
      %v1576 = vmin.f32 %v1230, %v1358
      %v1577 = vmin.f32 %v1233, %v1361
      %v1578 = vmin.f32 %v1238, %v1366
      %v1579 = vmin.f32 %v1241, %v1369
      %v1580 = vmin.f32 %v1246, %v1374
      %v1581 = vmin.f32 %v1249, %v1377
      %v1582 = vmin.f32 %v1254, %v1382
      %v1583 = vmin.f32 %v1257, %v1385
      %v1584 = vmin.f32 %v1262, %v1390
      %v1585 = vmin.f32 %v1265, %v1393
      %v1586 = vmin.f32 %v1270, %v1398
      %v1587 = vmin.f32 %v1273, %v1401
      %v1588 = vmin.f32 %v1278, %v1406
      %v1589 = vmin.f32 %v1281, %v1409
      %v1590 = vmin.f32 %v1286, %v1414
      %v1591 = vmin.f32 %v1289, %v1417
      %v1592 = vmin.f32 %v1294, %v1422
      %v1593 = vmin.f32 %v1297, %v1425
      %v1594 = vmin.f32 %v1302, %v1430
      %v1595 = vmin.f32 %v1305, %v1433
      %v1596 = vmin.f32 %v1532, %v1564
      %v1597 = vmin.f32 %v1533, %v1565
      %v1598 = vmin.f32 %v1534, %v1566
      %v1599 = vmin.f32 %v1535, %v1567
      %v1600 = vmin.f32 %v1536, %v1568
      %v1601 = vmin.f32 %v1537, %v1569
      %v1602 = vmin.f32 %v1538, %v1570
      %v1603 = vmin.f32 %v1539, %v1571
      %v1604 = vmin.f32 %v1540, %v1572
      %v1605 = vmin.f32 %v1541, %v1573
      %v1606 = vmin.f32 %v1542, %v1574
      %v1607 = vmin.f32 %v1543, %v1575
      %v1608 = vmin.f32 %v1544, %v1576
      %v1609 = vmin.f32 %v1545, %v1577
      %v1610 = vmin.f32 %v1546, %v1578
      %v1611 = vmin.f32 %v1547, %v1579
      %v1612 = vmin.f32 %v1548, %v1580
      %v1613 = vmin.f32 %v1549, %v1581
      %v1614 = vmin.f32 %v1550, %v1582
      %v1615 = vmin.f32 %v1551, %v1583
      %v1616 = vmin.f32 %v1552, %v1584
      %v1617 = vmin.f32 %v1553, %v1585
      %v1618 = vmin.f32 %v1554, %v1586
      %v1619 = vmin.f32 %v1555, %v1587
      %v1620 = vmin.f32 %v1556, %v1588
      %v1621 = vmin.f32 %v1557, %v1589
      %v1622 = vmin.f32 %v1558, %v1590
      %v1623 = vmin.f32 %v1559, %v1591
      %v1624 = vmin.f32 %v1560, %v1592
      %v1625 = vmin.f32 %v1561, %v1593
      %v1626 = vmin.f32 %v1562, %v1594
      %v1627 = vmin.f32 %v1563, %v1595
      %v1628 = vld [vmem:[%s3] sm:$0x1]
      %vm1629 = vcmp.ge.f32.partialorder %v1628, 0.0
      %v1630 = vsel %vm1629, 1, 0
      %v1631 = vlaneseq
      %v1632 = vshrl.u32 %v1631, 7
      %v1633 = vsub.s32 0, %v1632
      %v1634 = vrot.slane %v1630, %v1633
      %vm1635 = vcmp.eq.s32.totalorder %v1634, 1
      %v1636 = vsel %vm1635, %v1500, %v1596
      %v1637 = vsel %vm1635, %v1501, %v1597
      %v1638 = vsel %vm1635, %v1502, %v1598
      %v1639 = vsel %vm1635, %v1503, %v1599
      %v1640 = vsel %vm1635, %v1504, %v1600
      %v1641 = vsel %vm1635, %v1505, %v1601
      %v1642 = vsel %vm1635, %v1506, %v1602
      %v1643 = vsel %vm1635, %v1507, %v1603
      %v1644 = vsel %vm1635, %v1508, %v1604
      %v1645 = vsel %vm1635, %v1509, %v1605
      %v1646 = vsel %vm1635, %v1510, %v1606
      %v1647 = vsel %vm1635, %v1511, %v1607
      %v1648 = vsel %vm1635, %v1512, %v1608
      %v1649 = vsel %vm1635, %v1513, %v1609
      %v1650 = vsel %vm1635, %v1514, %v1610
      %v1651 = vsel %vm1635, %v1515, %v1611
      %v1652 = vsel %vm1635, %v1516, %v1612
      %v1653 = vsel %vm1635, %v1517, %v1613
      %v1654 = vsel %vm1635, %v1518, %v1614
      %v1655 = vsel %vm1635, %v1519, %v1615
      %v1656 = vsel %vm1635, %v1520, %v1616
      %v1657 = vsel %vm1635, %v1521, %v1617
      %v1658 = vsel %vm1635, %v1522, %v1618
      %v1659 = vsel %vm1635, %v1523, %v1619
      %v1660 = vsel %vm1635, %v1524, %v1620
      %v1661 = vsel %vm1635, %v1525, %v1621
      %v1662 = vsel %vm1635, %v1526, %v1622
      %v1663 = vsel %vm1635, %v1527, %v1623
      %v1664 = vsel %vm1635, %v1528, %v1624
      %v1665 = vsel %vm1635, %v1529, %v1625
      %v1666 = vsel %vm1635, %v1530, %v1626
      %v1667 = vsel %vm1635, %v1531, %v1627
      %v1668 = vld [vmem:[%s2] sm:$0x1]
      %v1670 = vlaneseq
      %v1671 = vshrl.u32 %v1670, 7
      %v1672 = vsub.s32 0, %v1671
      %v1673 = vrot.slane %v1668, %v1672
      %v1675 = vadd.f32 %v1636, %v1673
      %v1676 = vadd.f32 %v1637, %v1673
      %v1677 = vadd.f32 %v1638, %v1673
      %v1678 = vadd.f32 %v1639, %v1673
      %v1679 = vadd.f32 %v1640, %v1673
      %v1680 = vadd.f32 %v1641, %v1673
      %v1681 = vadd.f32 %v1642, %v1673
      %v1682 = vadd.f32 %v1643, %v1673
      %v1683 = vadd.f32 %v1644, %v1673
      %v1684 = vadd.f32 %v1645, %v1673
      %v1685 = vadd.f32 %v1646, %v1673
      %v1686 = vadd.f32 %v1647, %v1673
      %v1687 = vadd.f32 %v1648, %v1673
      %v1688 = vadd.f32 %v1649, %v1673
      %v1689 = vadd.f32 %v1650, %v1673
      %v1690 = vadd.f32 %v1651, %v1673
      %v1691 = vadd.f32 %v1652, %v1673
      %v1692 = vadd.f32 %v1653, %v1673
      %v1693 = vadd.f32 %v1654, %v1673
      %v1694 = vadd.f32 %v1655, %v1673
      %v1695 = vadd.f32 %v1656, %v1673
      %v1696 = vadd.f32 %v1657, %v1673
      %v1697 = vadd.f32 %v1658, %v1673
      %v1698 = vadd.f32 %v1659, %v1673
      %v1699 = vadd.f32 %v1660, %v1673
      %v1700 = vadd.f32 %v1661, %v1673
      %v1701 = vadd.f32 %v1662, %v1673
      %v1702 = vadd.f32 %v1663, %v1673
      %v1703 = vadd.f32 %v1664, %v1673
      %v1704 = vadd.f32 %v1665, %v1673
      %v1705 = vadd.f32 %v1666, %v1673
      %v1706 = vadd.f32 %v1667, %v1673
      %v1707 = vtanh.pop %v1675
      %v1708 = vtanh.pop %v1676
      %v1709 = vtanh.pop %v1677
      %v1710 = vtanh.pop %v1678
      %v1711 = vtanh.pop %v1679
      %v1712 = vtanh.pop %v1680
      %v1713 = vtanh.pop %v1681
      %v1714 = vtanh.pop %v1682
      %v1715 = vtanh.pop %v1683
      %v1716 = vtanh.pop %v1684
      %v1717 = vtanh.pop %v1685
      %v1718 = vtanh.pop %v1686
      %v1719 = vtanh.pop %v1687
      %v1720 = vtanh.pop %v1688
      %v1721 = vtanh.pop %v1689
      %v1722 = vtanh.pop %v1690
      %v1723 = vtanh.pop %v1691
      %v1724 = vtanh.pop %v1692
      %v1725 = vtanh.pop %v1693
      %v1726 = vtanh.pop %v1694
      %v1727 = vtanh.pop %v1695
      %v1728 = vtanh.pop %v1696
      %v1729 = vtanh.pop %v1697
      %v1730 = vtanh.pop %v1698
      %v1731 = vtanh.pop %v1699
      %v1732 = vtanh.pop %v1700
      %v1733 = vtanh.pop %v1701
      %v1734 = vtanh.pop %v1702
      %v1735 = vtanh.pop %v1703
      %v1736 = vtanh.pop %v1704
      %v1737 = vtanh.pop %v1705
      %v1738 = vtanh.pop %v1706
      %v1740 = vlaneseq
      %v1741 = vshrl.u32 %v1740, 7
      %v1742 = vsub.s32 0, %v1741
      %v1743 = vrot.slane %v1628, %v1742
      %v1745 = vmul.f32 %v1707, %v1743
      %v1746 = vmul.f32 %v1708, %v1743
      %v1747 = vmul.f32 %v1709, %v1743
      %v1748 = vmul.f32 %v1710, %v1743
      %v1749 = vmul.f32 %v1711, %v1743
      %v1750 = vmul.f32 %v1712, %v1743
      %v1751 = vmul.f32 %v1713, %v1743
      %v1752 = vmul.f32 %v1714, %v1743
      %v1753 = vmul.f32 %v1715, %v1743
      %v1754 = vmul.f32 %v1716, %v1743
      %v1755 = vmul.f32 %v1717, %v1743
      %v1756 = vmul.f32 %v1718, %v1743
      %v1757 = vmul.f32 %v1719, %v1743
      %v1758 = vmul.f32 %v1720, %v1743
      %v1759 = vmul.f32 %v1721, %v1743
      %v1760 = vmul.f32 %v1722, %v1743
      %v1761 = vmul.f32 %v1723, %v1743
      %v1762 = vmul.f32 %v1724, %v1743
      %v1763 = vmul.f32 %v1725, %v1743
      %v1764 = vmul.f32 %v1726, %v1743
      %v1765 = vmul.f32 %v1727, %v1743
      %v1766 = vmul.f32 %v1728, %v1743
      %v1767 = vmul.f32 %v1729, %v1743
      %v1768 = vmul.f32 %v1730, %v1743
      %v1769 = vmul.f32 %v1731, %v1743
      %v1770 = vmul.f32 %v1732, %v1743
      %v1771 = vmul.f32 %v1733, %v1743
      %v1772 = vmul.f32 %v1734, %v1743
      %v1773 = vmul.f32 %v1735, %v1743
      %v1774 = vmul.f32 %v1736, %v1743
      %v1775 = vmul.f32 %v1737, %v1743
      %v1776 = vmul.f32 %v1738, %v1743
      %v1777 = vld [vmem:[%s4] sm:$0x1]
      %v1779 = vlaneseq
      %v1780 = vshrl.u32 %v1779, 7
      %v1781 = vsub.s32 0, %v1780
      %v1782 = vrot.slane %v1777, %v1781
      %v1784 = vadd.f32 %v1745, %v1782
      %v1785 = vadd.f32 %v1746, %v1782
      %v1786 = vadd.f32 %v1747, %v1782
      %v1787 = vadd.f32 %v1748, %v1782
      %v1788 = vadd.f32 %v1749, %v1782
      %v1789 = vadd.f32 %v1750, %v1782
      %v1790 = vadd.f32 %v1751, %v1782
      %v1791 = vadd.f32 %v1752, %v1782
      %v1792 = vadd.f32 %v1753, %v1782
      %v1793 = vadd.f32 %v1754, %v1782
      %v1794 = vadd.f32 %v1755, %v1782
      %v1795 = vadd.f32 %v1756, %v1782
      %v1796 = vadd.f32 %v1757, %v1782
      %v1797 = vadd.f32 %v1758, %v1782
      %v1798 = vadd.f32 %v1759, %v1782
      %v1799 = vadd.f32 %v1760, %v1782
      %v1800 = vadd.f32 %v1761, %v1782
      %v1801 = vadd.f32 %v1762, %v1782
      %v1802 = vadd.f32 %v1763, %v1782
      %v1803 = vadd.f32 %v1764, %v1782
      %v1804 = vadd.f32 %v1765, %v1782
      %v1805 = vadd.f32 %v1766, %v1782
      %v1806 = vadd.f32 %v1767, %v1782
      %v1807 = vadd.f32 %v1768, %v1782
      %v1808 = vadd.f32 %v1769, %v1782
      %v1809 = vadd.f32 %v1770, %v1782
      %v1810 = vadd.f32 %v1771, %v1782
      %v1811 = vadd.f32 %v1772, %v1782
      %v1812 = vadd.f32 %v1773, %v1782
      %v1813 = vadd.f32 %v1774, %v1782
      %v1814 = vadd.f32 %v1775, %v1782
      %v1815 = vadd.f32 %v1776, %v1782
      %vm1816 = vcmask 130048
      %1817 = vst.msk [vmem:[%s224] sm:$0xff] %vm1816, %v1784
      %1818 = vst.msk [vmem:[%s224 + $0x8] sm:$0xff] %vm1816, %v1785
      %1819 = vst.msk [vmem:[%s224 + $0x10] sm:$0xff] %vm1816, %v1786
      %1820 = vst.msk [vmem:[%s224 + $0x18] sm:$0xff] %vm1816, %v1787
      %1821 = vst.msk [vmem:[%s224 + $0x20] sm:$0xff] %vm1816, %v1788
      %1822 = vst.msk [vmem:[%s224 + $0x28] sm:$0xff] %vm1816, %v1789
      %1823 = vst.msk [vmem:[%s224 + $0x30] sm:$0xff] %vm1816, %v1790
      %1824 = vst.msk [vmem:[%s224 + $0x38] sm:$0xff] %vm1816, %v1791
      %1825 = vst.msk [vmem:[%s224 + $0x40] sm:$0xff] %vm1816, %v1792
      %1826 = vst.msk [vmem:[%s224 + $0x48] sm:$0xff] %vm1816, %v1793
      %1827 = vst.msk [vmem:[%s224 + $0x50] sm:$0xff] %vm1816, %v1794
      %1828 = vst.msk [vmem:[%s224 + $0x58] sm:$0xff] %vm1816, %v1795
      %1829 = vst.msk [vmem:[%s224 + $0x60] sm:$0xff] %vm1816, %v1796
      %1830 = vst.msk [vmem:[%s224 + $0x68] sm:$0xff] %vm1816, %v1797
      %1831 = vst.msk [vmem:[%s224 + $0x70] sm:$0xff] %vm1816, %v1798
      %1832 = vst.msk [vmem:[%s224 + $0x78] sm:$0xff] %vm1816, %v1799
      %1833 = vst.msk [vmem:[%s224 + $0x80] sm:$0xff] %vm1816, %v1800
      %1834 = vst.msk [vmem:[%s224 + $0x88] sm:$0xff] %vm1816, %v1801
      %1835 = vst.msk [vmem:[%s224 + $0x90] sm:$0xff] %vm1816, %v1802
      %1836 = vst.msk [vmem:[%s224 + $0x98] sm:$0xff] %vm1816, %v1803
      %1837 = vst.msk [vmem:[%s224 + $0xa0] sm:$0xff] %vm1816, %v1804
      %1838 = vst.msk [vmem:[%s224 + $0xa8] sm:$0xff] %vm1816, %v1805
      %1839 = vst.msk [vmem:[%s224 + $0xb0] sm:$0xff] %vm1816, %v1806
      %1840 = vst.msk [vmem:[%s224 + $0xb8] sm:$0xff] %vm1816, %v1807
      %1841 = vst.msk [vmem:[%s224 + $0xc0] sm:$0xff] %vm1816, %v1808
      %1842 = vst.msk [vmem:[%s224 + $0xc8] sm:$0xff] %vm1816, %v1809
      %1843 = vst.msk [vmem:[%s224 + $0xd0] sm:$0xff] %vm1816, %v1810
      %1844 = vst.msk [vmem:[%s224 + $0xd8] sm:$0xff] %vm1816, %v1811
      %1845 = vst.msk [vmem:[%s224 + $0xe0] sm:$0xff] %vm1816, %v1812
      %1846 = vst.msk [vmem:[%s224 + $0xe8] sm:$0xff] %vm1816, %v1813
      %1847 = vst.msk [vmem:[%s224 + $0xf0] sm:$0xff] %vm1816, %v1814
      %1848 = vst.msk [vmem:[%s224 + $0xf8] sm:$0xff] %vm1816, %v1815
      %p1849 = scmp.lt.s32.totalorder %s16, 1
      %s1850 = scalar_select %p1849, %s16, 1
      %s1851 = smul.addr %s1850, 32
      %s1852 = smul.addr %s1851, 8
      %s1853 = scalar_lea.vmem %s5, %s1852
      // Predicated region
      $region41: #{conv_discriminator_forward.3} parent=39 // pred_check
        %p1854 = pneg %p144
      $region42: #{conv_discriminator_forward.3} parent=39 // pred_check_branch
        %1856 = sbr.rel (%p1854) target = $region44
      $region43: #{conv_discriminator_forward.3} parent=39 // pred_region
        _
      $region44: #{conv_discriminator_forward.3} parent=39 // pred_fallthru
        _
    $region40: #{conv_discriminator_forward.3} parent=5 // pred_fallthru
      _
    %p1857 = scmp.le.s32.totalorder 2, %s11
    // Predicated region
    $region45: #{conv_discriminator_forward.3} parent=5 // pred_check
      %p1858 = pneg %p1857
    $region46: #{conv_discriminator_forward.3} parent=5 // pred_check_branch
      %1860 = sbr.rel (%p1858) target = $region48
    $region47: #{conv_discriminator_forward.3} parent=5 // pred_region
      %s1861 = ssub.s32 %s11, 2
      // Predicated region
      $region49: #{conv_discriminator_forward.3} parent=47 // pred_check
        %p1862 = pneg %p150
      $region50: #{conv_discriminator_forward.3} parent=47 // pred_check_branch
        %1864 = sbr.rel (%p1862) target = $region52
      $region51: #{conv_discriminator_forward.3} parent=47 // pred_region
        %p1865 = scmp.lt.s32.totalorder %s17, 1
        %s1866 = scalar_select %p1865, %s17, 1
        %s1867 = smul.addr %s1866, 32
        %s1868 = smul.addr %s1867, 8
        %s1869 = scalar_lea.vmem %s5, %s1868
      $region52: #{conv_discriminator_forward.3} parent=47 // pred_fallthru
        _
    $region48: #{conv_discriminator_forward.3} parent=5 // pred_fallthru
      _
  $region6: #{conv_discriminator_forward.3} parent=0 // loop_footer
    %s15 = sadd.s32 1, %s11
  $region7: #{conv_discriminator_forward.3} parent=0 // loop_footer_branch
    %10 = sbr.rel target = $region3
  $region8: #{conv_discriminator_forward.3} parent=0 // loop_exit
    _

// kernel: conv_discriminator_forward.4
$region0: #{conv_discriminator_forward.4}
  #allocation0 [shape = 'u32[]', space=smem, size = 0x4, offset = 0x4, fixed_abs, tag = 'smem constant byte address 0x4 - core index']
  #allocation1 [shape = 'u32[144,128]{1,0:T(1,128)}', space=vmem, size = 0x12000, scoped, tag = 'internal scratch']
  %s0 = inlined_call_operand.vmem [shape: bf16[2,256,144], index: 0, kind: input, shape index: {}]
  %s1 = inlined_call_operand.vmem [shape: bf16[144,16], index: 1, kind: input, shape index: {}]
  %s2 = inlined_call_operand.vmem [shape: f32[1,16], index: 2, kind: input, shape index: {}]
  %s3 = inlined_call_operand.vmem [shape: f32[1,16], index: 3, kind: input, shape index: {}]
  %s4 = inlined_call_operand.vmem [shape: f32[1,16], index: 4, kind: input, shape index: {}]
  %s5 = inlined_call_operand.vmem [shape: f32[2,64,16], index: 5, kind: output, shape index: {}]
  %s6 = sld [smem:[#allocation0]]
  $region53: #{conv_discriminator_forward.4} parent=0
    _
  %s8 = ssub.s32 1, %s6
  %s9 = scalar_select 0, %s8, %s6
  loop: start=0, step=1, limit=4
  $region2: #{conv_discriminator_forward.4} parent=0 // loop_pre_header
    _
  $region3: #{conv_discriminator_forward.4} parent=0 // loop_header
    %s11 = sphi 0, %s15
    %p12 = scmp.ge.s32.totalorder %s11, 4
    %s21 = sphi 0, %s23
    %s24 = sphi 0, %s21
    %s25 = sphi 0, %s24
    %s41 = sphi 0, %s25
    %s45 = sphi 0, %s45
    %s47 = sphi 0, %s45
    %s48 = sphi 0, %s47
    %s62 = sphi 0, %s48
    %s66 = sphi 0, %s66
    %s68 = sphi 0, %s66
    %s69 = sphi 0, %s68
    %s83 = sphi 0, %s69
    %s87 = sphi 0, %s87
    %s89 = sphi 0, %s87
    %s90 = sphi 0, %s89
    %s104 = sphi 0, %s90
    %s108 = sphi 0, %s108
    %s110 = sphi 0, %s108
    %s111 = sphi 0, %s110
    %s125 = sphi 0, %s111
    %s131 = sphi 0, %s133
    %s134 = sphi 0, %s131
    %s135 = sphi 0, %s134
    %s151 = sphi 0, %s135
  $region4: #{conv_discriminator_forward.4} parent=0 // loop_header_branch
    %14 = sbr.rel (%p12) target = $region8
  $region5: #{conv_discriminator_forward.4} parent=0 // loop_body
    %s16 = ssub.s32 %s11, 1
    %s17 = ssub.s32 %s11, 2
    %s18 = sadd.s32 %s11, 1
    %s19 = ssub.s32 %s11, %s18
    %p20 = scmp.eq.s32.totalorder %s19, 0
    %s22 = sadd.s32 %s21, 1
    %s23 = scalar_select %p20, %s21, %s22
    %p26 = pneg %p20
    %p27 = scmp.eq.s32.totalorder %s11, 1
    %p28 = por %p26, %p27
    %p29 = scmp.ne.s32.totalorder %s21, %s24
    %p30 = scmp.eq.s32.totalorder %s11, 0
    %p31 = por %p29, %p30
    %p32 = scmp.ne.s32.totalorder %s21, %s24
    %p33 = scmp.eq.s32.totalorder %s16, 1
    %p34 = por %p32, %p33
    %p35 = scmp.ne.s32.totalorder %s24, %s25
    %p36 = scmp.eq.s32.totalorder %s16, 0
    %p37 = por %p35, %p36
    %p38 = scmp.ne.s32.totalorder %s24, %s25
    %p39 = scmp.eq.s32.totalorder %s17, 1
    %p40 = por %p38, %p39
    %p42 = scmp.ne.s32.totalorder %s25, %s41
    %p43 = scmp.eq.s32.totalorder %s17, 0
    %p44 = por %p42, %p43
    %s46 = sadd.s32 %s45, 1
    %p49 = scmp.eq.s32.totalorder %s11, 1
    %p50 = scmp.ne.s32.totalorder %s45, %s47
    %p51 = scmp.eq.s32.totalorder %s11, 0
    %p52 = por %p50, %p51
    %p53 = scmp.ne.s32.totalorder %s45, %s47
    %p54 = scmp.eq.s32.totalorder %s16, 1
    %p55 = por %p53, %p54
    %p56 = scmp.ne.s32.totalorder %s47, %s48
    %p57 = scmp.eq.s32.totalorder %s16, 0
    %p58 = por %p56, %p57
    %p59 = scmp.ne.s32.totalorder %s47, %s48
    %p60 = scmp.eq.s32.totalorder %s17, 1
    %p61 = por %p59, %p60
    %p63 = scmp.ne.s32.totalorder %s48, %s62
    %p64 = scmp.eq.s32.totalorder %s17, 0
    %p65 = por %p63, %p64
    %s67 = sadd.s32 %s66, 1
    %p70 = scmp.eq.s32.totalorder %s11, 1
    %p71 = scmp.ne.s32.totalorder %s66, %s68
    %p72 = scmp.eq.s32.totalorder %s11, 0
    %p73 = por %p71, %p72
    %p74 = scmp.ne.s32.totalorder %s66, %s68
    %p75 = scmp.eq.s32.totalorder %s16, 1
    %p76 = por %p74, %p75
    %p77 = scmp.ne.s32.totalorder %s68, %s69
    %p78 = scmp.eq.s32.totalorder %s16, 0
    %p79 = por %p77, %p78
    %p80 = scmp.ne.s32.totalorder %s68, %s69
    %p81 = scmp.eq.s32.totalorder %s17, 1
    %p82 = por %p80, %p81
    %p84 = scmp.ne.s32.totalorder %s69, %s83
    %p85 = scmp.eq.s32.totalorder %s17, 0
    %p86 = por %p84, %p85
    %s88 = sadd.s32 %s87, 1
    %p91 = scmp.eq.s32.totalorder %s11, 1
    %p92 = scmp.ne.s32.totalorder %s87, %s89
    %p93 = scmp.eq.s32.totalorder %s11, 0
    %p94 = por %p92, %p93
    %p95 = scmp.ne.s32.totalorder %s87, %s89
    %p96 = scmp.eq.s32.totalorder %s16, 1
    %p97 = por %p95, %p96
    %p98 = scmp.ne.s32.totalorder %s89, %s90
    %p99 = scmp.eq.s32.totalorder %s16, 0
    %p100 = por %p98, %p99
    %p101 = scmp.ne.s32.totalorder %s89, %s90
    %p102 = scmp.eq.s32.totalorder %s17, 1
    %p103 = por %p101, %p102
    %p105 = scmp.ne.s32.totalorder %s90, %s104
    %p106 = scmp.eq.s32.totalorder %s17, 0
    %p107 = por %p105, %p106
    %s109 = sadd.s32 %s108, 1
    %p112 = scmp.eq.s32.totalorder %s11, 1
    %p113 = scmp.ne.s32.totalorder %s108, %s110
    %p114 = scmp.eq.s32.totalorder %s11, 0
    %p115 = por %p113, %p114
    %p116 = scmp.ne.s32.totalorder %s108, %s110
    %p117 = scmp.eq.s32.totalorder %s16, 1
    %p118 = por %p116, %p117
    %p119 = scmp.ne.s32.totalorder %s110, %s111
    %p120 = scmp.eq.s32.totalorder %s16, 0
    %p121 = por %p119, %p120
    %p122 = scmp.ne.s32.totalorder %s110, %s111
    %p123 = scmp.eq.s32.totalorder %s17, 1
    %p124 = por %p122, %p123
    %p126 = scmp.ne.s32.totalorder %s111, %s125
    %p127 = scmp.eq.s32.totalorder %s17, 0
    %p128 = por %p126, %p127
    %s129 = ssub.s32 %s11, %s18
    %p130 = scmp.eq.s32.totalorder %s129, 0
    %s132 = sadd.s32 %s131, 1
    %s133 = scalar_select %p130, %s131, %s132
    %p136 = pneg %p130
    %p137 = scmp.eq.s32.totalorder %s11, 1
    %p138 = por %p136, %p137
    %p139 = scmp.ne.s32.totalorder %s131, %s134
    %p140 = scmp.eq.s32.totalorder %s11, 0
    %p141 = por %p139, %p140
    %p142 = scmp.ne.s32.totalorder %s131, %s134
    %p143 = scmp.eq.s32.totalorder %s16, 1
    %p144 = por %p142, %p143
    %p145 = scmp.ne.s32.totalorder %s134, %s135
    %p146 = scmp.eq.s32.totalorder %s16, 0
    %p147 = por %p145, %p146
    %p148 = scmp.ne.s32.totalorder %s134, %s135
    %p149 = scmp.eq.s32.totalorder %s17, 1
    %p150 = por %p148, %p149
    %p152 = scmp.ne.s32.totalorder %s135, %s151
    %p153 = scmp.eq.s32.totalorder %s17, 0
    %p154 = por %p152, %p153
    %p155 = scmp.le.s32.totalorder 1, %s11
    %p156 = scmp.lt.s32.totalorder %s11, 3
    %p157 = pnand %p155, %p156
    %p158 = pneg %p157
    // Predicated region
    $region9: #{conv_discriminator_forward.4} parent=5 // pred_check
      _
    $region10: #{conv_discriminator_forward.4} parent=5 // pred_check_branch
      %160 = sbr.rel (%p157) target = $region12
    $region11: #{conv_discriminator_forward.4} parent=5 // pred_region
      %s161 = ssub.s32 %s11, 1
      // Predicated region
      $region13: #{conv_discriminator_forward.4} parent=11 // pred_check
        %p162 = pneg %p58
      $region14: #{conv_discriminator_forward.4} parent=11 // pred_check_branch
        %164 = sbr.rel (%p162) target = $region16
      $region15: #{conv_discriminator_forward.4} parent=11 // pred_region
        _
      $region16: #{conv_discriminator_forward.4} parent=11 // pred_fallthru
        _
      // Predicated region
      $region17: #{conv_discriminator_forward.4} parent=11 // pred_check
        %p165 = pneg %p79
      $region18: #{conv_discriminator_forward.4} parent=11 // pred_check_branch
        %167 = sbr.rel (%p165) target = $region20
      $region19: #{conv_discriminator_forward.4} parent=11 // pred_region
        _
      $region20: #{conv_discriminator_forward.4} parent=11 // pred_fallthru
        _
      // Predicated region
      $region21: #{conv_discriminator_forward.4} parent=11 // pred_check
        %p168 = pneg %p100
      $region22: #{conv_discriminator_forward.4} parent=11 // pred_check_branch
        %170 = sbr.rel (%p168) target = $region24
      $region23: #{conv_discriminator_forward.4} parent=11 // pred_region
        _
      $region24: #{conv_discriminator_forward.4} parent=11 // pred_fallthru
        _
      // Predicated region
      $region25: #{conv_discriminator_forward.4} parent=11 // pred_check
        %p171 = pneg %p121
      $region26: #{conv_discriminator_forward.4} parent=11 // pred_check_branch
        %173 = sbr.rel (%p171) target = $region28
      $region27: #{conv_discriminator_forward.4} parent=11 // pred_region
        _
      $region28: #{conv_discriminator_forward.4} parent=11 // pred_fallthru
        _
    $region12: #{conv_discriminator_forward.4} parent=5 // pred_fallthru
      _
    %p174 = scmp.lt.s32.totalorder %s11, 2
    // Predicated region
    $region29: #{conv_discriminator_forward.4} parent=5 // pred_check
      %p175 = pneg %p174
    $region30: #{conv_discriminator_forward.4} parent=5 // pred_check_branch
      %177 = sbr.rel (%p175) target = $region32
    $region31: #{conv_discriminator_forward.4} parent=5 // pred_region
      // Predicated region
      $region33: #{conv_discriminator_forward.4} parent=31 // pred_check
        %p178 = pneg %p31
      $region34: #{conv_discriminator_forward.4} parent=31 // pred_check_branch
        %180 = sbr.rel (%p178) target = $region36
      $region35: #{conv_discriminator_forward.4} parent=31 // pred_region
        %p181 = scmp.lt.s32.totalorder %s11, 1
        %s182 = scalar_select %p181, %s11, 1
        %s183 = smul.addr %s182, 64
        %s184 = smul.addr %s183, 4
        %s185 = scalar_lea.vmem %s0, %s184
      $region36: #{conv_discriminator_forward.4} parent=31 // pred_fallthru
        _
    $region32: #{conv_discriminator_forward.4} parent=5 // pred_fallthru
      _
    %p186 = scmp.le.s32.totalorder 1, %s11
    %p187 = scmp.lt.s32.totalorder %s11, 3
    %p188 = pnand %p186, %p187
    %p189 = pneg %p188
    // Predicated region
    $region37: #{conv_discriminator_forward.4} parent=5 // pred_check
      _
    $region38: #{conv_discriminator_forward.4} parent=5 // pred_check_branch
      %191 = sbr.rel (%p188) target = $region40
    $region39: #{conv_discriminator_forward.4} parent=5 // pred_region
      %s192 = ssub.s32 %s11, 1
      %p193 = scmp.lt.s32.totalorder %s16, 1
      %s194 = scalar_select %p193, %s16, 1
      %s195 = smul.addr %s194, 64
      %s196 = smul.addr %s195, 4
      %s197 = scalar_lea.vmem %s0, %s196
      %p198 = pneg %p37
      %p199 = pneg %p34
      %p200 = pneg %p58
      %p201 = pneg %p55
      %p202 = pneg %p79
      %p203 = pneg %p76
      %p204 = pneg %p100
      %p205 = pneg %p97
      %p206 = pneg %p121
      %p207 = pneg %p118
      %p208 = pneg %p147
      %p209 = pneg %p144
      %p210 = scmp.lt.s32.totalorder %s16, 1
      %s211 = scalar_select %p210, %s16, 1
      %s212 = smul.addr %s211, 8
      %s213 = smul.addr %s212, 8
      %s214 = scalar_lea.vmem %s5, %s213
      %p215 = scmp.lt.s32.totalorder %s16, 1
      %s216 = scalar_select %p215, %s16, 1
      %s217 = smul.addr %s216, 64
      %s218 = smul.addr %s217, 4
      %s219 = scalar_lea.vmem %s0, %s218
      %p220 = scmp.lt.s32.totalorder %s16, 1
      %s221 = scalar_select %p220, %s16, 1
      %s222 = smul.addr %s221, 8
      %s223 = smul.addr %s222, 8
      %s224 = scalar_lea.vmem %s5, %s223
      %v226 = vld [vmem:[%s219] sm:$0xff]
      %v227 = vld [vmem:[%s219 + $0x8] sm:$0xff]
      %v228 = vld [vmem:[%s219 + $0x10] sm:$0xff]
      %v229 = vld [vmem:[%s219 + $0x18] sm:$0xff]
      %v230 = vld [vmem:[%s219 + $0x20] sm:$0xff]
      %v231 = vld [vmem:[%s219 + $0x28] sm:$0xff]
      %v232 = vld [vmem:[%s219 + $0x30] sm:$0xff]
      %v233 = vld [vmem:[%s219 + $0x38] sm:$0xff]
      %v234 = vld [vmem:[%s219 + $0x40] sm:$0xff]
      %v235 = vld [vmem:[%s219 + $0x48] sm:$0xff]
      %v236 = vld [vmem:[%s219 + $0x50] sm:$0xff]
      %v237 = vld [vmem:[%s219 + $0x58] sm:$0xff]
      %v238 = vld [vmem:[%s219 + $0x60] sm:$0xff]
      %v239 = vld [vmem:[%s219 + $0x68] sm:$0xff]
      %v240 = vld [vmem:[%s219 + $0x70] sm:$0xff]
      %v241 = vld [vmem:[%s219 + $0x78] sm:$0xff]
      %v242 = vld [vmem:[%s219 + $0x80] sm:$0xff]
      %v243 = vld [vmem:[%s219 + $0x88] sm:$0xff]
      %v244 = vld [vmem:[%s219 + $0x90] sm:$0xff]
      %v245 = vld [vmem:[%s219 + $0x98] sm:$0xff]
      %v246 = vld [vmem:[%s219 + $0xa0] sm:$0xff]
      %v247 = vld [vmem:[%s219 + $0xa8] sm:$0xff]
      %v248 = vld [vmem:[%s219 + $0xb0] sm:$0xff]
      %v249 = vld [vmem:[%s219 + $0xb8] sm:$0xff]
      %v250 = vld [vmem:[%s219 + $0xc0] sm:$0xff]
      %v251 = vld [vmem:[%s219 + $0xc8] sm:$0xff]
      %v252 = vld [vmem:[%s219 + $0xd0] sm:$0xff]
      %v253 = vld [vmem:[%s219 + $0xd8] sm:$0xff]
      %v254 = vld [vmem:[%s219 + $0xe0] sm:$0xff]
      %v255 = vld [vmem:[%s219 + $0xe8] sm:$0xff]
      %v256 = vld [vmem:[%s219 + $0xf0] sm:$0xff]
      %v257 = vld [vmem:[%s219 + $0xf8] sm:$0xff]
      %v258 = vld [vmem:[%s1] sm:$0xf]
      %v259 = vld [vmem:[%s1 + $0x4] sm:$0xf]
      %v260 = vld [vmem:[%s1 + $0x8] sm:$0xf]
      %v261 = vld [vmem:[%s1 + $0xc] sm:$0xf]
      %v262 = vld [vmem:[%s1 + $0x10] sm:$0xf]
      %v263 = vld [vmem:[%s1 + $0x14] sm:$0xf]
      %v264 = vld [vmem:[%s1 + $0x18] sm:$0xf]
      %v265 = vld [vmem:[%s1 + $0x1c] sm:$0xf]
      %v266 = vld [vmem:[%s1 + $0x20] sm:$0xf]
      %v267 = vld [vmem:[%s1 + $0x24] sm:$0xf]
      %v268 = vld [vmem:[%s1 + $0x28] sm:$0xf]
      %v269 = vld [vmem:[%s1 + $0x2c] sm:$0xf]
      %v270 = vld [vmem:[%s1 + $0x30] sm:$0xf]
      %v271 = vld [vmem:[%s1 + $0x34] sm:$0xf]
      %v272 = vld [vmem:[%s1 + $0x38] sm:$0xf]
      %v273 = vld [vmem:[%s1 + $0x3c] sm:$0xf]
      %v274 = vld [vmem:[%s1 + $0x40] sm:$0xf]
      %v275 = vld [vmem:[%s1 + $0x44] sm:$0xf]
      %v308 = vunpack.c.l.b16 %v226
      %v309 = vunpack.c.h.b16 %v226
      %v310 = vunpack.c.l.b16 %v227
      %v311 = vunpack.c.h.b16 %v227
      %v312 = vunpack.c.l.b16 %v228
      %v313 = vunpack.c.h.b16 %v228
      %v314 = vunpack.c.l.b16 %v229
      %v315 = vunpack.c.h.b16 %v229
      %v316 = vunpack.c.l.b16 %v230
      %v317 = vunpack.c.h.b16 %v230
      %v318 = vunpack.c.l.b16 %v231
      %v319 = vunpack.c.h.b16 %v231
      %v320 = vunpack.c.l.b16 %v232
      %v321 = vunpack.c.h.b16 %v232
      %v322 = vunpack.c.l.b16 %v233
      %v323 = vunpack.c.h.b16 %v233
      %v324 = vunpack.c.l.b16 %v234
      %v325 = vunpack.c.h.b16 %v234
      %v326 = vunpack.c.l.b16 %v235
      %v327 = vunpack.c.h.b16 %v235
      %v328 = vunpack.c.l.b16 %v236
      %v329 = vunpack.c.h.b16 %v236
      %v330 = vunpack.c.l.b16 %v237
      %v331 = vunpack.c.h.b16 %v237
      %v332 = vunpack.c.l.b16 %v238
      %v333 = vunpack.c.h.b16 %v238
      %v334 = vunpack.c.l.b16 %v239
      %v335 = vunpack.c.h.b16 %v239
      %v336 = vunpack.c.l.b16 %v240
      %v337 = vunpack.c.h.b16 %v240
      %v338 = vunpack.c.l.b16 %v241
      %v339 = vunpack.c.h.b16 %v241
      %v340 = vunpack.c.l.b16 %v242
      %v341 = vunpack.c.h.b16 %v242
      %v342 = vunpack.c.l.b16 %v243
      %v343 = vunpack.c.h.b16 %v243
      %v344 = vunpack.c.l.b16 %v244
      %v345 = vunpack.c.h.b16 %v244
      %v346 = vunpack.c.l.b16 %v245
      %v347 = vunpack.c.h.b16 %v245
      %v348 = vunpack.c.l.b16 %v246
      %v349 = vunpack.c.h.b16 %v246
      %v350 = vunpack.c.l.b16 %v247
      %v351 = vunpack.c.h.b16 %v247
      %v352 = vunpack.c.l.b16 %v248
      %v353 = vunpack.c.h.b16 %v248
      %v354 = vunpack.c.l.b16 %v249
      %v355 = vunpack.c.h.b16 %v249
      %v356 = vunpack.c.l.b16 %v250
      %v357 = vunpack.c.h.b16 %v250
      %v358 = vunpack.c.l.b16 %v251
      %v359 = vunpack.c.h.b16 %v251
      %v360 = vunpack.c.l.b16 %v252
      %v361 = vunpack.c.h.b16 %v252
      %v362 = vunpack.c.l.b16 %v253
      %v363 = vunpack.c.h.b16 %v253
      %v364 = vunpack.c.l.b16 %v254
      %v365 = vunpack.c.h.b16 %v254
      %v366 = vunpack.c.l.b16 %v255
      %v367 = vunpack.c.h.b16 %v255
      %v368 = vunpack.c.l.b16 %v256
      %v369 = vunpack.c.h.b16 %v256
      %v370 = vunpack.c.l.b16 %v257
      %v371 = vunpack.c.h.b16 %v257
      %v372 = vpack.c.b16 %v310, %v308
      %v373 = vpack.c.b16 %v311, %v309
      %v374 = vpack.c.b16 %v314, %v312
      %v375 = vpack.c.b16 %v315, %v313
      %v376 = vpack.c.b16 %v318, %v316
      %v377 = vpack.c.b16 %v319, %v317
      %v378 = vpack.c.b16 %v322, %v320
      %v379 = vpack.c.b16 %v323, %v321
      %v380 = vpack.c.b16 %v326, %v324
      %v381 = vpack.c.b16 %v327, %v325
      %v382 = vpack.c.b16 %v330, %v328
      %v383 = vpack.c.b16 %v331, %v329
      %v384 = vpack.c.b16 %v334, %v332
      %v385 = vpack.c.b16 %v335, %v333
      %v386 = vpack.c.b16 %v338, %v336
      %v387 = vpack.c.b16 %v339, %v337
      %v388 = vpack.c.b16 %v342, %v340
      %v389 = vpack.c.b16 %v343, %v341
      %v390 = vpack.c.b16 %v346, %v344
      %v391 = vpack.c.b16 %v347, %v345
      %v392 = vpack.c.b16 %v350, %v348
      %v393 = vpack.c.b16 %v351, %v349
      %v394 = vpack.c.b16 %v354, %v352
      %v395 = vpack.c.b16 %v355, %v353
      %v396 = vpack.c.b16 %v358, %v356
      %v397 = vpack.c.b16 %v359, %v357
      %v398 = vpack.c.b16 %v362, %v360
      %v399 = vpack.c.b16 %v363, %v361
      %v400 = vpack.c.b16 %v366, %v364
      %v401 = vpack.c.b16 %v367, %v365
      %v402 = vpack.c.b16 %v370, %v368
      %v403 = vpack.c.b16 %v371, %v369
      %v438 = vunpack.c.l.b16 %v258
      %v439 = vunpack.c.l.b16 %v259
      %v440 = vunpack.c.l.b16 %v260
      %v441 = vunpack.c.l.b16 %v261
      %v442 = vunpack.c.l.b16 %v262
      %v443 = vunpack.c.l.b16 %v263
      %v444 = vunpack.c.l.b16 %v264
      %v445 = vunpack.c.l.b16 %v265
      %v446 = vunpack.c.l.b16 %v266
      %v447 = vunpack.c.l.b16 %v267
      %v448 = vunpack.c.l.b16 %v268
      %v449 = vunpack.c.l.b16 %v269
      %v450 = vunpack.c.l.b16 %v270
      %v451 = vunpack.c.l.b16 %v271
      %v452 = vunpack.c.l.b16 %v272
      %v453 = vunpack.c.l.b16 %v273
      %v454 = vunpack.c.l.b16 %v274
      %v455 = vunpack.c.l.b16 %v275
      %v456 = vpack.c.b16 %v439, %v438
      %v457 = vpack.c.b16 %v441, %v440
      %v458 = vpack.c.b16 %v443, %v442
      %v459 = vpack.c.b16 %v445, %v444
      %v460 = vpack.c.b16 %v447, %v446
      %v461 = vpack.c.b16 %v449, %v448
      %v462 = vpack.c.b16 %v451, %v450
      %v463 = vpack.c.b16 %v453, %v452
      %v464 = vpack.c.b16 %v455, %v454
      %vm474 = vcmask 130048
      %v476 = vsel %vm474, %v373, 0
      %v479 = vsel %vm474, %v375, 0
      %v482 = vsel %vm474, %v377, 0
      %v485 = vsel %vm474, %v379, 0
      %v488 = vsel %vm474, %v381, 0
      %v491 = vsel %vm474, %v383, 0
      %v494 = vsel %vm474, %v385, 0
      %v497 = vsel %vm474, %v387, 0
      %v500 = vsel %vm474, %v389, 0
      %v503 = vsel %vm474, %v391, 0
      %v506 = vsel %vm474, %v393, 0
      %v509 = vsel %vm474, %v395, 0
      %v512 = vsel %vm474, %v397, 0
      %v515 = vsel %vm474, %v399, 0
      %v518 = vsel %vm474, %v401, 0
      %v521 = vsel %vm474, %v403, 0
      %523 = vmatprep.subr.bf16.mxu0 0
      %524 = vmatpush1.bf16.msra.mxu0 %v463
      %525 = vmatprep.subr.bf16.mxu0 0
      %526 = vmatpush1.bf16.msra.mxu0 %v462
      %527 = vmatprep.subr.bf16.mxu0 0
      %528 = vmatpush1.bf16.msra.mxu0 %v461
      %529 = vmatprep.subr.bf16.mxu0 0
      %530 = vmatpush1.bf16.msra.mxu0 %v460
      %531 = vmatprep.subr.bf16.mxu0 0
      %532 = vmatpush1.bf16.msra.mxu0 %v459
      %533 = vmatprep.subr.bf16.mxu0 0
      %534 = vmatpush1.bf16.msra.mxu0 %v458
      %535 = vmatprep.subr.bf16.mxu0 0
      %536 = vmatpush1.bf16.msra.mxu0 %v457
      %537 = vmatprep.subr.bf16.mxu0 0
      %538 = vmatpush1.bf16.msra.mxu0 %v456
      %539 = vmatprep.subr.bf16.mxu0 0
      %540 = vmatpush2.bf16.msra.mxu0 0
      %541 = vmatprep.subr.bf16.mxu0 0
      %542 = vmatpush2.bf16.msra.mxu0 0
      %543 = vmatprep.subr.bf16.mxu0 0
      %544 = vmatpush2.bf16.msra.mxu0 0
      %545 = vmatprep.subr.bf16.mxu0 0
      %546 = vmatpush2.bf16.msra.mxu0 0
      %547 = vmatprep.subr.bf16.mxu0 0
      %548 = vmatpush2.bf16.msra.mxu0 0
      %549 = vmatprep.subr.bf16.mxu0 0
      %550 = vmatpush2.bf16.msra.mxu0 0
      %551 = vmatprep.subr.bf16.mxu0 0
      %552 = vmatpush2.bf16.msra.mxu0 0
      %553 = vmatprep.subr.bf16.mxu0 0
      %554 = vmatpush2.bf16.msra.mxu0 %v464
      %555 = vmatprep.mubr.bf16.mxu0 %v476
      %556 = vmatmul.mubr.bf16.gmra.mxu0 %v372
      %v557 = vpop.f32.mrf.mxu0
      %v558 = vadd.f32 0.0, %v557
      %v559 = vpop.f32.mrf.mxu0
      %v560 = vpop.f32.mrf.mxu0
      %v561 = vadd.f32 0.0, %v560
      %v562 = vpop.f32.mrf.mxu0
      %563 = vmatprep.mubr.bf16.mxu0 %v479
      %564 = vmatmul.mubr.bf16.gmra.mxu0 %v374
      %v565 = vpop.f32.mrf.mxu0
      %v566 = vadd.f32 0.0, %v565
      %v567 = vpop.f32.mrf.mxu0
      %v568 = vpop.f32.mrf.mxu0
      %v569 = vadd.f32 0.0, %v568
      %v570 = vpop.f32.mrf.mxu0
      %571 = vmatprep.mubr.bf16.mxu0 %v482
      %572 = vmatmul.mubr.bf16.gmra.mxu0 %v376
      %v573 = vpop.f32.mrf.mxu0
      %v574 = vadd.f32 0.0, %v573
      %v575 = vpop.f32.mrf.mxu0
      %v576 = vpop.f32.mrf.mxu0
      %v577 = vadd.f32 0.0, %v576
      %v578 = vpop.f32.mrf.mxu0
      %579 = vmatprep.mubr.bf16.mxu0 %v485
      %580 = vmatmul.mubr.bf16.gmra.mxu0 %v378
      %v581 = vpop.f32.mrf.mxu0
      %v582 = vadd.f32 0.0, %v581
      %v583 = vpop.f32.mrf.mxu0
      %v584 = vpop.f32.mrf.mxu0
      %v585 = vadd.f32 0.0, %v584
      %v586 = vpop.f32.mrf.mxu0
      %587 = vmatprep.mubr.bf16.mxu0 %v488
      %588 = vmatmul.mubr.bf16.gmra.mxu0 %v380
      %v589 = vpop.f32.mrf.mxu0
      %v590 = vadd.f32 0.0, %v589
      %v591 = vpop.f32.mrf.mxu0
      %v592 = vpop.f32.mrf.mxu0
      %v593 = vadd.f32 0.0, %v592
      %v594 = vpop.f32.mrf.mxu0
      %595 = vmatprep.mubr.bf16.mxu0 %v491
      %596 = vmatmul.mubr.bf16.gmra.mxu0 %v382
      %v597 = vpop.f32.mrf.mxu0
      %v598 = vadd.f32 0.0, %v597
      %v599 = vpop.f32.mrf.mxu0
      %v600 = vpop.f32.mrf.mxu0
      %v601 = vadd.f32 0.0, %v600
      %v602 = vpop.f32.mrf.mxu0
      %603 = vmatprep.mubr.bf16.mxu0 %v494
      %604 = vmatmul.mubr.bf16.gmra.mxu0 %v384
      %v605 = vpop.f32.mrf.mxu0
      %v606 = vadd.f32 0.0, %v605
      %v607 = vpop.f32.mrf.mxu0
      %v608 = vpop.f32.mrf.mxu0
      %v609 = vadd.f32 0.0, %v608
      %v610 = vpop.f32.mrf.mxu0
      %611 = vmatprep.mubr.bf16.mxu0 %v497
      %612 = vmatmul.mubr.bf16.gmra.mxu0 %v386
      %v613 = vpop.f32.mrf.mxu0
      %v614 = vadd.f32 0.0, %v613
      %v615 = vpop.f32.mrf.mxu0
      %v616 = vpop.f32.mrf.mxu0
      %v617 = vadd.f32 0.0, %v616
      %v618 = vpop.f32.mrf.mxu0
      %619 = vmatprep.mubr.bf16.mxu0 %v500
      %620 = vmatmul.mubr.bf16.gmra.mxu0 %v388
      %v621 = vpop.f32.mrf.mxu0
      %v622 = vadd.f32 0.0, %v621
      %v623 = vpop.f32.mrf.mxu0
      %v624 = vpop.f32.mrf.mxu0
      %v625 = vadd.f32 0.0, %v624
      %v626 = vpop.f32.mrf.mxu0
      %627 = vmatprep.mubr.bf16.mxu0 %v503
      %628 = vmatmul.mubr.bf16.gmra.mxu0 %v390
      %v629 = vpop.f32.mrf.mxu0
      %v630 = vadd.f32 0.0, %v629
      %v631 = vpop.f32.mrf.mxu0
      %v632 = vpop.f32.mrf.mxu0
      %v633 = vadd.f32 0.0, %v632
      %v634 = vpop.f32.mrf.mxu0
      %635 = vmatprep.mubr.bf16.mxu0 %v506
      %636 = vmatmul.mubr.bf16.gmra.mxu0 %v392
      %v637 = vpop.f32.mrf.mxu0
      %v638 = vadd.f32 0.0, %v637
      %v639 = vpop.f32.mrf.mxu0
      %v640 = vpop.f32.mrf.mxu0
      %v641 = vadd.f32 0.0, %v640
      %v642 = vpop.f32.mrf.mxu0
      %643 = vmatprep.mubr.bf16.mxu0 %v509
      %644 = vmatmul.mubr.bf16.gmra.mxu0 %v394
      %v645 = vpop.f32.mrf.mxu0
      %v646 = vadd.f32 0.0, %v645
      %v647 = vpop.f32.mrf.mxu0
      %v648 = vpop.f32.mrf.mxu0
      %v649 = vadd.f32 0.0, %v648
      %v650 = vpop.f32.mrf.mxu0
      %651 = vmatprep.mubr.bf16.mxu0 %v512
      %652 = vmatmul.mubr.bf16.gmra.mxu0 %v396
      %v653 = vpop.f32.mrf.mxu0
      %v654 = vadd.f32 0.0, %v653
      %v655 = vpop.f32.mrf.mxu0
      %v656 = vpop.f32.mrf.mxu0
      %v657 = vadd.f32 0.0, %v656
      %v658 = vpop.f32.mrf.mxu0
      %659 = vmatprep.mubr.bf16.mxu0 %v515
      %660 = vmatmul.mubr.bf16.gmra.mxu0 %v398
      %v661 = vpop.f32.mrf.mxu0
      %v662 = vadd.f32 0.0, %v661
      %v663 = vpop.f32.mrf.mxu0
      %v664 = vpop.f32.mrf.mxu0
      %v665 = vadd.f32 0.0, %v664
      %v666 = vpop.f32.mrf.mxu0
      %667 = vmatprep.mubr.bf16.mxu0 %v518
      %668 = vmatmul.mubr.bf16.gmra.mxu0 %v400
      %v669 = vpop.f32.mrf.mxu0
      %v670 = vadd.f32 0.0, %v669
      %v671 = vpop.f32.mrf.mxu0
      %v672 = vpop.f32.mrf.mxu0
      %v673 = vadd.f32 0.0, %v672
      %v674 = vpop.f32.mrf.mxu0
      %675 = vmatprep.mubr.bf16.mxu0 %v521
      %676 = vmatmul.mubr.bf16.gmra.mxu0 %v402
      %v677 = vpop.f32.mrf.mxu0
      %v678 = vadd.f32 0.0, %v677
      %v679 = vpop.f32.mrf.mxu0
      %v680 = vpop.f32.mrf.mxu0
      %v681 = vadd.f32 0.0, %v680
      %v682 = vpop.f32.mrf.mxu0
      %683 = vdwg.mxu0
      %v684 = vmax.f32 %v558, %v590
      %v685 = vmax.f32 %v561, %v593
      %v686 = vmax.f32 %v566, %v598
      %v687 = vmax.f32 %v569, %v601
      %v688 = vmax.f32 %v574, %v606
      %v689 = vmax.f32 %v577, %v609
      %v690 = vmax.f32 %v582, %v614
      %v691 = vmax.f32 %v585, %v617
      %v692 = vmax.f32 %v622, %v654
      %v693 = vmax.f32 %v625, %v657
      %v694 = vmax.f32 %v630, %v662
      %v695 = vmax.f32 %v633, %v665
      %v696 = vmax.f32 %v638, %v670
      %v697 = vmax.f32 %v641, %v673
      %v698 = vmax.f32 %v646, %v678
      %v699 = vmax.f32 %v649, %v681
      %v700 = vmax.f32 %v684, %v692
      %v701 = vmax.f32 %v685, %v693
      %v702 = vmax.f32 %v686, %v694
      %v703 = vmax.f32 %v687, %v695
      %v704 = vmax.f32 %v688, %v696
      %v705 = vmax.f32 %v689, %v697
      %v706 = vmax.f32 %v690, %v698
      %v707 = vmax.f32 %v691, %v699
      %v708 = vmin.f32 %v558, %v590
      %v709 = vmin.f32 %v561, %v593
      %v710 = vmin.f32 %v566, %v598
      %v711 = vmin.f32 %v569, %v601
      %v712 = vmin.f32 %v574, %v606
      %v713 = vmin.f32 %v577, %v609
      %v714 = vmin.f32 %v582, %v614
      %v715 = vmin.f32 %v585, %v617
      %v716 = vmin.f32 %v622, %v654
      %v717 = vmin.f32 %v625, %v657
      %v718 = vmin.f32 %v630, %v662
      %v719 = vmin.f32 %v633, %v665
      %v720 = vmin.f32 %v638, %v670
      %v721 = vmin.f32 %v641, %v673
      %v722 = vmin.f32 %v646, %v678
      %v723 = vmin.f32 %v649, %v681
      %v724 = vmin.f32 %v708, %v716
      %v725 = vmin.f32 %v709, %v717
      %v726 = vmin.f32 %v710, %v718
      %v727 = vmin.f32 %v711, %v719
      %v728 = vmin.f32 %v712, %v720
      %v729 = vmin.f32 %v713, %v721
      %v730 = vmin.f32 %v714, %v722
      %v731 = vmin.f32 %v715, %v723
      %v732 = vld [vmem:[%s3] sm:$0x1]
      %vm733 = vcmp.ge.f32.partialorder %v732, 0.0
      %v734 = vsel %vm733, 1, 0
      %v735 = vlaneseq
      %v736 = vshrl.u32 %v735, 7
      %v737 = vsub.s32 0, %v736
      %v738 = vrot.slane %v734, %v737
      %vm739 = vcmp.eq.s32.totalorder %v738, 1
      %v740 = vsel %vm739, %v700, %v724
      %v741 = vsel %vm739, %v701, %v725
      %v742 = vsel %vm739, %v702, %v726
      %v743 = vsel %vm739, %v703, %v727
      %v744 = vsel %vm739, %v704, %v728
      %v745 = vsel %vm739, %v705, %v729
      %v746 = vsel %vm739, %v706, %v730
      %v747 = vsel %vm739, %v707, %v731
      %v748 = vld [vmem:[%s2] sm:$0x1]
      %v750 = vlaneseq
      %v751 = vshrl.u32 %v750, 7
      %v752 = vsub.s32 0, %v751
      %v753 = vrot.slane %v748, %v752
      %v755 = vadd.f32 %v740, %v753
      %v756 = vadd.f32 %v741, %v753
      %v757 = vadd.f32 %v742, %v753
      %v758 = vadd.f32 %v743, %v753
      %v759 = vadd.f32 %v744, %v753
      %v760 = vadd.f32 %v745, %v753
      %v761 = vadd.f32 %v746, %v753
      %v762 = vadd.f32 %v747, %v753
      %v763 = vtanh.pop %v755
      %v764 = vtanh.pop %v756
      %v765 = vtanh.pop %v757
      %v766 = vtanh.pop %v758
      %v767 = vtanh.pop %v759
      %v768 = vtanh.pop %v760
      %v769 = vtanh.pop %v761
      %v770 = vtanh.pop %v762
      %v772 = vlaneseq
      %v773 = vshrl.u32 %v772, 7
      %v774 = vsub.s32 0, %v773
      %v775 = vrot.slane %v732, %v774
      %v777 = vmul.f32 %v763, %v775
      %v778 = vmul.f32 %v764, %v775
      %v779 = vmul.f32 %v765, %v775
      %v780 = vmul.f32 %v766, %v775
      %v781 = vmul.f32 %v767, %v775
      %v782 = vmul.f32 %v768, %v775
      %v783 = vmul.f32 %v769, %v775
      %v784 = vmul.f32 %v770, %v775
      %v785 = vld [vmem:[%s4] sm:$0x1]
      %v787 = vlaneseq
      %v788 = vshrl.u32 %v787, 7
      %v789 = vsub.s32 0, %v788
      %v790 = vrot.slane %v785, %v789
      %v792 = vadd.f32 %v777, %v790
      %v793 = vadd.f32 %v778, %v790
      %v794 = vadd.f32 %v779, %v790
      %v795 = vadd.f32 %v780, %v790
      %v796 = vadd.f32 %v781, %v790
      %v797 = vadd.f32 %v782, %v790
      %v798 = vadd.f32 %v783, %v790
      %v799 = vadd.f32 %v784, %v790
      %800 = vst.msk [vmem:[%s224] sm:$0xff] %vm474, %v792
      %801 = vst.msk [vmem:[%s224 + $0x8] sm:$0xff] %vm474, %v793
      %802 = vst.msk [vmem:[%s224 + $0x10] sm:$0xff] %vm474, %v794
      %803 = vst.msk [vmem:[%s224 + $0x18] sm:$0xff] %vm474, %v795
      %804 = vst.msk [vmem:[%s224 + $0x20] sm:$0xff] %vm474, %v796
      %805 = vst.msk [vmem:[%s224 + $0x28] sm:$0xff] %vm474, %v797
      %806 = vst.msk [vmem:[%s224 + $0x30] sm:$0xff] %vm474, %v798
      %807 = vst.msk [vmem:[%s224 + $0x38] sm:$0xff] %vm474, %v799
      %p808 = scmp.lt.s32.totalorder %s16, 1
      %s809 = scalar_select %p808, %s16, 1
      %s810 = smul.addr %s809, 8
      %s811 = smul.addr %s810, 8
      %s812 = scalar_lea.vmem %s5, %s811
      // Predicated region
      $region41: #{conv_discriminator_forward.4} parent=39 // pred_check
        %p813 = pneg %p144
      $region42: #{conv_discriminator_forward.4} parent=39 // pred_check_branch
        %815 = sbr.rel (%p813) target = $region44
      $region43: #{conv_discriminator_forward.4} parent=39 // pred_region
        _
      $region44: #{conv_discriminator_forward.4} parent=39 // pred_fallthru
        _
    $region40: #{conv_discriminator_forward.4} parent=5 // pred_fallthru
      _
    %p816 = scmp.le.s32.totalorder 2, %s11
    // Predicated region
    $region45: #{conv_discriminator_forward.4} parent=5 // pred_check
      %p817 = pneg %p816
    $region46: #{conv_discriminator_forward.4} parent=5 // pred_check_branch
      %819 = sbr.rel (%p817) target = $region48
    $region47: #{conv_discriminator_forward.4} parent=5 // pred_region
      %s820 = ssub.s32 %s11, 2
      // Predicated region
      $region49: #{conv_discriminator_forward.4} parent=47 // pred_check
        %p821 = pneg %p150
      $region50: #{conv_discriminator_forward.4} parent=47 // pred_check_branch
        %823 = sbr.rel (%p821) target = $region52
      $region51: #{conv_discriminator_forward.4} parent=47 // pred_region
        %p824 = scmp.lt.s32.totalorder %s17, 1
        %s825 = scalar_select %p824, %s17, 1
        %s826 = smul.addr %s825, 8
        %s827 = smul.addr %s826, 8
        %s828 = scalar_lea.vmem %s5, %s827
      $region52: #{conv_discriminator_forward.4} parent=47 // pred_fallthru
        _
    $region48: #{conv_discriminator_forward.4} parent=5 // pred_fallthru
      _
  $region6: #{conv_discriminator_forward.4} parent=0 // loop_footer
    %s15 = sadd.s32 1, %s11
  $region7: #{conv_discriminator_forward.4} parent=0 // loop_footer_branch
    %10 = sbr.rel target = $region3
  $region8: #{conv_discriminator_forward.4} parent=0 // loop_exit
    _

// kernel: conv_discriminator_forward.5
$region0: #{conv_discriminator_forward.5}
  #allocation0 [shape = 'u32[]', space=smem, size = 0x4, offset = 0x4, fixed_abs, tag = 'smem constant byte address 0x4 - core index']
  #allocation1 [shape = 'u32[144,128]{1,0:T(1,128)}', space=vmem, size = 0x12000, scoped, tag = 'internal scratch']
  #allocation2 [shape = 'f32[16,32]{1,0:T(8,128)}', space=vmem, size = 0x2000, scoped, tag = 'scratch operand']
  #allocation3 [shape = 'f32[1,1]{1,0:T(1,128)S(1)}', space=vmem, size = 0x200, scoped, tag = 'scoped memory for conv_discriminator_forward.5']
  %s0 = inlined_call_operand.vmem [shape: bf16[2,64,144], index: 0, kind: input, shape index: {}]
  %s1 = inlined_call_operand.vmem [shape: bf16[144,32], index: 1, kind: input, shape index: {}]
  %s2 = inlined_call_operand.vmem [shape: f32[1,32], index: 2, kind: input, shape index: {}]
  %s3 = inlined_call_operand.vmem [shape: f32[1,32], index: 3, kind: input, shape index: {}]
  %s4 = inlined_call_operand.vmem [shape: f32[1,32], index: 4, kind: input, shape index: {}]
  %s5 = inlined_call_operand.vmem [shape: bf16[4,32,32], index: 5, kind: input, shape index: {}]
  %s6 = inlined_call_operand.vmem [shape: f32[1,32], index: 6, kind: input, shape index: {}]
  %s7 = inlined_call_operand.vmem [shape: bf16[32,1], index: 7, kind: input, shape index: {}]
  %s8 = inlined_call_operand.<no memory space> [shape: f32[1,1], index: 8, kind: input, shape index: {}]
  %s9 = inlined_call_operand.vmem [shape: f32[2,4,1], index: 9, kind: output, shape index: {}]
  %s10 = sld [smem:[#allocation0]]
  $region69: #{conv_discriminator_forward.5} parent=0
    _
  %s12 = ssub.s32 1, %s10
  %s13 = scalar_select 0, %s12, %s10
  %v14 = vstv %s8
  %15 = vst [vmem:[#allocation3] sm:$0x1] %v14
  loop: start=0, step=1, limit=4
  $region2: #{conv_discriminator_forward.5} parent=0 // loop_pre_header
    _
  $region3: #{conv_discriminator_forward.5} parent=0 // loop_header
    %s17 = sphi 0, %s21
    %p18 = scmp.ge.s32.totalorder %s17, 4
    %s27 = sphi 0, %s29
    %s30 = sphi 0, %s27
    %s31 = sphi 0, %s30
    %s47 = sphi 0, %s31
    %s51 = sphi 0, %s51
    %s53 = sphi 0, %s51
    %s54 = sphi 0, %s53
    %s68 = sphi 0, %s54
    %s72 = sphi 0, %s72
    %s74 = sphi 0, %s72
    %s75 = sphi 0, %s74
    %s89 = sphi 0, %s75
    %s93 = sphi 0, %s93
    %s95 = sphi 0, %s93
    %s96 = sphi 0, %s95
    %s110 = sphi 0, %s96
    %s114 = sphi 0, %s114
    %s116 = sphi 0, %s114
    %s117 = sphi 0, %s116
    %s131 = sphi 0, %s117
    %s135 = sphi 0, %s135
    %s137 = sphi 0, %s135
    %s138 = sphi 0, %s137
    %s152 = sphi 0, %s138
    %s156 = sphi 0, %s156
    %s158 = sphi 0, %s156
    %s159 = sphi 0, %s158
    %s173 = sphi 0, %s159
    %s177 = sphi 0, %s177
    %s179 = sphi 0, %s177
    %s180 = sphi 0, %s179
    %s194 = sphi 0, %s180
    %s198 = sphi 0, %s198
    %s200 = sphi 0, %s198
    %s201 = sphi 0, %s200
    %s215 = sphi 0, %s201
    %s221 = sphi 0, %s223
    %s224 = sphi 0, %s221
    %s225 = sphi 0, %s224
    %s241 = sphi 0, %s225
  $region4: #{conv_discriminator_forward.5} parent=0 // loop_header_branch
    %20 = sbr.rel (%p18) target = $region8
  $region5: #{conv_discriminator_forward.5} parent=0 // loop_body
    %s22 = ssub.s32 %s17, 1
    %s23 = ssub.s32 %s17, 2
    %s24 = sadd.s32 %s17, 1
    %s25 = ssub.s32 %s17, %s24
    %p26 = scmp.eq.s32.totalorder %s25, 0
    %s28 = sadd.s32 %s27, 1
    %s29 = scalar_select %p26, %s27, %s28
    %p32 = pneg %p26
    %p33 = scmp.eq.s32.totalorder %s17, 1
    %p34 = por %p32, %p33
    %p35 = scmp.ne.s32.totalorder %s27, %s30
    %p36 = scmp.eq.s32.totalorder %s17, 0
    %p37 = por %p35, %p36
    %p38 = scmp.ne.s32.totalorder %s27, %s30
    %p39 = scmp.eq.s32.totalorder %s22, 1
    %p40 = por %p38, %p39
    %p41 = scmp.ne.s32.totalorder %s30, %s31
    %p42 = scmp.eq.s32.totalorder %s22, 0
    %p43 = por %p41, %p42
    %p44 = scmp.ne.s32.totalorder %s30, %s31
    %p45 = scmp.eq.s32.totalorder %s23, 1
    %p46 = por %p44, %p45
    %p48 = scmp.ne.s32.totalorder %s31, %s47
    %p49 = scmp.eq.s32.totalorder %s23, 0
    %p50 = por %p48, %p49
    %s52 = sadd.s32 %s51, 1
    %p55 = scmp.eq.s32.totalorder %s17, 1
    %p56 = scmp.ne.s32.totalorder %s51, %s53
    %p57 = scmp.eq.s32.totalorder %s17, 0
    %p58 = por %p56, %p57
    %p59 = scmp.ne.s32.totalorder %s51, %s53
    %p60 = scmp.eq.s32.totalorder %s22, 1
    %p61 = por %p59, %p60
    %p62 = scmp.ne.s32.totalorder %s53, %s54
    %p63 = scmp.eq.s32.totalorder %s22, 0
    %p64 = por %p62, %p63
    %p65 = scmp.ne.s32.totalorder %s53, %s54
    %p66 = scmp.eq.s32.totalorder %s23, 1
    %p67 = por %p65, %p66
    %p69 = scmp.ne.s32.totalorder %s54, %s68
    %p70 = scmp.eq.s32.totalorder %s23, 0
    %p71 = por %p69, %p70
    %s73 = sadd.s32 %s72, 1
    %p76 = scmp.eq.s32.totalorder %s17, 1
    %p77 = scmp.ne.s32.totalorder %s72, %s74
    %p78 = scmp.eq.s32.totalorder %s17, 0
    %p79 = por %p77, %p78
    %p80 = scmp.ne.s32.totalorder %s72, %s74
    %p81 = scmp.eq.s32.totalorder %s22, 1
    %p82 = por %p80, %p81
    %p83 = scmp.ne.s32.totalorder %s74, %s75
    %p84 = scmp.eq.s32.totalorder %s22, 0
    %p85 = por %p83, %p84
    %p86 = scmp.ne.s32.totalorder %s74, %s75
    %p87 = scmp.eq.s32.totalorder %s23, 1
    %p88 = por %p86, %p87
    %p90 = scmp.ne.s32.totalorder %s75, %s89
    %p91 = scmp.eq.s32.totalorder %s23, 0
    %p92 = por %p90, %p91
    %s94 = sadd.s32 %s93, 1
    %p97 = scmp.eq.s32.totalorder %s17, 1
    %p98 = scmp.ne.s32.totalorder %s93, %s95
    %p99 = scmp.eq.s32.totalorder %s17, 0
    %p100 = por %p98, %p99
    %p101 = scmp.ne.s32.totalorder %s93, %s95
    %p102 = scmp.eq.s32.totalorder %s22, 1
    %p103 = por %p101, %p102
    %p104 = scmp.ne.s32.totalorder %s95, %s96
    %p105 = scmp.eq.s32.totalorder %s22, 0
    %p106 = por %p104, %p105
    %p107 = scmp.ne.s32.totalorder %s95, %s96
    %p108 = scmp.eq.s32.totalorder %s23, 1
    %p109 = por %p107, %p108
    %p111 = scmp.ne.s32.totalorder %s96, %s110
    %p112 = scmp.eq.s32.totalorder %s23, 0
    %p113 = por %p111, %p112
    %s115 = sadd.s32 %s114, 1
    %p118 = scmp.eq.s32.totalorder %s17, 1
    %p119 = scmp.ne.s32.totalorder %s114, %s116
    %p120 = scmp.eq.s32.totalorder %s17, 0
    %p121 = por %p119, %p120
    %p122 = scmp.ne.s32.totalorder %s114, %s116
    %p123 = scmp.eq.s32.totalorder %s22, 1
    %p124 = por %p122, %p123
    %p125 = scmp.ne.s32.totalorder %s116, %s117
    %p126 = scmp.eq.s32.totalorder %s22, 0
    %p127 = por %p125, %p126
    %p128 = scmp.ne.s32.totalorder %s116, %s117
    %p129 = scmp.eq.s32.totalorder %s23, 1
    %p130 = por %p128, %p129
    %p132 = scmp.ne.s32.totalorder %s117, %s131
    %p133 = scmp.eq.s32.totalorder %s23, 0
    %p134 = por %p132, %p133
    %s136 = sadd.s32 %s135, 1
    %p139 = scmp.eq.s32.totalorder %s17, 1
    %p140 = scmp.ne.s32.totalorder %s135, %s137
    %p141 = scmp.eq.s32.totalorder %s17, 0
    %p142 = por %p140, %p141
    %p143 = scmp.ne.s32.totalorder %s135, %s137
    %p144 = scmp.eq.s32.totalorder %s22, 1
    %p145 = por %p143, %p144
    %p146 = scmp.ne.s32.totalorder %s137, %s138
    %p147 = scmp.eq.s32.totalorder %s22, 0
    %p148 = por %p146, %p147
    %p149 = scmp.ne.s32.totalorder %s137, %s138
    %p150 = scmp.eq.s32.totalorder %s23, 1
    %p151 = por %p149, %p150
    %p153 = scmp.ne.s32.totalorder %s138, %s152
    %p154 = scmp.eq.s32.totalorder %s23, 0
    %p155 = por %p153, %p154
    %s157 = sadd.s32 %s156, 1
    %p160 = scmp.eq.s32.totalorder %s17, 1
    %p161 = scmp.ne.s32.totalorder %s156, %s158
    %p162 = scmp.eq.s32.totalorder %s17, 0
    %p163 = por %p161, %p162
    %p164 = scmp.ne.s32.totalorder %s156, %s158
    %p165 = scmp.eq.s32.totalorder %s22, 1
    %p166 = por %p164, %p165
    %p167 = scmp.ne.s32.totalorder %s158, %s159
    %p168 = scmp.eq.s32.totalorder %s22, 0
    %p169 = por %p167, %p168
    %p170 = scmp.ne.s32.totalorder %s158, %s159
    %p171 = scmp.eq.s32.totalorder %s23, 1
    %p172 = por %p170, %p171
    %p174 = scmp.ne.s32.totalorder %s159, %s173
    %p175 = scmp.eq.s32.totalorder %s23, 0
    %p176 = por %p174, %p175
    %s178 = sadd.s32 %s177, 1
    %p181 = scmp.eq.s32.totalorder %s17, 1
    %p182 = scmp.ne.s32.totalorder %s177, %s179
    %p183 = scmp.eq.s32.totalorder %s17, 0
    %p184 = por %p182, %p183
    %p185 = scmp.ne.s32.totalorder %s177, %s179
    %p186 = scmp.eq.s32.totalorder %s22, 1
    %p187 = por %p185, %p186
    %p188 = scmp.ne.s32.totalorder %s179, %s180
    %p189 = scmp.eq.s32.totalorder %s22, 0
    %p190 = por %p188, %p189
    %p191 = scmp.ne.s32.totalorder %s179, %s180
    %p192 = scmp.eq.s32.totalorder %s23, 1
    %p193 = por %p191, %p192
    %p195 = scmp.ne.s32.totalorder %s180, %s194
    %p196 = scmp.eq.s32.totalorder %s23, 0
    %p197 = por %p195, %p196
    %s199 = sadd.s32 %s198, 1
    %p202 = scmp.eq.s32.totalorder %s17, 1
    %p203 = scmp.ne.s32.totalorder %s198, %s200
    %p204 = scmp.eq.s32.totalorder %s17, 0
    %p205 = por %p203, %p204
    %p206 = scmp.ne.s32.totalorder %s198, %s200
    %p207 = scmp.eq.s32.totalorder %s22, 1
    %p208 = por %p206, %p207
    %p209 = scmp.ne.s32.totalorder %s200, %s201
    %p210 = scmp.eq.s32.totalorder %s22, 0
    %p211 = por %p209, %p210
    %p212 = scmp.ne.s32.totalorder %s200, %s201
    %p213 = scmp.eq.s32.totalorder %s23, 1
    %p214 = por %p212, %p213
    %p216 = scmp.ne.s32.totalorder %s201, %s215
    %p217 = scmp.eq.s32.totalorder %s23, 0
    %p218 = por %p216, %p217
    %s219 = ssub.s32 %s17, %s24
    %p220 = scmp.eq.s32.totalorder %s219, 0
    %s222 = sadd.s32 %s221, 1
    %s223 = scalar_select %p220, %s221, %s222
    %p226 = pneg %p220
    %p227 = scmp.eq.s32.totalorder %s17, 1
    %p228 = por %p226, %p227
    %p229 = scmp.ne.s32.totalorder %s221, %s224
    %p230 = scmp.eq.s32.totalorder %s17, 0
    %p231 = por %p229, %p230
    %p232 = scmp.ne.s32.totalorder %s221, %s224
    %p233 = scmp.eq.s32.totalorder %s22, 1
    %p234 = por %p232, %p233
    %p235 = scmp.ne.s32.totalorder %s224, %s225
    %p236 = scmp.eq.s32.totalorder %s22, 0
    %p237 = por %p235, %p236
    %p238 = scmp.ne.s32.totalorder %s224, %s225
    %p239 = scmp.eq.s32.totalorder %s23, 1
    %p240 = por %p238, %p239
    %p242 = scmp.ne.s32.totalorder %s225, %s241
    %p243 = scmp.eq.s32.totalorder %s23, 0
    %p244 = por %p242, %p243
    %p245 = scmp.le.s32.totalorder 1, %s17
    %p246 = scmp.lt.s32.totalorder %s17, 3
    %p247 = pnand %p245, %p246
    %p248 = pneg %p247
    // Predicated region
    $region9: #{conv_discriminator_forward.5} parent=5 // pred_check
      _
    $region10: #{conv_discriminator_forward.5} parent=5 // pred_check_branch
      %250 = sbr.rel (%p247) target = $region12
    $region11: #{conv_discriminator_forward.5} parent=5 // pred_region
      %s251 = ssub.s32 %s17, 1
      // Predicated region
      $region13: #{conv_discriminator_forward.5} parent=11 // pred_check
        %p252 = pneg %p64
      $region14: #{conv_discriminator_forward.5} parent=11 // pred_check_branch
        %254 = sbr.rel (%p252) target = $region16
      $region15: #{conv_discriminator_forward.5} parent=11 // pred_region
        _
      $region16: #{conv_discriminator_forward.5} parent=11 // pred_fallthru
        _
      // Predicated region
      $region17: #{conv_discriminator_forward.5} parent=11 // pred_check
        %p255 = pneg %p85
      $region18: #{conv_discriminator_forward.5} parent=11 // pred_check_branch
        %257 = sbr.rel (%p255) target = $region20
      $region19: #{conv_discriminator_forward.5} parent=11 // pred_region
        _
      $region20: #{conv_discriminator_forward.5} parent=11 // pred_fallthru
        _
      // Predicated region
      $region21: #{conv_discriminator_forward.5} parent=11 // pred_check
        %p258 = pneg %p106
      $region22: #{conv_discriminator_forward.5} parent=11 // pred_check_branch
        %260 = sbr.rel (%p258) target = $region24
      $region23: #{conv_discriminator_forward.5} parent=11 // pred_region
        _
      $region24: #{conv_discriminator_forward.5} parent=11 // pred_fallthru
        _
      // Predicated region
      $region25: #{conv_discriminator_forward.5} parent=11 // pred_check
        %p261 = pneg %p127
      $region26: #{conv_discriminator_forward.5} parent=11 // pred_check_branch
        %263 = sbr.rel (%p261) target = $region28
      $region27: #{conv_discriminator_forward.5} parent=11 // pred_region
        _
      $region28: #{conv_discriminator_forward.5} parent=11 // pred_fallthru
        _
      // Predicated region
      $region29: #{conv_discriminator_forward.5} parent=11 // pred_check
        %p264 = pneg %p148
      $region30: #{conv_discriminator_forward.5} parent=11 // pred_check_branch
        %266 = sbr.rel (%p264) target = $region32
      $region31: #{conv_discriminator_forward.5} parent=11 // pred_region
        _
      $region32: #{conv_discriminator_forward.5} parent=11 // pred_fallthru
        _
      // Predicated region
      $region33: #{conv_discriminator_forward.5} parent=11 // pred_check
        %p267 = pneg %p169
      $region34: #{conv_discriminator_forward.5} parent=11 // pred_check_branch
        %269 = sbr.rel (%p267) target = $region36
      $region35: #{conv_discriminator_forward.5} parent=11 // pred_region
        _
      $region36: #{conv_discriminator_forward.5} parent=11 // pred_fallthru
        _
      // Predicated region
      $region37: #{conv_discriminator_forward.5} parent=11 // pred_check
        %p270 = pneg %p190
      $region38: #{conv_discriminator_forward.5} parent=11 // pred_check_branch
        %272 = sbr.rel (%p270) target = $region40
      $region39: #{conv_discriminator_forward.5} parent=11 // pred_region
        _
      $region40: #{conv_discriminator_forward.5} parent=11 // pred_fallthru
        _
      // Predicated region
      $region41: #{conv_discriminator_forward.5} parent=11 // pred_check
        %p273 = pneg %p211
      $region42: #{conv_discriminator_forward.5} parent=11 // pred_check_branch
        %275 = sbr.rel (%p273) target = $region44
      $region43: #{conv_discriminator_forward.5} parent=11 // pred_region
        _
      $region44: #{conv_discriminator_forward.5} parent=11 // pred_fallthru
        _
    $region12: #{conv_discriminator_forward.5} parent=5 // pred_fallthru
      _
    %p276 = scmp.lt.s32.totalorder %s17, 2
    // Predicated region
    $region45: #{conv_discriminator_forward.5} parent=5 // pred_check
      %p277 = pneg %p276
    $region46: #{conv_discriminator_forward.5} parent=5 // pred_check_branch
      %279 = sbr.rel (%p277) target = $region48
    $region47: #{conv_discriminator_forward.5} parent=5 // pred_region
      // Predicated region
      $region49: #{conv_discriminator_forward.5} parent=47 // pred_check
        %p280 = pneg %p37
      $region50: #{conv_discriminator_forward.5} parent=47 // pred_check_branch
        %282 = sbr.rel (%p280) target = $region52
      $region51: #{conv_discriminator_forward.5} parent=47 // pred_region
        %p283 = scmp.lt.s32.totalorder %s17, 1
        %s284 = scalar_select %p283, %s17, 1
        %s285 = smul.addr %s284, 16
        %s286 = smul.addr %s285, 4
        %s287 = scalar_lea.vmem %s0, %s286
      $region52: #{conv_discriminator_forward.5} parent=47 // pred_fallthru
        _
    $region48: #{conv_discriminator_forward.5} parent=5 // pred_fallthru
      _
    %p288 = scmp.le.s32.totalorder 1, %s17
    %p289 = scmp.lt.s32.totalorder %s17, 3
    %p290 = pnand %p288, %p289
    %p291 = pneg %p290
    // Predicated region
    $region53: #{conv_discriminator_forward.5} parent=5 // pred_check
      _
    $region54: #{conv_discriminator_forward.5} parent=5 // pred_check_branch
      %293 = sbr.rel (%p290) target = $region56
    $region55: #{conv_discriminator_forward.5} parent=5 // pred_region
      %s294 = ssub.s32 %s17, 1
      %p295 = scmp.lt.s32.totalorder %s22, 1
      %s296 = scalar_select %p295, %s22, 1
      %s297 = smul.addr %s296, 16
      %s298 = smul.addr %s297, 4
      %s299 = scalar_lea.vmem %s0, %s298
      %p300 = pneg %p43
      %p301 = pneg %p40
      %p302 = pneg %p64
      %p303 = pneg %p61
      %p304 = pneg %p85
      %p305 = pneg %p82
      %p306 = pneg %p106
      %p307 = pneg %p103
      %p308 = pneg %p127
      %p309 = pneg %p124
      %p310 = pneg %p148
      %p311 = pneg %p145
      %p312 = pneg %p169
      %p313 = pneg %p166
      %p314 = pneg %p190
      %p315 = pneg %p187
      %p316 = pneg %p211
      %p317 = pneg %p208
      %p318 = pneg %p237
      %p319 = pneg %p234
      %p320 = scmp.lt.s32.totalorder %s22, 1
      %s321 = scalar_select %p320, %s22, 1
      %s322 = smul.addr %s321, 4
      %s323 = scalar_lea.vmem %s9, %s322
      %p324 = scmp.lt.s32.totalorder %s22, 1
      %s325 = scalar_select %p324, %s22, 1
      %s326 = smul.addr %s325, 16
      %s327 = smul.addr %s326, 4
      %s328 = scalar_lea.vmem %s0, %s327
      %p329 = scmp.lt.s32.totalorder %s22, 1
      %s330 = scalar_select %p329, %s22, 1
      %s331 = smul.addr %s330, 4
      %s332 = scalar_lea.vmem %s9, %s331
      %v334 = vld [vmem:[%s328] sm:$0xff]
      %v335 = vld [vmem:[%s328 + $0x8] sm:$0xff]
      %v336 = vld [vmem:[%s328 + $0x10] sm:$0xff]
      %v337 = vld [vmem:[%s328 + $0x18] sm:$0xff]
      %v338 = vld [vmem:[%s328 + $0x20] sm:$0xff]
      %v339 = vld [vmem:[%s328 + $0x28] sm:$0xff]
      %v340 = vld [vmem:[%s328 + $0x30] sm:$0xff]
      %v341 = vld [vmem:[%s328 + $0x38] sm:$0xff]
      %v342 = vld [vmem:[%s1] sm:$0xf]
      %v343 = vld [vmem:[%s1 + $0x4] sm:$0xf]
      %v344 = vld [vmem:[%s1 + $0x8] sm:$0xf]
      %v345 = vld [vmem:[%s1 + $0xc] sm:$0xf]
      %v346 = vld [vmem:[%s1 + $0x10] sm:$0xf]
      %v347 = vld [vmem:[%s1 + $0x14] sm:$0xf]
      %v348 = vld [vmem:[%s1 + $0x18] sm:$0xf]
      %v349 = vld [vmem:[%s1 + $0x1c] sm:$0xf]
      %v350 = vld [vmem:[%s1 + $0x20] sm:$0xf]
      %v351 = vld [vmem:[%s1 + $0x24] sm:$0xf]
      %v352 = vld [vmem:[%s1 + $0x28] sm:$0xf]
      %v353 = vld [vmem:[%s1 + $0x2c] sm:$0xf]
      %v354 = vld [vmem:[%s1 + $0x30] sm:$0xf]
      %v355 = vld [vmem:[%s1 + $0x34] sm:$0xf]
      %v356 = vld [vmem:[%s1 + $0x38] sm:$0xf]
      %v357 = vld [vmem:[%s1 + $0x3c] sm:$0xf]
      %v358 = vld [vmem:[%s1 + $0x40] sm:$0xf]
      %v359 = vld [vmem:[%s1 + $0x44] sm:$0xf]
      %v368 = vunpack.c.l.b16 %v334
      %v369 = vunpack.c.h.b16 %v334
      %v370 = vunpack.c.l.b16 %v335
      %v371 = vunpack.c.h.b16 %v335
      %v372 = vunpack.c.l.b16 %v336
      %v373 = vunpack.c.h.b16 %v336
      %v374 = vunpack.c.l.b16 %v337
      %v375 = vunpack.c.h.b16 %v337
      %v376 = vunpack.c.l.b16 %v338
      %v377 = vunpack.c.h.b16 %v338
      %v378 = vunpack.c.l.b16 %v339
      %v379 = vunpack.c.h.b16 %v339
      %v380 = vunpack.c.l.b16 %v340
      %v381 = vunpack.c.h.b16 %v340
      %v382 = vunpack.c.l.b16 %v341
      %v383 = vunpack.c.h.b16 %v341
      %v384 = vpack.c.b16 %v370, %v368
      %v385 = vpack.c.b16 %v371, %v369
      %v386 = vpack.c.b16 %v374, %v372
      %v387 = vpack.c.b16 %v375, %v373
      %v388 = vpack.c.b16 %v378, %v376
      %v389 = vpack.c.b16 %v379, %v377
      %v390 = vpack.c.b16 %v382, %v380
      %v391 = vpack.c.b16 %v383, %v381
      %v414 = vunpack.c.l.b16 %v342
      %v415 = vunpack.c.l.b16 %v343
      %v416 = vunpack.c.l.b16 %v344
      %v417 = vunpack.c.l.b16 %v345
      %v418 = vunpack.c.l.b16 %v346
      %v419 = vunpack.c.l.b16 %v347
      %v420 = vunpack.c.l.b16 %v348
      %v421 = vunpack.c.l.b16 %v349
      %v422 = vunpack.c.l.b16 %v350
      %v423 = vunpack.c.l.b16 %v351
      %v424 = vunpack.c.l.b16 %v352
      %v425 = vunpack.c.l.b16 %v353
      %v426 = vunpack.c.l.b16 %v354
      %v427 = vunpack.c.l.b16 %v355
      %v428 = vunpack.c.l.b16 %v356
      %v429 = vunpack.c.l.b16 %v357
      %v430 = vunpack.c.l.b16 %v358
      %v431 = vunpack.c.l.b16 %v359
      %v432 = vpack.c.b16 %v415, %v414
      %v433 = vpack.c.b16 %v417, %v416
      %v434 = vpack.c.b16 %v419, %v418
      %v435 = vpack.c.b16 %v421, %v420
      %v436 = vpack.c.b16 %v423, %v422
      %v437 = vpack.c.b16 %v425, %v424
      %v438 = vpack.c.b16 %v427, %v426
      %v439 = vpack.c.b16 %v429, %v428
      %v440 = vpack.c.b16 %v431, %v430
      %vm450 = vcmask 130048
      %v452 = vsel %vm450, %v385, 0
      %v455 = vsel %vm450, %v387, 0
      %v458 = vsel %vm450, %v389, 0
      %v461 = vsel %vm450, %v391, 0
      %463 = vmatprep.subr.bf16.mxu0 0
      %464 = vmatpush1.bf16.msra.mxu0 %v439
      %465 = vmatprep.subr.bf16.mxu0 0
      %466 = vmatpush1.bf16.msra.mxu0 %v438
      %467 = vmatprep.subr.bf16.mxu0 0
      %468 = vmatpush1.bf16.msra.mxu0 %v437
      %469 = vmatprep.subr.bf16.mxu0 0
      %470 = vmatpush1.bf16.msra.mxu0 %v436
      %471 = vmatprep.subr.bf16.mxu0 0
      %472 = vmatpush1.bf16.msra.mxu0 %v435
      %473 = vmatprep.subr.bf16.mxu0 0
      %474 = vmatpush1.bf16.msra.mxu0 %v434
      %475 = vmatprep.subr.bf16.mxu0 0
      %476 = vmatpush1.bf16.msra.mxu0 %v433
      %477 = vmatprep.subr.bf16.mxu0 0
      %478 = vmatpush1.bf16.msra.mxu0 %v432
      %479 = vmatprep.subr.bf16.mxu0 0
      %480 = vmatpush2.bf16.msra.mxu0 0
      %481 = vmatprep.subr.bf16.mxu0 0
      %482 = vmatpush2.bf16.msra.mxu0 0
      %483 = vmatprep.subr.bf16.mxu0 0
      %484 = vmatpush2.bf16.msra.mxu0 0
      %485 = vmatprep.subr.bf16.mxu0 0
      %486 = vmatpush2.bf16.msra.mxu0 0
      %487 = vmatprep.subr.bf16.mxu0 0
      %488 = vmatpush2.bf16.msra.mxu0 0
      %489 = vmatprep.subr.bf16.mxu0 0
      %490 = vmatpush2.bf16.msra.mxu0 0
      %491 = vmatprep.subr.bf16.mxu0 0
      %492 = vmatpush2.bf16.msra.mxu0 0
      %493 = vmatprep.subr.bf16.mxu0 0
      %494 = vmatpush2.bf16.msra.mxu0 %v440
      %495 = vmatprep.mubr.bf16.mxu0 %v452
      %496 = vmatmul.mubr.bf16.gmra.mxu0 %v384
      %v497 = vpop.f32.mrf.mxu0
      %v498 = vadd.f32 0.0, %v497
      %v499 = vpop.f32.mrf.mxu0
      %v500 = vpop.f32.mrf.mxu0
      %v501 = vadd.f32 0.0, %v500
      %v502 = vpop.f32.mrf.mxu0
      %503 = vmatprep.mubr.bf16.mxu0 %v455
      %504 = vmatmul.mubr.bf16.gmra.mxu0 %v386
      %v505 = vpop.f32.mrf.mxu0
      %v506 = vadd.f32 0.0, %v505
      %v507 = vpop.f32.mrf.mxu0
      %v508 = vpop.f32.mrf.mxu0
      %v509 = vadd.f32 0.0, %v508
      %v510 = vpop.f32.mrf.mxu0
      %511 = vmatprep.mubr.bf16.mxu0 %v458
      %512 = vmatmul.mubr.bf16.gmra.mxu0 %v388
      %v513 = vpop.f32.mrf.mxu0
      %v514 = vadd.f32 0.0, %v513
      %v515 = vpop.f32.mrf.mxu0
      %v516 = vpop.f32.mrf.mxu0
      %v517 = vadd.f32 0.0, %v516
      %v518 = vpop.f32.mrf.mxu0
      %519 = vmatprep.mubr.bf16.mxu0 %v461
      %520 = vmatmul.mubr.bf16.gmra.mxu0 %v390
      %v521 = vpop.f32.mrf.mxu0
      %v522 = vadd.f32 0.0, %v521
      %v523 = vpop.f32.mrf.mxu0
      %v524 = vpop.f32.mrf.mxu0
      %v525 = vadd.f32 0.0, %v524
      %v526 = vpop.f32.mrf.mxu0
      %527 = vdwg.mxu0
      %v528 = vmax.f32 %v498, %v506
      %v529 = vmax.f32 %v501, %v509
      %v530 = vmax.f32 %v514, %v522
      %v531 = vmax.f32 %v517, %v525
      %v532 = vmax.f32 %v528, %v530
      %v533 = vmax.f32 %v529, %v531
      %v534 = vmin.f32 %v498, %v506
      %v535 = vmin.f32 %v501, %v509
      %v536 = vmin.f32 %v514, %v522
      %v537 = vmin.f32 %v517, %v525
      %v538 = vmin.f32 %v534, %v536
      %v539 = vmin.f32 %v535, %v537
      %v540 = vld [vmem:[%s3] sm:$0x1]
      %vm541 = vcmp.ge.f32.partialorder %v540, 0.0
      %v542 = vsel %vm541, 1, 0
      %v543 = vlaneseq
      %v544 = vshrl.u32 %v543, 7
      %v545 = vsub.s32 0, %v544
      %v546 = vrot.slane %v542, %v545
      %vm547 = vcmp.eq.s32.totalorder %v546, 1
      %v548 = vsel %vm547, %v532, %v538
      %v549 = vsel %vm547, %v533, %v539
      %v550 = vld [vmem:[%s2] sm:$0x1]
      %v552 = vlaneseq
      %v553 = vshrl.u32 %v552, 7
      %v554 = vsub.s32 0, %v553
      %v555 = vrot.slane %v550, %v554
      %v557 = vadd.f32 %v548, %v555
      %v558 = vadd.f32 %v549, %v555
      %v559 = vtanh.pop %v557
      %v560 = vtanh.pop %v558
      %v562 = vlaneseq
      %v563 = vshrl.u32 %v562, 7
      %v564 = vsub.s32 0, %v563
      %v565 = vrot.slane %v540, %v564
      %v567 = vmul.f32 %v559, %v565
      %v568 = vmul.f32 %v560, %v565
      %v569 = vld [vmem:[%s4] sm:$0x1]
      %v571 = vlaneseq
      %v572 = vshrl.u32 %v571, 7
      %v573 = vsub.s32 0, %v572
      %v574 = vrot.slane %v569, %v573
      %v576 = vadd.f32 %v567, %v574
      %v577 = vadd.f32 %v568, %v574
      %vm578 = vcmask 261120
      %579 = vst.msk [vmem:[#allocation2] sm:$0xff] %vm578, %v576
      %580 = vst.msk [vmem:[#allocation2 + $0x8] sm:$0xff] %vm578, %v577
      %v581 = vld [vmem:[#allocation2] sm:$0xf]
      %v582 = vpack.c.bf16 %v581, %v581
      %v583 = vld [vmem:[%s5] sm:$0xf]
      %v584 = vld [vmem:[%s5 + $0x4] sm:$0xf]
      %v585 = vld [vmem:[%s5 + $0x8] sm:$0xf]
      %v586 = vld [vmem:[%s5 + $0xc] sm:$0xf]
      %v587 = vld [vmem:[#allocation2 + $0x4] sm:$0xf]
      %v588 = vpack.c.bf16 %v587, %v587
      %s589 = scalar_lea.vmem %s5, 16
      %v590 = vld [vmem:[%s589] sm:$0xf]
      %v591 = vld [vmem:[%s589 + $0x4] sm:$0xf]
      %v592 = vld [vmem:[%s589 + $0x8] sm:$0xf]
      %v593 = vld [vmem:[%s589 + $0xc] sm:$0xf]
      %v598 = vunpack.c.l.b16 %v590
      %v599 = vunpack.c.l.b16 %v591
      %v600 = vunpack.c.l.b16 %v592
      %v601 = vunpack.c.l.b16 %v593
      %v602 = vpack.c.b16 %v599, %v598
      %v603 = vpack.c.b16 %v601, %v600
      %v607 = vsel %vm578, %v588, 0
      %609 = vmatprep.subr.bf16.mxu0 0
      %610 = vmatpush1.bf16.msra.mxu0 0
      %611 = vmatprep.subr.bf16.mxu0 0
      %612 = vmatpush1.bf16.msra.mxu0 0
      %613 = vmatprep.subr.bf16.mxu0 0
      %614 = vmatpush1.bf16.msra.mxu0 0
      %615 = vmatprep.subr.bf16.mxu0 0
      %616 = vmatpush1.bf16.msra.mxu0 0
      %617 = vmatprep.subr.bf16.mxu0 0
      %618 = vmatpush1.bf16.msra.mxu0 0
      %619 = vmatprep.subr.bf16.mxu0 0
      %620 = vmatpush1.bf16.msra.mxu0 0
      %621 = vmatprep.subr.bf16.mxu0 0
      %622 = vmatpush1.bf16.msra.mxu0 %v603
      %623 = vmatprep.subr.bf16.mxu0 0
      %624 = vmatpush1.bf16.msra.mxu0 %v602
      %625 = vmatprep.subr.bf16.mxu0 0
      %626 = vmatpush2.bf16.msra.mxu0 0
      %627 = vmatprep.subr.bf16.mxu0 0
      %628 = vmatpush2.bf16.msra.mxu0 0
      %629 = vmatprep.subr.bf16.mxu0 0
      %630 = vmatpush2.bf16.msra.mxu0 0
      %631 = vmatprep.subr.bf16.mxu0 0
      %632 = vmatpush2.bf16.msra.mxu0 0
      %633 = vmatprep.subr.bf16.mxu0 0
      %634 = vmatpush2.bf16.msra.mxu0 0
      %635 = vmatprep.subr.bf16.mxu0 0
      %636 = vmatpush2.bf16.msra.mxu0 0
      %637 = vmatprep.subr.bf16.mxu0 0
      %638 = vmatpush2.bf16.msra.mxu0 0
      %639 = vmatprep.subr.bf16.mxu0 0
      %640 = vmatpush2.bf16.msra.mxu0 0
      %641 = vmatprep.mubr.bf16.mxu0 0
      %642 = vmatmul.mubr.bf16.gmra.mxu0 %v607
      %v643 = vpop.f32.mrf.mxu0
      %v644 = vadd.f32 0.0, %v643
      %v645 = vpop.f32.mrf.mxu0
      %v646 = vpop.f32.mrf.mxu0
      %v647 = vpop.f32.mrf.mxu0
      %648 = vdwg.mxu0
      %v653 = vunpack.c.l.b16 %v583
      %v654 = vunpack.c.l.b16 %v584
      %v655 = vunpack.c.l.b16 %v585
      %v656 = vunpack.c.l.b16 %v586
      %v657 = vpack.c.b16 %v654, %v653
      %v658 = vpack.c.b16 %v656, %v655
      %v662 = vsel %vm578, %v582, 0
      %664 = vmatprep.subr.bf16.mxu0 0
      %665 = vmatpush1.bf16.msra.mxu0 0
      %666 = vmatprep.subr.bf16.mxu0 0
      %667 = vmatpush1.bf16.msra.mxu0 0
      %668 = vmatprep.subr.bf16.mxu0 0
      %669 = vmatpush1.bf16.msra.mxu0 0
      %670 = vmatprep.subr.bf16.mxu0 0
      %671 = vmatpush1.bf16.msra.mxu0 0
      %672 = vmatprep.subr.bf16.mxu0 0
      %673 = vmatpush1.bf16.msra.mxu0 0
      %674 = vmatprep.subr.bf16.mxu0 0
      %675 = vmatpush1.bf16.msra.mxu0 0
      %676 = vmatprep.subr.bf16.mxu0 0
      %677 = vmatpush1.bf16.msra.mxu0 %v658
      %678 = vmatprep.subr.bf16.mxu0 0
      %679 = vmatpush1.bf16.msra.mxu0 %v657
      %680 = vmatprep.subr.bf16.mxu0 0
      %681 = vmatpush2.bf16.msra.mxu0 0
      %682 = vmatprep.subr.bf16.mxu0 0
      %683 = vmatpush2.bf16.msra.mxu0 0
      %684 = vmatprep.subr.bf16.mxu0 0
      %685 = vmatpush2.bf16.msra.mxu0 0
      %686 = vmatprep.subr.bf16.mxu0 0
      %687 = vmatpush2.bf16.msra.mxu0 0
      %688 = vmatprep.subr.bf16.mxu0 0
      %689 = vmatpush2.bf16.msra.mxu0 0
      %690 = vmatprep.subr.bf16.mxu0 0
      %691 = vmatpush2.bf16.msra.mxu0 0
      %692 = vmatprep.subr.bf16.mxu0 0
      %693 = vmatpush2.bf16.msra.mxu0 0
      %694 = vmatprep.subr.bf16.mxu0 0
      %695 = vmatpush2.bf16.msra.mxu0 0
      %696 = vmatprep.mubr.bf16.mxu0 0
      %697 = vmatmul.mubr.bf16.gmra.mxu0 %v662
      %v698 = vpop.f32.mrf.mxu0
      %v699 = vadd.f32 %v644, %v698
      %v700 = vpop.f32.mrf.mxu0
      %v701 = vpop.f32.mrf.mxu0
      %v702 = vpop.f32.mrf.mxu0
      %703 = vdwg.mxu0
      %v704 = vld [vmem:[#allocation2 + $0x8] sm:$0xf]
      %v705 = vpack.c.bf16 %v704, %v704
      %s706 = scalar_lea.vmem %s5, 32
      %v707 = vld [vmem:[%s706] sm:$0xf]
      %v708 = vld [vmem:[%s706 + $0x4] sm:$0xf]
      %v709 = vld [vmem:[%s706 + $0x8] sm:$0xf]
      %v710 = vld [vmem:[%s706 + $0xc] sm:$0xf]
      %v715 = vunpack.c.l.b16 %v707
      %v716 = vunpack.c.l.b16 %v708
      %v717 = vunpack.c.l.b16 %v709
      %v718 = vunpack.c.l.b16 %v710
      %v719 = vpack.c.b16 %v716, %v715
      %v720 = vpack.c.b16 %v718, %v717
      %v724 = vsel %vm578, %v705, 0
      %726 = vmatprep.subr.bf16.mxu0 0
      %727 = vmatpush1.bf16.msra.mxu0 0
      %728 = vmatprep.subr.bf16.mxu0 0
      %729 = vmatpush1.bf16.msra.mxu0 0
      %730 = vmatprep.subr.bf16.mxu0 0
      %731 = vmatpush1.bf16.msra.mxu0 0
      %732 = vmatprep.subr.bf16.mxu0 0
      %733 = vmatpush1.bf16.msra.mxu0 0
      %734 = vmatprep.subr.bf16.mxu0 0
      %735 = vmatpush1.bf16.msra.mxu0 0
      %736 = vmatprep.subr.bf16.mxu0 0
      %737 = vmatpush1.bf16.msra.mxu0 0
      %738 = vmatprep.subr.bf16.mxu0 0
      %739 = vmatpush1.bf16.msra.mxu0 %v720
      %740 = vmatprep.subr.bf16.mxu0 0
      %741 = vmatpush1.bf16.msra.mxu0 %v719
      %742 = vmatprep.subr.bf16.mxu0 0
      %743 = vmatpush2.bf16.msra.mxu0 0
      %744 = vmatprep.subr.bf16.mxu0 0
      %745 = vmatpush2.bf16.msra.mxu0 0
      %746 = vmatprep.subr.bf16.mxu0 0
      %747 = vmatpush2.bf16.msra.mxu0 0
      %748 = vmatprep.subr.bf16.mxu0 0
      %749 = vmatpush2.bf16.msra.mxu0 0
      %750 = vmatprep.subr.bf16.mxu0 0
      %751 = vmatpush2.bf16.msra.mxu0 0
      %752 = vmatprep.subr.bf16.mxu0 0
      %753 = vmatpush2.bf16.msra.mxu0 0
      %754 = vmatprep.subr.bf16.mxu0 0
      %755 = vmatpush2.bf16.msra.mxu0 0
      %756 = vmatprep.subr.bf16.mxu0 0
      %757 = vmatpush2.bf16.msra.mxu0 0
      %758 = vmatprep.mubr.bf16.mxu0 0
      %759 = vmatmul.mubr.bf16.gmra.mxu0 %v724
      %v760 = vpop.f32.mrf.mxu0
      %v761 = vadd.f32 0.0, %v760
      %v762 = vpop.f32.mrf.mxu0
      %v763 = vpop.f32.mrf.mxu0
      %v764 = vpop.f32.mrf.mxu0
      %765 = vdwg.mxu0
      %v766 = vadd.f32 %v699, %v761
      %v767 = vld [vmem:[#allocation2 + $0xc] sm:$0xf]
      %v768 = vpack.c.bf16 %v767, %v767
      %s769 = scalar_lea.vmem %s5, 48
      %v770 = vld [vmem:[%s769] sm:$0xf]
      %v771 = vld [vmem:[%s769 + $0x4] sm:$0xf]
      %v772 = vld [vmem:[%s769 + $0x8] sm:$0xf]
      %v773 = vld [vmem:[%s769 + $0xc] sm:$0xf]
      %v778 = vunpack.c.l.b16 %v770
      %v779 = vunpack.c.l.b16 %v771
      %v780 = vunpack.c.l.b16 %v772
      %v781 = vunpack.c.l.b16 %v773
      %v782 = vpack.c.b16 %v779, %v778
      %v783 = vpack.c.b16 %v781, %v780
      %v787 = vsel %vm578, %v768, 0
      %789 = vmatprep.subr.bf16.mxu0 0
      %790 = vmatpush1.bf16.msra.mxu0 0
      %791 = vmatprep.subr.bf16.mxu0 0
      %792 = vmatpush1.bf16.msra.mxu0 0
      %793 = vmatprep.subr.bf16.mxu0 0
      %794 = vmatpush1.bf16.msra.mxu0 0
      %795 = vmatprep.subr.bf16.mxu0 0
      %796 = vmatpush1.bf16.msra.mxu0 0
      %797 = vmatprep.subr.bf16.mxu0 0
      %798 = vmatpush1.bf16.msra.mxu0 0
      %799 = vmatprep.subr.bf16.mxu0 0
      %800 = vmatpush1.bf16.msra.mxu0 0
      %801 = vmatprep.subr.bf16.mxu0 0
      %802 = vmatpush1.bf16.msra.mxu0 %v783
      %803 = vmatprep.subr.bf16.mxu0 0
      %804 = vmatpush1.bf16.msra.mxu0 %v782
      %805 = vmatprep.subr.bf16.mxu0 0
      %806 = vmatpush2.bf16.msra.mxu0 0
      %807 = vmatprep.subr.bf16.mxu0 0
      %808 = vmatpush2.bf16.msra.mxu0 0
      %809 = vmatprep.subr.bf16.mxu0 0
      %810 = vmatpush2.bf16.msra.mxu0 0
      %811 = vmatprep.subr.bf16.mxu0 0
      %812 = vmatpush2.bf16.msra.mxu0 0
      %813 = vmatprep.subr.bf16.mxu0 0
      %814 = vmatpush2.bf16.msra.mxu0 0
      %815 = vmatprep.subr.bf16.mxu0 0
      %816 = vmatpush2.bf16.msra.mxu0 0
      %817 = vmatprep.subr.bf16.mxu0 0
      %818 = vmatpush2.bf16.msra.mxu0 0
      %819 = vmatprep.subr.bf16.mxu0 0
      %820 = vmatpush2.bf16.msra.mxu0 0
      %821 = vmatprep.mubr.bf16.mxu0 0
      %822 = vmatmul.mubr.bf16.gmra.mxu0 %v787
      %v823 = vpop.f32.mrf.mxu0
      %v824 = vadd.f32 0.0, %v823
      %v825 = vpop.f32.mrf.mxu0
      %v826 = vpop.f32.mrf.mxu0
      %v827 = vpop.f32.mrf.mxu0
      %828 = vdwg.mxu0
      %v829 = vadd.f32 %v766, %v824
      %v830 = vld [vmem:[%s6] sm:$0x1]
      %v832 = vlaneseq
      %v833 = vshrl.u32 %v832, 7
      %v834 = vsub.s32 0, %v833
      %v835 = vrot.slane %v830, %v834
      %v837 = vadd.f32 %v829, %v835
      %v838 = vtanh.pop %v837
      %v839 = vpack.c.bf16 %v838, %v838
      %v840 = vld [vmem:[%s7] sm:$0xf]
      %v841 = vld [vmem:[%s7 + $0x4] sm:$0xf]
      %v842 = vld [vmem:[%s7 + $0x8] sm:$0xf]
      %v843 = vld [vmem:[%s7 + $0xc] sm:$0xf]
      %v844 = vld [vmem:[#allocation3] sm:$0x1]
      %v846 = vlaneseq
      %v847 = vshrl.u32 %v846, 7
      %v848 = vsub.s32 0, %v847
      %v849 = vrot.slane %v844, %v848
      %v855 = vunpack.c.l.b16 %v840
      %v856 = vunpack.c.l.b16 %v841
      %v857 = vunpack.c.l.b16 %v842
      %v858 = vunpack.c.l.b16 %v843
      %v859 = vpack.c.b16 %v856, %v855
      %v860 = vpack.c.b16 %v858, %v857
      %v864 = vsel %vm578, %v839, 0
      %866 = vmatprep.subr.bf16.mxu0 0
      %867 = vmatpush1.bf16.msra.mxu0 0
      %868 = vmatprep.subr.bf16.mxu0 0
      %869 = vmatpush1.bf16.msra.mxu0 0
      %870 = vmatprep.subr.bf16.mxu0 0
      %871 = vmatpush1.bf16.msra.mxu0 0
      %872 = vmatprep.subr.bf16.mxu0 0
      %873 = vmatpush1.bf16.msra.mxu0 0
      %874 = vmatprep.subr.bf16.mxu0 0
      %875 = vmatpush1.bf16.msra.mxu0 0
      %876 = vmatprep.subr.bf16.mxu0 0
      %877 = vmatpush1.bf16.msra.mxu0 0
      %878 = vmatprep.subr.bf16.mxu0 0
      %879 = vmatpush1.bf16.msra.mxu0 %v860
      %880 = vmatprep.subr.bf16.mxu0 0
      %881 = vmatpush1.bf16.msra.mxu0 %v859
      %882 = vmatprep.subr.bf16.mxu0 0
      %883 = vmatpush2.bf16.msra.mxu0 0
      %884 = vmatprep.subr.bf16.mxu0 0
      %885 = vmatpush2.bf16.msra.mxu0 0
      %886 = vmatprep.subr.bf16.mxu0 0
      %887 = vmatpush2.bf16.msra.mxu0 0
      %888 = vmatprep.subr.bf16.mxu0 0
      %889 = vmatpush2.bf16.msra.mxu0 0
      %890 = vmatprep.subr.bf16.mxu0 0
      %891 = vmatpush2.bf16.msra.mxu0 0
      %892 = vmatprep.subr.bf16.mxu0 0
      %893 = vmatpush2.bf16.msra.mxu0 0
      %894 = vmatprep.subr.bf16.mxu0 0
      %895 = vmatpush2.bf16.msra.mxu0 0
      %896 = vmatprep.subr.bf16.mxu0 0
      %897 = vmatpush2.bf16.msra.mxu0 0
      %898 = vmatprep.mubr.bf16.mxu0 0
      %899 = vmatmul.mubr.bf16.gmra.mxu0 %v864
      %v900 = vpop.f32.mrf.mxu0
      %v901 = vadd.f32 %v849, %v900
      %v902 = vpop.f32.mrf.mxu0
      %v903 = vpop.f32.mrf.mxu0
      %v904 = vpop.f32.mrf.mxu0
      %905 = vdwg.mxu0
      %v906 = vxor.u32 %v901, 2147483648
      %v907 = vmul.f32 %v906, 1.442695
      %v908 = vpow.pop %v907
      %v909 = vadd.f32 %v908, 1.0
      %v910 = vrcp.pop %v909
      %v911 = vmul.f32 1.0, %v910
      %vm912 = vcmask 3072
      %913 = vst.msk [vmem:[%s332] sm:$0xf] %vm912, %v911
      %p914 = scmp.lt.s32.totalorder %s22, 1
      %s915 = scalar_select %p914, %s22, 1
      %s916 = smul.addr %s915, 4
      %s917 = scalar_lea.vmem %s9, %s916
      // Predicated region
      $region57: #{conv_discriminator_forward.5} parent=55 // pred_check
        %p918 = pneg %p234
      $region58: #{conv_discriminator_forward.5} parent=55 // pred_check_branch
        %920 = sbr.rel (%p918) target = $region60
      $region59: #{conv_discriminator_forward.5} parent=55 // pred_region
        _
      $region60: #{conv_discriminator_forward.5} parent=55 // pred_fallthru
        _
    $region56: #{conv_discriminator_forward.5} parent=5 // pred_fallthru
      _
    %p921 = scmp.le.s32.totalorder 2, %s17
    // Predicated region
    $region61: #{conv_discriminator_forward.5} parent=5 // pred_check
      %p922 = pneg %p921
    $region62: #{conv_discriminator_forward.5} parent=5 // pred_check_branch
      %924 = sbr.rel (%p922) target = $region64
    $region63: #{conv_discriminator_forward.5} parent=5 // pred_region
      %s925 = ssub.s32 %s17, 2
      // Predicated region
      $region65: #{conv_discriminator_forward.5} parent=63 // pred_check
        %p926 = pneg %p240
      $region66: #{conv_discriminator_forward.5} parent=63 // pred_check_branch
        %928 = sbr.rel (%p926) target = $region68
      $region67: #{conv_discriminator_forward.5} parent=63 // pred_region
        %p929 = scmp.lt.s32.totalorder %s23, 1
        %s930 = scalar_select %p929, %s23, 1
        %s931 = smul.addr %s930, 4
        %s932 = scalar_lea.vmem %s9, %s931
      $region68: #{conv_discriminator_forward.5} parent=63 // pred_fallthru
        _
    $region64: #{conv_discriminator_forward.5} parent=5 // pred_fallthru
      _
  $region6: #{conv_discriminator_forward.5} parent=0 // loop_footer
    %s21 = sadd.s32 1, %s17
  $region7: #{conv_discriminator_forward.5} parent=0 // loop_footer_branch
    %16 = sbr.rel target = $region3
  $region8: #{conv_discriminator_forward.5} parent=0 // loop_exit
    _

</llo_original>
